<compile_context>
chip_gen: v5e
topology: v5e:2x2
jax: 0.10.0
libtpu: 0.0.40
codegen_flags: <defaults>
</compile_context>

<pallas_src>
import functools
import math

import jax
import jax.numpy as jnp
from jax import lax
from jax.experimental import pallas as pl
from jax.experimental.pallas import tpu as pltpu


# ----------------------------------------------------------------------------
# In-kernel helpers
# ----------------------------------------------------------------------------
def _layer_norm(v, g, b, eps=1e-5):
    mu = jnp.mean(v, axis=-1, keepdims=True)
    var = jnp.mean((v - mu) ** 2, axis=-1, keepdims=True)
    return (v - mu) * lax.rsqrt(var + eps) * g + b


# ----------------------------------------------------------------------------
# Fused all-layers transformer kernel (+ final LayerNorm on last layer)
# ----------------------------------------------------------------------------
def _fused_blocks_kernel(num_heads, batch_block, seq_len,
                         x_ref,
                         ln1g_ref, ln1b_ref, wqkv_ref, wo_ref, bo_ref,
                         ln2g_ref, ln2b_ref, w1_ref, b1_ref, w2_ref, b2_ref,
                         fng_ref, fnb_ref,
                         out_ref, x_scr, att_scr):
    """One layer step for one (Bb*T, E) row block.

    x_ref / out_ref: (Bb*T, E) f32        (grid axis 0 = batch block, parallel)
    *_ref weights:   one layer slice      (grid axis 1 = layer, arbitrary)
    x_scr:           residual stream, persistent across the layer axis
    att_scr:         per-layer attention output staging buffer
    """
    l = pl.program_id(1)
    n_layers = pl.num_programs(1)

    # Load the residual stream into the persistent scratch on the first layer.
    @pl.when(l == 0)
    def _():
        x_scr[...] = x_ref[...]

    x = x_scr[...]                                   # (R, E) f32
    R, E = x.shape
    H = num_heads
    D = E // H
    T = seq_len
    Bb = batch_block
    scale = float(D) ** -0.5

    # ---- LayerNorm 1 + fused QKV projection (full row block -> fills MXU M) --
    xn = _layer_norm(x, ln1g_ref[0], ln1b_ref[0])
    qkv = jnp.dot(xn.astype(jnp.bfloat16), wqkv_ref[0],
                  preferred_element_type=jnp.float32)          # (R, 3E) f32

    # ---- Causal mask (per sequence) ----
    row = lax.broadcasted_iota(jnp.int32, (T, T), 0)
    col = lax.broadcasted_iota(jnp.int32, (T, T), 1)
    causal = row >= col
    contract_last = (((1,), (1,)), ((), ()))          # q·k^T without transpose

    # ---- Per batch element, per head attention into the VMEM scratch ----
    for bi in range(Bb):                              # static unroll
        r0 = bi * T
        head_outs = []
        for h in range(H):                            # static unroll
            q = qkv[r0:r0 + T, h * D:(h + 1) * D].astype(jnp.bfloat16)
            k = qkv[r0:r0 + T, E + h * D:E + (h + 1) * D].astype(jnp.bfloat16)
            v = qkv[r0:r0 + T, 2 * E + h * D:2 * E + (h + 1) * D].astype(jnp.bfloat16)
            s = lax.dot_general(q, k, contract_last,
                                preferred_element_type=jnp.float32) * scale
            s = jnp.where(causal, s, -1e30)
            s = s - jnp.max(s, axis=-1, keepdims=True)
            p = jnp.exp(s)
            p = p * pl.reciprocal(jnp.sum(p, axis=-1, keepdims=True), approx=True)
            head_outs.append(jnp.dot(p.astype(jnp.bfloat16), v,
                                     preferred_element_type=jnp.float32))
        # full-width, lane-dense store of this sequence's attention output
        att_scr[r0:r0 + T, :] = jnp.concatenate(head_outs, axis=-1)

    # ---- Output projection: single full-width (R,E)@(E,E) matmul ----
    proj = jnp.dot(att_scr[...].astype(jnp.bfloat16), wo_ref[0],
                   preferred_element_type=jnp.float32) + bo_ref[0]
    x1 = x + proj                                     # residual 1 (f32)

    # ---- LayerNorm 2 + FeedForward (Linear -> ReLU -> Linear) ----
    x2n = _layer_norm(x1, ln2g_ref[0], ln2b_ref[0])
    h1 = jnp.dot(x2n.astype(jnp.bfloat16), w1_ref[0],
                 preferred_element_type=jnp.float32) + b1_ref[0]
    h1 = jnp.maximum(h1, 0.0)
    ff = jnp.dot(h1.astype(jnp.bfloat16), w2_ref[0],
                 preferred_element_type=jnp.float32) + b2_ref[0]
    new_x = x1 + ff                                   # residual 2 (f32)

    @pl.when(l < n_layers - 1)
    def _():
        x_scr[...] = new_x                            # carry to next layer

    @pl.when(l == n_layers - 1)
    def _():
        # Final GPT LayerNorm fused here -> LM head kernel does matmul only.
        out_ref[...] = _layer_norm(new_x, fng_ref[...], fnb_ref[...])


def gpt_blocks(x_flat, blocks, fn_g, fn_b, num_heads, seq_len, batch_block):
    """x_flat: (B*T, E) f32 -> final-LayerNormed activations (B*T, E) f32."""
    R, E = x_flat.shape
    rows_per_block = batch_block * seq_len
    assert R % rows_per_block == 0
    nb = R // rows_per_block
    n_layers = blocks["wqkv"].shape[0]

    weight_names = ("ln1_g", "ln1_b", "wqkv", "wo", "bo",
                    "ln2_g", "ln2_b", "w1", "b1", "w2", "b2")
    weights = [blocks[k] for k in weight_names]

    def layer_spec(arr):
        nd = arr.ndim
        return pl.BlockSpec((1,) + arr.shape[1:],
                            lambda b, l, _nd=nd: (l,) + (0,) * (_nd - 1))

    in_specs = [pl.BlockSpec((rows_per_block, E), lambda b, l: (b, 0))]
    in_specs += [layer_spec(w) for w in weights]
    in_specs += [pl.BlockSpec(fn_g.shape, lambda b, l: (0, 0)),
                 pl.BlockSpec(fn_b.shape, lambda b, l: (0, 0))]

    # Explicit VMEM budget: double-buffered per-layer weights + activation
    # blocks + scratch, with headroom; capped at 48 MiB (safe on v7x 64 MiB).
    per_layer_w = sum(math.prod(w.shape[1:]) * w.dtype.itemsize for w in weights)
    act_bytes = 4 * rows_per_block * E * 4 + rows_per_block * weights[7].shape[-1] * 4
    vmem_limit = int(max(32 * 2**20, min(48 * 2**20, 2 * per_layer_w + 2 * act_bytes)))

    kernel = functools.partial(_fused_blocks_kernel, num_heads, batch_block, seq_len)
    return pl.pallas_call(
        kernel,
        out_shape=jax.ShapeDtypeStruct((R, E), jnp.float32),
        grid_spec=pltpu.PrefetchScalarGridSpec(
            num_scalar_prefetch=0,
            grid=(nb, n_layers),                       # (batch: parallel, layer: arbitrary)
            in_specs=in_specs,
            out_specs=pl.BlockSpec((rows_per_block, E), lambda b, l: (b, 0)),
            scratch_shapes=[pltpu.VMEM((rows_per_block, E), jnp.float32),   # residual
                            pltpu.VMEM((rows_per_block, E), jnp.float32)],  # attention
        ),
        compiler_params=pltpu.CompilerParams(
            dimension_semantics=("parallel", "arbitrary"),
            vmem_limit_bytes=vmem_limit),
    )(x_flat, *weights, fn_g, fn_b)


# ----------------------------------------------------------------------------
# Vocab-tiled LM head (LayerNorm already applied upstream)
# ----------------------------------------------------------------------------
def _lm_head_kernel(x_ref, w_ref, b_ref, out_ref):
    out_ref[...] = jnp.dot(x_ref[...].astype(jnp.bfloat16), w_ref[...],
                           preferred_element_type=jnp.float32) + b_ref[...]


def lm_head(xn_flat, w, b, tile_v=512, tile_r=256):
    R, E = xn_flat.shape
    V = w.shape[-1]
    tile_v = min(tile_v, V)
    if V % tile_v != 0:                 # fall back to untiled for odd vocabs
        tile_v = V
    tile_r = min(tile_r, R)
    if R % tile_r != 0 or tile_r % 8 != 0:
        tile_r = R
    return pl.pallas_call(
        _lm_head_kernel,
        out_shape=jax.ShapeDtypeStruct((R, V), jnp.float32),
        grid_spec=pltpu.PrefetchScalarGridSpec(
            num_scalar_prefetch=0,
            grid=(R // tile_r, V // tile_v),
            in_specs=[pl.BlockSpec((tile_r, E), lambda r, v: (r, 0)),
                      pl.BlockSpec((E, tile_v), lambda r, v: (0, v)),
                      pl.BlockSpec((1, tile_v), lambda r, v: (0, v))],
            out_specs=pl.BlockSpec((tile_r, tile_v), lambda r, v: (r, v)),
        ),
        compiler_params=pltpu.CompilerParams(
            dimension_semantics=("parallel", "parallel"),
            vmem_limit_bytes=48 * 2**20),
    )(xn_flat, w, b)


# ----------------------------------------------------------------------------
# Parameter construction (deterministic) and full GPT forward
# ----------------------------------------------------------------------------
def init_params(key, vocab_size, block_size, n_embed, num_heads, n_layers,
                extend_width=4):
    k_tok, k_pos, k_fc, k_blk = jax.random.split(key, 4)
    k_qkv, k_wo, k_w1, k_w2 = jax.random.split(k_blk, 4)

    def nrm(k, shape, dtype=jnp.bfloat16, scale=0.02):
        return (scale * jax.random.normal(k, shape)).astype(dtype)

    L, E, W = n_layers, n_embed, extend_width
    return {
        "tok_emb": nrm(k_tok, (vocab_size, E), jnp.float32),
        "pos_emb": nrm(k_pos, (block_size, E), jnp.float32),
        "fn_g": jnp.ones((1, E), jnp.float32),
        "fn_b": jnp.zeros((1, E), jnp.float32),
        "fc_w": nrm(k_fc, (E, vocab_size)),                    # bf16 (in, out)
        "fc_b": jnp.zeros((1, vocab_size), jnp.float32),
        "blocks": {                       # per-layer weights stacked on axis 0
            "ln1_g": jnp.ones((L, 1, E), jnp.float32),
            "ln1_b": jnp.zeros((L, 1, E), jnp.float32),
            "wqkv": nrm(k_qkv, (L, E, 3 * E)),                 # bf16 fused QKV
            "wo": nrm(k_wo, (L, E, E)),                        # bf16 project.weight.T
            "bo": jnp.zeros((L, 1, E), jnp.float32),
            "ln2_g": jnp.ones((L, 1, E), jnp.float32),
            "ln2_b": jnp.zeros((L, 1, E), jnp.float32),
            "w1": nrm(k_w1, (L, E, W * E)),                    # bf16
            "b1": jnp.zeros((L, 1, W * E), jnp.float32),
            "w2": nrm(k_w2, (L, W * E, E)),                    # bf16
            "b2": jnp.zeros((L, 1, E), jnp.float32),
        },
    }


def _pick_batch_block(B, T, target_rows=256):
    """Largest divisor of B whose row block (cand*T) fills the MXU M dim."""
    for cand in range(B, 0, -1):
        if B % cand == 0 and cand * T <= target_rows and (cand * T) % 8 == 0:
            return cand
    return B


def gpt_forward(params, idx, num_heads):
    """idx: (B, T) int32 token ids -> logits (B*T, vocab_size)."""
    B, T = idx.shape
    E = params["tok_emb"].shape[-1]
    tok = jnp.take(params["tok_emb"], idx, axis=0)             # (B, T, E) [glue]
    pos = params["pos_emb"][:T][None, :, :]                    # (1, T, E) [glue]
    x = (tok + pos).reshape(B * T, E)                          # row-flattened
    bb = _pick_batch_block(B, T)
    xn = gpt_blocks(x, params["blocks"], params["fn_g"], params["fn_b"],
                    num_heads, T, bb)                          # (B*T, E), final-LN'd
    return lm_head(xn, params["fc_w"], params["fc_b"], tile_v=512)   # (B*T, V)


# ----------------------------------------------------------------------------
if __name__ == "__main__":
    # Lane-dense toy config: E and V are multiples of 128, T a multiple of 8.
    vocab_size = 256
    block_size = 16
    n_embed = 128
    num_heads = 4
    n_layers = 2
    B, T = 2, block_size

    key = jax.random.PRNGKey(0)
    pkey, ikey = jax.random.split(key)
    params = init_params(pkey, vocab_size, block_size, n_embed, num_heads, n_layers)
    idx = jax.random.randint(ikey, (B, T), 0, vocab_size, dtype=jnp.int32)

    logits = gpt_forward(params, idx, num_heads)
    logits = jax.block_until_ready(logits)
    assert logits.shape == (B * T, vocab_size), logits.shape
    assert jnp.all(jnp.isfinite(logits))
    print("KERNEL_OK")
</pallas_src>

<mosaic_0001>
module attributes {stable_mosaic.version = 11 : i64} {
  func.func @_fused_blocks_kernel(%arg0: i32, %arg1: i32, %arg2: memref<32x128xf32, #tpu.memory_space<vmem>>, %arg3: memref<1x1x128xf32, #tpu.memory_space<vmem>>, %arg4: memref<1x1x128xf32, #tpu.memory_space<vmem>>, %arg5: memref<1x128x384xbf16, #tpu.memory_space<vmem>>, %arg6: memref<1x128x128xbf16, #tpu.memory_space<vmem>>, %arg7: memref<1x1x128xf32, #tpu.memory_space<vmem>>, %arg8: memref<1x1x128xf32, #tpu.memory_space<vmem>>, %arg9: memref<1x1x128xf32, #tpu.memory_space<vmem>>, %arg10: memref<1x128x512xbf16, #tpu.memory_space<vmem>>, %arg11: memref<1x1x512xf32, #tpu.memory_space<vmem>>, %arg12: memref<1x512x128xbf16, #tpu.memory_space<vmem>>, %arg13: memref<1x1x128xf32, #tpu.memory_space<vmem>>, %arg14: memref<1x128xf32, #tpu.memory_space<vmem>>, %arg15: memref<1x128xf32, #tpu.memory_space<vmem>>, %arg16: memref<32x128xf32, #tpu.memory_space<vmem>>, %arg17: memref<32x128xf32, #tpu.memory_space<vmem>>, %arg18: memref<32x128xf32, #tpu.memory_space<vmem>>) attributes {dimension_semantics = [#tpu.dimension_semantics<parallel>, #tpu.dimension_semantics<arbitrary>], iteration_bounds = array<i64: 1, 2>, scalar_prefetch = 0 : i64, scratch_operands = 2 : i64, tpu.core_type = #tpu.core_type<tc>, window_params = [{transform_indices = @transform_0, window_bounds = array<i64: 32, 128>}, {transform_indices = @transform_1, window_bounds = array<i64: 1, 1, 128>}, {transform_indices = @transform_2, window_bounds = array<i64: 1, 1, 128>}, {transform_indices = @transform_3, window_bounds = array<i64: 1, 128, 384>}, {transform_indices = @transform_4, window_bounds = array<i64: 1, 128, 128>}, {transform_indices = @transform_5, window_bounds = array<i64: 1, 1, 128>}, {transform_indices = @transform_6, window_bounds = array<i64: 1, 1, 128>}, {transform_indices = @transform_7, window_bounds = array<i64: 1, 1, 128>}, {transform_indices = @transform_8, window_bounds = array<i64: 1, 128, 512>}, {transform_indices = @transform_9, window_bounds = array<i64: 1, 1, 512>}, {transform_indices = @transform_10, window_bounds = array<i64: 1, 512, 128>}, {transform_indices = @transform_11, window_bounds = array<i64: 1, 1, 128>}, {pipeline_mode = #tpu.pipeline_mode<synchronous>, transform_indices = @transform_12, window_bounds = array<i64: 1, 128>}, {pipeline_mode = #tpu.pipeline_mode<synchronous>, transform_indices = @transform_13, window_bounds = array<i64: 1, 128>}, {transform_indices = @transform_14, window_bounds = array<i64: 32, 128>}]} {
    %c0_i32 = arith.constant 0 : i32
    %0 = arith.cmpi eq, %arg1, %c0_i32 : i32
    %1 = arith.extui %0 : i1 to i32
    %c0_i32_0 = arith.constant 0 : i32
    %2 = arith.cmpi ne, %1, %c0_i32_0 : i32
    scf.if %2 {
      %c0_105 = arith.constant 0 : index
      %c0_106 = arith.constant 0 : index
      %286 = vector.load %arg2[%c0_105, %c0_106] : memref<32x128xf32, #tpu.memory_space<vmem>>, vector<32x128xf32>
      %c0_107 = arith.constant 0 : index
      %c0_108 = arith.constant 0 : index
      %287 = vector.load %arg17[%c0_107, %c0_108] : memref<32x128xf32, #tpu.memory_space<vmem>>, vector<32x128xf32>
      tpu.vector_store %arg17[%c0_107, %c0_108], %286 {strides = array<i32>} : memref<32x128xf32, #tpu.memory_space<vmem>>, vector<32x128xf32>,
    } else {
    }
    %c0 = arith.constant 0 : index
    %c0_1 = arith.constant 0 : index
    %3 = vector.load %arg17[%c0, %c0_1] : memref<32x128xf32, #tpu.memory_space<vmem>>, vector<32x128xf32>
    %c0_2 = arith.constant 0 : index
    %c0_3 = arith.constant 0 : index
    %c0_4 = arith.constant 0 : index
    %4 = vector.load %arg3[%c0_2, %c0_3, %c0_4] : memref<1x1x128xf32, #tpu.memory_space<vmem>>, vector<1x1x128xf32>
    %5 = vector.shape_cast %4 : vector<1x1x128xf32> to vector<1x128xf32>
    %c0_5 = arith.constant 0 : index
    %c0_6 = arith.constant 0 : index
    %c0_7 = arith.constant 0 : index
    %6 = vector.load %arg4[%c0_5, %c0_6, %c0_7] : memref<1x1x128xf32, #tpu.memory_space<vmem>>, vector<1x1x128xf32>
    %7 = vector.shape_cast %6 : vector<1x1x128xf32> to vector<1x128xf32>
    %cst = arith.constant dense<0.000000e+00> : vector<32xf32>
    %8 = vector.multi_reduction <add>, %3, %cst [1] : vector<32x128xf32> to vector<32xf32>
    %9 = vector.shape_cast %8 : vector<32xf32> to vector<32x1xf32>
    %cst_8 = arith.constant 1.280000e+02 : f32
    %10 = vector.broadcast %cst_8 : f32 to vector<32x1xf32>
    %11 = arith.divf %9, %10 : vector<32x1xf32>
    %12 = vector.broadcast %11 : vector<32x1xf32> to vector<32x128xf32>
    %13 = arith.subf %3, %12 : vector<32x128xf32>
    %14 = arith.mulf %13, %13 : vector<32x128xf32>
    %cst_9 = arith.constant dense<0.000000e+00> : vector<32xf32>
    %15 = vector.multi_reduction <add>, %14, %cst_9 [1] : vector<32x128xf32> to vector<32xf32>
    %16 = vector.shape_cast %15 : vector<32xf32> to vector<32x1xf32>
    %cst_10 = arith.constant 1.280000e+02 : f32
    %17 = vector.broadcast %cst_10 : f32 to vector<32x1xf32>
    %18 = arith.divf %16, %17 : vector<32x1xf32>
    %19 = vector.broadcast %11 : vector<32x1xf32> to vector<32x128xf32>
    %20 = arith.subf %3, %19 : vector<32x128xf32>
    %cst_11 = arith.constant 9.99999974E-6 : f32
    %21 = vector.broadcast %cst_11 : f32 to vector<32x1xf32>
    %22 = arith.addf %18, %21 : vector<32x1xf32>
    %23 = math.rsqrt %22 : vector<32x1xf32>
    %24 = vector.broadcast %23 : vector<32x1xf32> to vector<32x128xf32>
    %25 = arith.mulf %20, %24 : vector<32x128xf32>
    %26 = vector.broadcast %5 : vector<1x128xf32> to vector<32x128xf32>
    %27 = arith.mulf %25, %26 : vector<32x128xf32>
    %28 = vector.broadcast %7 : vector<1x128xf32> to vector<32x128xf32>
    %29 = arith.addf %27, %28 : vector<32x128xf32>
    %30 = arith.truncf %29 : vector<32x128xf32> to vector<32x128xbf16>
    %c0_12 = arith.constant 0 : index
    %c0_13 = arith.constant 0 : index
    %c0_14 = arith.constant 0 : index
    %31 = vector.load %arg5[%c0_12, %c0_13, %c0_14] : memref<1x128x384xbf16, #tpu.memory_space<vmem>>, vector<1x128x384xbf16>
    %32 = vector.shape_cast %31 : vector<1x128x384xbf16> to vector<128x384xbf16>
    %cst_15 = arith.constant dense<0.000000e+00> : vector<32x384xf32>
    %33 = tpu.matmul %30, %32, %cst_15 {dimension_numbers = #tpu.dot_dimension_numbers<[1], [0], [0], [1], [0, 0, 1, 1], [], []>} : vector<32x128xbf16>, vector<128x384xbf16>, vector<32x384xf32> -> vector<32x384xf32>
    %34 = tpu.iota {dimensions = array<i32: 0>} : vector<16x16xi32>
    %35 = tpu.iota {dimensions = array<i32: 1>} : vector<16x16xi32>
    %36 = arith.cmpi sge, %34, %35 : vector<16x16xi32>
    %37 = vector.extract_strided_slice %33 {offsets = [0, 0], sizes = [16, 32], strides = [1, 1]} : vector<32x384xf32> to vector<16x32xf32>
    %38 = arith.truncf %37 : vector<16x32xf32> to vector<16x32xbf16>
    %39 = vector.extract_strided_slice %33 {offsets = [0, 128], sizes = [16, 32], strides = [1, 1]} : vector<32x384xf32> to vector<16x32xf32>
    %40 = arith.truncf %39 : vector<16x32xf32> to vector<16x32xbf16>
    %41 = vector.extract_strided_slice %33 {offsets = [0, 256], sizes = [16, 32], strides = [1, 1]} : vector<32x384xf32> to vector<16x32xf32>
    %42 = arith.truncf %41 : vector<16x32xf32> to vector<16x32xbf16>
    %cst_16 = arith.constant dense<0.000000e+00> : vector<16x16xf32>
    %43 = tpu.matmul %38, %40, %cst_16 {dimension_numbers = #tpu.dot_dimension_numbers<[1], [1], [0], [0], [0, 0, 1, 0], [], []>} : vector<16x32xbf16>, vector<16x32xbf16>, vector<16x16xf32> -> vector<16x16xf32>
    %cst_17 = arith.constant 0.176776692 : f32
    %44 = vector.broadcast %cst_17 : f32 to vector<16x16xf32>
    %45 = arith.mulf %43, %44 : vector<16x16xf32>
    %cst_18 = arith.constant -1.000000e+30 : f32
    %46 = vector.broadcast %cst_18 : f32 to vector<16x16xf32>
    %47 = arith.select %36, %45, %46 : vector<16x16xi1>, vector<16x16xf32>
    %cst_19 = arith.constant dense<0xFF800000> : vector<16xf32>
    %48 = vector.multi_reduction <maximumf>, %47, %cst_19 [1] : vector<16x16xf32> to vector<16xf32>
    %49 = vector.shape_cast %48 : vector<16xf32> to vector<16x1xf32>
    %50 = vector.broadcast %49 : vector<16x1xf32> to vector<16x16xf32>
    %51 = arith.subf %47, %50 : vector<16x16xf32>
    %52 = math.exp %51 : vector<16x16xf32>
    %cst_20 = arith.constant dense<0.000000e+00> : vector<16xf32>
    %53 = vector.multi_reduction <add>, %52, %cst_20 [1] : vector<16x16xf32> to vector<16xf32>
    %54 = vector.shape_cast %53 : vector<16xf32> to vector<16x1xf32>
    %55 = tpu.reciprocal %54 {approx = true} : vector<16x1xf32> -> vector<16x1xf32>
    %56 = vector.broadcast %55 : vector<16x1xf32> to vector<16x16xf32>
    %57 = arith.mulf %52, %56 : vector<16x16xf32>
    %58 = arith.truncf %57 : vector<16x16xf32> to vector<16x16xbf16>
    %cst_21 = arith.constant dense<0.000000e+00> : vector<16x32xf32>
    %59 = tpu.matmul %58, %42, %cst_21 {dimension_numbers = #tpu.dot_dimension_numbers<[1], [0], [0], [1], [0, 0, 1, 1], [], []>} : vector<16x16xbf16>, vector<16x32xbf16>, vector<16x32xf32> -> vector<16x32xf32>
    %60 = vector.extract_strided_slice %33 {offsets = [0, 32], sizes = [16, 32], strides = [1, 1]} : vector<32x384xf32> to vector<16x32xf32>
    %61 = arith.truncf %60 : vector<16x32xf32> to vector<16x32xbf16>
    %62 = vector.extract_strided_slice %33 {offsets = [0, 160], sizes = [16, 32], strides = [1, 1]} : vector<32x384xf32> to vector<16x32xf32>
    %63 = arith.truncf %62 : vector<16x32xf32> to vector<16x32xbf16>
    %64 = vector.extract_strided_slice %33 {offsets = [0, 288], sizes = [16, 32], strides = [1, 1]} : vector<32x384xf32> to vector<16x32xf32>
    %65 = arith.truncf %64 : vector<16x32xf32> to vector<16x32xbf16>
    %cst_22 = arith.constant dense<0.000000e+00> : vector<16x16xf32>
    %66 = tpu.matmul %61, %63, %cst_22 {dimension_numbers = #tpu.dot_dimension_numbers<[1], [1], [0], [0], [0, 0, 1, 0], [], []>} : vector<16x32xbf16>, vector<16x32xbf16>, vector<16x16xf32> -> vector<16x16xf32>
    %cst_23 = arith.constant 0.176776692 : f32
    %67 = vector.broadcast %cst_23 : f32 to vector<16x16xf32>
    %68 = arith.mulf %66, %67 : vector<16x16xf32>
    %cst_24 = arith.constant -1.000000e+30 : f32
    %69 = vector.broadcast %cst_24 : f32 to vector<16x16xf32>
    %70 = arith.select %36, %68, %69 : vector<16x16xi1>, vector<16x16xf32>
    %cst_25 = arith.constant dense<0xFF800000> : vector<16xf32>
    %71 = vector.multi_reduction <maximumf>, %70, %cst_25 [1] : vector<16x16xf32> to vector<16xf32>
    %72 = vector.shape_cast %71 : vector<16xf32> to vector<16x1xf32>
    %73 = vector.broadcast %72 : vector<16x1xf32> to vector<16x16xf32>
    %74 = arith.subf %70, %73 : vector<16x16xf32>
    %75 = math.exp %74 : vector<16x16xf32>
    %cst_26 = arith.constant dense<0.000000e+00> : vector<16xf32>
    %76 = vector.multi_reduction <add>, %75, %cst_26 [1] : vector<16x16xf32> to vector<16xf32>
    %77 = vector.shape_cast %76 : vector<16xf32> to vector<16x1xf32>
    %78 = tpu.reciprocal %77 {approx = true} : vector<16x1xf32> -> vector<16x1xf32>
    %79 = vector.broadcast %78 : vector<16x1xf32> to vector<16x16xf32>
    %80 = arith.mulf %75, %79 : vector<16x16xf32>
    %81 = arith.truncf %80 : vector<16x16xf32> to vector<16x16xbf16>
    %cst_27 = arith.constant dense<0.000000e+00> : vector<16x32xf32>
    %82 = tpu.matmul %81, %65, %cst_27 {dimension_numbers = #tpu.dot_dimension_numbers<[1], [0], [0], [1], [0, 0, 1, 1], [], []>} : vector<16x16xbf16>, vector<16x32xbf16>, vector<16x32xf32> -> vector<16x32xf32>
    %83 = vector.extract_strided_slice %33 {offsets = [0, 64], sizes = [16, 32], strides = [1, 1]} : vector<32x384xf32> to vector<16x32xf32>
    %84 = arith.truncf %83 : vector<16x32xf32> to vector<16x32xbf16>
    %85 = vector.extract_strided_slice %33 {offsets = [0, 192], sizes = [16, 32], strides = [1, 1]} : vector<32x384xf32> to vector<16x32xf32>
    %86 = arith.truncf %85 : vector<16x32xf32> to vector<16x32xbf16>
    %87 = vector.extract_strided_slice %33 {offsets = [0, 320], sizes = [16, 32], strides = [1, 1]} : vector<32x384xf32> to vector<16x32xf32>
    %88 = arith.truncf %87 : vector<16x32xf32> to vector<16x32xbf16>
    %cst_28 = arith.constant dense<0.000000e+00> : vector<16x16xf32>
    %89 = tpu.matmul %84, %86, %cst_28 {dimension_numbers = #tpu.dot_dimension_numbers<[1], [1], [0], [0], [0, 0, 1, 0], [], []>} : vector<16x32xbf16>, vector<16x32xbf16>, vector<16x16xf32> -> vector<16x16xf32>
    %cst_29 = arith.constant 0.176776692 : f32
    %90 = vector.broadcast %cst_29 : f32 to vector<16x16xf32>
    %91 = arith.mulf %89, %90 : vector<16x16xf32>
    %cst_30 = arith.constant -1.000000e+30 : f32
    %92 = vector.broadcast %cst_30 : f32 to vector<16x16xf32>
    %93 = arith.select %36, %91, %92 : vector<16x16xi1>, vector<16x16xf32>
    %cst_31 = arith.constant dense<0xFF800000> : vector<16xf32>
    %94 = vector.multi_reduction <maximumf>, %93, %cst_31 [1] : vector<16x16xf32> to vector<16xf32>
    %95 = vector.shape_cast %94 : vector<16xf32> to vector<16x1xf32>
    %96 = vector.broadcast %95 : vector<16x1xf32> to vector<16x16xf32>
    %97 = arith.subf %93, %96 : vector<16x16xf32>
    %98 = math.exp %97 : vector<16x16xf32>
    %cst_32 = arith.constant dense<0.000000e+00> : vector<16xf32>
    %99 = vector.multi_reduction <add>, %98, %cst_32 [1] : vector<16x16xf32> to vector<16xf32>
    %100 = vector.shape_cast %99 : vector<16xf32> to vector<16x1xf32>
    %101 = tpu.reciprocal %100 {approx = true} : vector<16x1xf32> -> vector<16x1xf32>
    %102 = vector.broadcast %101 : vector<16x1xf32> to vector<16x16xf32>
    %103 = arith.mulf %98, %102 : vector<16x16xf32>
    %104 = arith.truncf %103 : vector<16x16xf32> to vector<16x16xbf16>
    %cst_33 = arith.constant dense<0.000000e+00> : vector<16x32xf32>
    %105 = tpu.matmul %104, %88, %cst_33 {dimension_numbers = #tpu.dot_dimension_numbers<[1], [0], [0], [1], [0, 0, 1, 1], [], []>} : vector<16x16xbf16>, vector<16x32xbf16>, vector<16x32xf32> -> vector<16x32xf32>
    %106 = vector.extract_strided_slice %33 {offsets = [0, 96], sizes = [16, 32], strides = [1, 1]} : vector<32x384xf32> to vector<16x32xf32>
    %107 = arith.truncf %106 : vector<16x32xf32> to vector<16x32xbf16>
    %108 = vector.extract_strided_slice %33 {offsets = [0, 224], sizes = [16, 32], strides = [1, 1]} : vector<32x384xf32> to vector<16x32xf32>
    %109 = arith.truncf %108 : vector<16x32xf32> to vector<16x32xbf16>
    %110 = vector.extract_strided_slice %33 {offsets = [0, 352], sizes = [16, 32], strides = [1, 1]} : vector<32x384xf32> to vector<16x32xf32>
    %111 = arith.truncf %110 : vector<16x32xf32> to vector<16x32xbf16>
    %cst_34 = arith.constant dense<0.000000e+00> : vector<16x16xf32>
    %112 = tpu.matmul %107, %109, %cst_34 {dimension_numbers = #tpu.dot_dimension_numbers<[1], [1], [0], [0], [0, 0, 1, 0], [], []>} : vector<16x32xbf16>, vector<16x32xbf16>, vector<16x16xf32> -> vector<16x16xf32>
    %cst_35 = arith.constant 0.176776692 : f32
    %113 = vector.broadcast %cst_35 : f32 to vector<16x16xf32>
    %114 = arith.mulf %112, %113 : vector<16x16xf32>
    %cst_36 = arith.constant -1.000000e+30 : f32
    %115 = vector.broadcast %cst_36 : f32 to vector<16x16xf32>
    %116 = arith.select %36, %114, %115 : vector<16x16xi1>, vector<16x16xf32>
    %cst_37 = arith.constant dense<0xFF800000> : vector<16xf32>
    %117 = vector.multi_reduction <maximumf>, %116, %cst_37 [1] : vector<16x16xf32> to vector<16xf32>
    %118 = vector.shape_cast %117 : vector<16xf32> to vector<16x1xf32>
    %119 = vector.broadcast %118 : vector<16x1xf32> to vector<16x16xf32>
    %120 = arith.subf %116, %119 : vector<16x16xf32>
    %121 = math.exp %120 : vector<16x16xf32>
    %cst_38 = arith.constant dense<0.000000e+00> : vector<16xf32>
    %122 = vector.multi_reduction <add>, %121, %cst_38 [1] : vector<16x16xf32> to vector<16xf32>
    %123 = vector.shape_cast %122 : vector<16xf32> to vector<16x1xf32>
    %124 = tpu.reciprocal %123 {approx = true} : vector<16x1xf32> -> vector<16x1xf32>
    %125 = vector.broadcast %124 : vector<16x1xf32> to vector<16x16xf32>
    %126 = arith.mulf %121, %125 : vector<16x16xf32>
    %127 = arith.truncf %126 : vector<16x16xf32> to vector<16x16xbf16>
    %cst_39 = arith.constant dense<0.000000e+00> : vector<16x32xf32>
    %128 = tpu.matmul %127, %111, %cst_39 {dimension_numbers = #tpu.dot_dimension_numbers<[1], [0], [0], [1], [0, 0, 1, 1], [], []>} : vector<16x16xbf16>, vector<16x32xbf16>, vector<16x32xf32> -> vector<16x32xf32>
    %129 = tpu.concatenate %59, %82, %105, %128 in 1 : vector<16x32xf32>, vector<16x32xf32>, vector<16x32xf32>, vector<16x32xf32> -> vector<16x128xf32>
    %c0_40 = arith.constant 0 : index
    %c0_41 = arith.constant 0 : index
    %130 = vector.load %arg18[%c0_40, %c0_41] : memref<32x128xf32, #tpu.memory_space<vmem>>, vector<16x128xf32>
    tpu.vector_store %arg18[%c0_40, %c0_41], %129 {strides = array<i32>} : memref<32x128xf32, #tpu.memory_space<vmem>>, vector<16x128xf32>,
    %131 = vector.extract_strided_slice %33 {offsets = [16, 0], sizes = [16, 32], strides = [1, 1]} : vector<32x384xf32> to vector<16x32xf32>
    %132 = arith.truncf %131 : vector<16x32xf32> to vector<16x32xbf16>
    %133 = vector.extract_strided_slice %33 {offsets = [16, 128], sizes = [16, 32], strides = [1, 1]} : vector<32x384xf32> to vector<16x32xf32>
    %134 = arith.truncf %133 : vector<16x32xf32> to vector<16x32xbf16>
    %135 = vector.extract_strided_slice %33 {offsets = [16, 256], sizes = [16, 32], strides = [1, 1]} : vector<32x384xf32> to vector<16x32xf32>
    %136 = arith.truncf %135 : vector<16x32xf32> to vector<16x32xbf16>
    %cst_42 = arith.constant dense<0.000000e+00> : vector<16x16xf32>
    %137 = tpu.matmul %132, %134, %cst_42 {dimension_numbers = #tpu.dot_dimension_numbers<[1], [1], [0], [0], [0, 0, 1, 0], [], []>} : vector<16x32xbf16>, vector<16x32xbf16>, vector<16x16xf32> -> vector<16x16xf32>
    %cst_43 = arith.constant 0.176776692 : f32
    %138 = vector.broadcast %cst_43 : f32 to vector<16x16xf32>
    %139 = arith.mulf %137, %138 : vector<16x16xf32>
    %cst_44 = arith.constant -1.000000e+30 : f32
    %140 = vector.broadcast %cst_44 : f32 to vector<16x16xf32>
    %141 = arith.select %36, %139, %140 : vector<16x16xi1>, vector<16x16xf32>
    %cst_45 = arith.constant dense<0xFF800000> : vector<16xf32>
    %142 = vector.multi_reduction <maximumf>, %141, %cst_45 [1] : vector<16x16xf32> to vector<16xf32>
    %143 = vector.shape_cast %142 : vector<16xf32> to vector<16x1xf32>
    %144 = vector.broadcast %143 : vector<16x1xf32> to vector<16x16xf32>
    %145 = arith.subf %141, %144 : vector<16x16xf32>
    %146 = math.exp %145 : vector<16x16xf32>
    %cst_46 = arith.constant dense<0.000000e+00> : vector<16xf32>
    %147 = vector.multi_reduction <add>, %146, %cst_46 [1] : vector<16x16xf32> to vector<16xf32>
    %148 = vector.shape_cast %147 : vector<16xf32> to vector<16x1xf32>
    %149 = tpu.reciprocal %148 {approx = true} : vector<16x1xf32> -> vector<16x1xf32>
    %150 = vector.broadcast %149 : vector<16x1xf32> to vector<16x16xf32>
    %151 = arith.mulf %146, %150 : vector<16x16xf32>
    %152 = arith.truncf %151 : vector<16x16xf32> to vector<16x16xbf16>
    %cst_47 = arith.constant dense<0.000000e+00> : vector<16x32xf32>
    %153 = tpu.matmul %152, %136, %cst_47 {dimension_numbers = #tpu.dot_dimension_numbers<[1], [0], [0], [1], [0, 0, 1, 1], [], []>} : vector<16x16xbf16>, vector<16x32xbf16>, vector<16x32xf32> -> vector<16x32xf32>
    %154 = vector.extract_strided_slice %33 {offsets = [16, 32], sizes = [16, 32], strides = [1, 1]} : vector<32x384xf32> to vector<16x32xf32>
    %155 = arith.truncf %154 : vector<16x32xf32> to vector<16x32xbf16>
    %156 = vector.extract_strided_slice %33 {offsets = [16, 160], sizes = [16, 32], strides = [1, 1]} : vector<32x384xf32> to vector<16x32xf32>
    %157 = arith.truncf %156 : vector<16x32xf32> to vector<16x32xbf16>
    %158 = vector.extract_strided_slice %33 {offsets = [16, 288], sizes = [16, 32], strides = [1, 1]} : vector<32x384xf32> to vector<16x32xf32>
    %159 = arith.truncf %158 : vector<16x32xf32> to vector<16x32xbf16>
    %cst_48 = arith.constant dense<0.000000e+00> : vector<16x16xf32>
    %160 = tpu.matmul %155, %157, %cst_48 {dimension_numbers = #tpu.dot_dimension_numbers<[1], [1], [0], [0], [0, 0, 1, 0], [], []>} : vector<16x32xbf16>, vector<16x32xbf16>, vector<16x16xf32> -> vector<16x16xf32>
    %cst_49 = arith.constant 0.176776692 : f32
    %161 = vector.broadcast %cst_49 : f32 to vector<16x16xf32>
    %162 = arith.mulf %160, %161 : vector<16x16xf32>
    %cst_50 = arith.constant -1.000000e+30 : f32
    %163 = vector.broadcast %cst_50 : f32 to vector<16x16xf32>
    %164 = arith.select %36, %162, %163 : vector<16x16xi1>, vector<16x16xf32>
    %cst_51 = arith.constant dense<0xFF800000> : vector<16xf32>
    %165 = vector.multi_reduction <maximumf>, %164, %cst_51 [1] : vector<16x16xf32> to vector<16xf32>
    %166 = vector.shape_cast %165 : vector<16xf32> to vector<16x1xf32>
    %167 = vector.broadcast %166 : vector<16x1xf32> to vector<16x16xf32>
    %168 = arith.subf %164, %167 : vector<16x16xf32>
    %169 = math.exp %168 : vector<16x16xf32>
    %cst_52 = arith.constant dense<0.000000e+00> : vector<16xf32>
    %170 = vector.multi_reduction <add>, %169, %cst_52 [1] : vector<16x16xf32> to vector<16xf32>
    %171 = vector.shape_cast %170 : vector<16xf32> to vector<16x1xf32>
    %172 = tpu.reciprocal %171 {approx = true} : vector<16x1xf32> -> vector<16x1xf32>
    %173 = vector.broadcast %172 : vector<16x1xf32> to vector<16x16xf32>
    %174 = arith.mulf %169, %173 : vector<16x16xf32>
    %175 = arith.truncf %174 : vector<16x16xf32> to vector<16x16xbf16>
    %cst_53 = arith.constant dense<0.000000e+00> : vector<16x32xf32>
    %176 = tpu.matmul %175, %159, %cst_53 {dimension_numbers = #tpu.dot_dimension_numbers<[1], [0], [0], [1], [0, 0, 1, 1], [], []>} : vector<16x16xbf16>, vector<16x32xbf16>, vector<16x32xf32> -> vector<16x32xf32>
    %177 = vector.extract_strided_slice %33 {offsets = [16, 64], sizes = [16, 32], strides = [1, 1]} : vector<32x384xf32> to vector<16x32xf32>
    %178 = arith.truncf %177 : vector<16x32xf32> to vector<16x32xbf16>
    %179 = vector.extract_strided_slice %33 {offsets = [16, 192], sizes = [16, 32], strides = [1, 1]} : vector<32x384xf32> to vector<16x32xf32>
    %180 = arith.truncf %179 : vector<16x32xf32> to vector<16x32xbf16>
    %181 = vector.extract_strided_slice %33 {offsets = [16, 320], sizes = [16, 32], strides = [1, 1]} : vector<32x384xf32> to vector<16x32xf32>
    %182 = arith.truncf %181 : vector<16x32xf32> to vector<16x32xbf16>
    %cst_54 = arith.constant dense<0.000000e+00> : vector<16x16xf32>
    %183 = tpu.matmul %178, %180, %cst_54 {dimension_numbers = #tpu.dot_dimension_numbers<[1], [1], [0], [0], [0, 0, 1, 0], [], []>} : vector<16x32xbf16>, vector<16x32xbf16>, vector<16x16xf32> -> vector<16x16xf32>
    %cst_55 = arith.constant 0.176776692 : f32
    %184 = vector.broadcast %cst_55 : f32 to vector<16x16xf32>
    %185 = arith.mulf %183, %184 : vector<16x16xf32>
    %cst_56 = arith.constant -1.000000e+30 : f32
    %186 = vector.broadcast %cst_56 : f32 to vector<16x16xf32>
    %187 = arith.select %36, %185, %186 : vector<16x16xi1>, vector<16x16xf32>
    %cst_57 = arith.constant dense<0xFF800000> : vector<16xf32>
    %188 = vector.multi_reduction <maximumf>, %187, %cst_57 [1] : vector<16x16xf32> to vector<16xf32>
    %189 = vector.shape_cast %188 : vector<16xf32> to vector<16x1xf32>
    %190 = vector.broadcast %189 : vector<16x1xf32> to vector<16x16xf32>
    %191 = arith.subf %187, %190 : vector<16x16xf32>
    %192 = math.exp %191 : vector<16x16xf32>
    %cst_58 = arith.constant dense<0.000000e+00> : vector<16xf32>
    %193 = vector.multi_reduction <add>, %192, %cst_58 [1] : vector<16x16xf32> to vector<16xf32>
    %194 = vector.shape_cast %193 : vector<16xf32> to vector<16x1xf32>
    %195 = tpu.reciprocal %194 {approx = true} : vector<16x1xf32> -> vector<16x1xf32>
    %196 = vector.broadcast %195 : vector<16x1xf32> to vector<16x16xf32>
    %197 = arith.mulf %192, %196 : vector<16x16xf32>
    %198 = arith.truncf %197 : vector<16x16xf32> to vector<16x16xbf16>
    %cst_59 = arith.constant dense<0.000000e+00> : vector<16x32xf32>
    %199 = tpu.matmul %198, %182, %cst_59 {dimension_numbers = #tpu.dot_dimension_numbers<[1], [0], [0], [1], [0, 0, 1, 1], [], []>} : vector<16x16xbf16>, vector<16x32xbf16>, vector<16x32xf32> -> vector<16x32xf32>
    %200 = vector.extract_strided_slice %33 {offsets = [16, 96], sizes = [16, 32], strides = [1, 1]} : vector<32x384xf32> to vector<16x32xf32>
    %201 = arith.truncf %200 : vector<16x32xf32> to vector<16x32xbf16>
    %202 = vector.extract_strided_slice %33 {offsets = [16, 224], sizes = [16, 32], strides = [1, 1]} : vector<32x384xf32> to vector<16x32xf32>
    %203 = arith.truncf %202 : vector<16x32xf32> to vector<16x32xbf16>
    %204 = vector.extract_strided_slice %33 {offsets = [16, 352], sizes = [16, 32], strides = [1, 1]} : vector<32x384xf32> to vector<16x32xf32>
    %205 = arith.truncf %204 : vector<16x32xf32> to vector<16x32xbf16>
    %cst_60 = arith.constant dense<0.000000e+00> : vector<16x16xf32>
    %206 = tpu.matmul %201, %203, %cst_60 {dimension_numbers = #tpu.dot_dimension_numbers<[1], [1], [0], [0], [0, 0, 1, 0], [], []>} : vector<16x32xbf16>, vector<16x32xbf16>, vector<16x16xf32> -> vector<16x16xf32>
    %cst_61 = arith.constant 0.176776692 : f32
    %207 = vector.broadcast %cst_61 : f32 to vector<16x16xf32>
    %208 = arith.mulf %206, %207 : vector<16x16xf32>
    %cst_62 = arith.constant -1.000000e+30 : f32
    %209 = vector.broadcast %cst_62 : f32 to vector<16x16xf32>
    %210 = arith.select %36, %208, %209 : vector<16x16xi1>, vector<16x16xf32>
    %cst_63 = arith.constant dense<0xFF800000> : vector<16xf32>
    %211 = vector.multi_reduction <maximumf>, %210, %cst_63 [1] : vector<16x16xf32> to vector<16xf32>
    %212 = vector.shape_cast %211 : vector<16xf32> to vector<16x1xf32>
    %213 = vector.broadcast %212 : vector<16x1xf32> to vector<16x16xf32>
    %214 = arith.subf %210, %213 : vector<16x16xf32>
    %215 = math.exp %214 : vector<16x16xf32>
    %cst_64 = arith.constant dense<0.000000e+00> : vector<16xf32>
    %216 = vector.multi_reduction <add>, %215, %cst_64 [1] : vector<16x16xf32> to vector<16xf32>
    %217 = vector.shape_cast %216 : vector<16xf32> to vector<16x1xf32>
    %218 = tpu.reciprocal %217 {approx = true} : vector<16x1xf32> -> vector<16x1xf32>
    %219 = vector.broadcast %218 : vector<16x1xf32> to vector<16x16xf32>
    %220 = arith.mulf %215, %219 : vector<16x16xf32>
    %221 = arith.truncf %220 : vector<16x16xf32> to vector<16x16xbf16>
    %cst_65 = arith.constant dense<0.000000e+00> : vector<16x32xf32>
    %222 = tpu.matmul %221, %205, %cst_65 {dimension_numbers = #tpu.dot_dimension_numbers<[1], [0], [0], [1], [0, 0, 1, 1], [], []>} : vector<16x16xbf16>, vector<16x32xbf16>, vector<16x32xf32> -> vector<16x32xf32>
    %223 = tpu.concatenate %153, %176, %199, %222 in 1 : vector<16x32xf32>, vector<16x32xf32>, vector<16x32xf32>, vector<16x32xf32> -> vector<16x128xf32>
    %c16 = arith.constant 16 : index
    %c0_66 = arith.constant 0 : index
    %224 = vector.load %arg18[%c16, %c0_66] : memref<32x128xf32, #tpu.memory_space<vmem>>, vector<16x128xf32>
    tpu.vector_store %arg18[%c16, %c0_66], %223 {strides = array<i32>} : memref<32x128xf32, #tpu.memory_space<vmem>>, vector<16x128xf32>,
    %c0_67 = arith.constant 0 : index
    %c0_68 = arith.constant 0 : index
    %225 = vector.load %arg18[%c0_67, %c0_68] : memref<32x128xf32, #tpu.memory_space<vmem>>, vector<32x128xf32>
    %226 = arith.truncf %225 : vector<32x128xf32> to vector<32x128xbf16>
    %c0_69 = arith.constant 0 : index
    %c0_70 = arith.constant 0 : index
    %c0_71 = arith.constant 0 : index
    %227 = vector.load %arg6[%c0_69, %c0_70, %c0_71] : memref<1x128x128xbf16, #tpu.memory_space<vmem>>, vector<1x128x128xbf16>
    %228 = vector.shape_cast %227 : vector<1x128x128xbf16> to vector<128x128xbf16>
    %cst_72 = arith.constant dense<0.000000e+00> : vector<32x128xf32>
    %229 = tpu.matmul %226, %228, %cst_72 {dimension_numbers = #tpu.dot_dimension_numbers<[1], [0], [0], [1], [0, 0, 1, 1], [], []>} : vector<32x128xbf16>, vector<128x128xbf16>, vector<32x128xf32> -> vector<32x128xf32>
    %c0_73 = arith.constant 0 : index
    %c0_74 = arith.constant 0 : index
    %c0_75 = arith.constant 0 : index
    %230 = vector.load %arg7[%c0_73, %c0_74, %c0_75] : memref<1x1x128xf32, #tpu.memory_space<vmem>>, vector<1x1x128xf32>
    %231 = vector.shape_cast %230 : vector<1x1x128xf32> to vector<1x128xf32>
    %232 = vector.broadcast %231 : vector<1x128xf32> to vector<32x128xf32>
    %233 = arith.addf %229, %232 : vector<32x128xf32>
    %234 = arith.addf %3, %233 : vector<32x128xf32>
    %c0_76 = arith.constant 0 : index
    %c0_77 = arith.constant 0 : index
    %c0_78 = arith.constant 0 : index
    %235 = vector.load %arg8[%c0_76, %c0_77, %c0_78] : memref<1x1x128xf32, #tpu.memory_space<vmem>>, vector<1x1x128xf32>
    %236 = vector.shape_cast %235 : vector<1x1x128xf32> to vector<1x128xf32>
    %c0_79 = arith.constant 0 : index
    %c0_80 = arith.constant 0 : index
    %c0_81 = arith.constant 0 : index
    %237 = vector.load %arg9[%c0_79, %c0_80, %c0_81] : memref<1x1x128xf32, #tpu.memory_space<vmem>>, vector<1x1x128xf32>
    %238 = vector.shape_cast %237 : vector<1x1x128xf32> to vector<1x128xf32>
    %cst_82 = arith.constant dense<0.000000e+00> : vector<32xf32>
    %239 = vector.multi_reduction <add>, %234, %cst_82 [1] : vector<32x128xf32> to vector<32xf32>
    %240 = vector.shape_cast %239 : vector<32xf32> to vector<32x1xf32>
    %cst_83 = arith.constant 1.280000e+02 : f32
    %241 = vector.broadcast %cst_83 : f32 to vector<32x1xf32>
    %242 = arith.divf %240, %241 : vector<32x1xf32>
    %243 = vector.broadcast %242 : vector<32x1xf32> to vector<32x128xf32>
    %244 = arith.subf %234, %243 : vector<32x128xf32>
    %245 = arith.mulf %244, %244 : vector<32x128xf32>
    %cst_84 = arith.constant dense<0.000000e+00> : vector<32xf32>
    %246 = vector.multi_reduction <add>, %245, %cst_84 [1] : vector<32x128xf32> to vector<32xf32>
    %247 = vector.shape_cast %246 : vector<32xf32> to vector<32x1xf32>
    %cst_85 = arith.constant 1.280000e+02 : f32
    %248 = vector.broadcast %cst_85 : f32 to vector<32x1xf32>
    %249 = arith.divf %247, %248 : vector<32x1xf32>
    %250 = vector.broadcast %242 : vector<32x1xf32> to vector<32x128xf32>
    %251 = arith.subf %234, %250 : vector<32x128xf32>
    %cst_86 = arith.constant 9.99999974E-6 : f32
    %252 = vector.broadcast %cst_86 : f32 to vector<32x1xf32>
    %253 = arith.addf %249, %252 : vector<32x1xf32>
    %254 = math.rsqrt %253 : vector<32x1xf32>
    %255 = vector.broadcast %254 : vector<32x1xf32> to vector<32x128xf32>
    %256 = arith.mulf %251, %255 : vector<32x128xf32>
    %257 = vector.broadcast %236 : vector<1x128xf32> to vector<32x128xf32>
    %258 = arith.mulf %256, %257 : vector<32x128xf32>
    %259 = vector.broadcast %238 : vector<1x128xf32> to vector<32x128xf32>
    %260 = arith.addf %258, %259 : vector<32x128xf32>
    %261 = arith.truncf %260 : vector<32x128xf32> to vector<32x128xbf16>
    %c0_87 = arith.constant 0 : index
    %c0_88 = arith.constant 0 : index
    %c0_89 = arith.constant 0 : index
    %262 = vector.load %arg10[%c0_87, %c0_88, %c0_89] : memref<1x128x512xbf16, #tpu.memory_space<vmem>>, vector<1x128x512xbf16>
    %263 = vector.shape_cast %262 : vector<1x128x512xbf16> to vector<128x512xbf16>
    %cst_90 = arith.constant dense<0.000000e+00> : vector<32x512xf32>
    %264 = tpu.matmul %261, %263, %cst_90 {dimension_numbers = #tpu.dot_dimension_numbers<[1], [0], [0], [1], [0, 0, 1, 1], [], []>} : vector<32x128xbf16>, vector<128x512xbf16>, vector<32x512xf32> -> vector<32x512xf32>
    %c0_91 = arith.constant 0 : index
    %c0_92 = arith.constant 0 : index
    %c0_93 = arith.constant 0 : index
    %265 = vector.load %arg11[%c0_91, %c0_92, %c0_93] : memref<1x1x512xf32, #tpu.memory_space<vmem>>, vector<1x1x512xf32>
    %266 = vector.shape_cast %265 : vector<1x1x512xf32> to vector<1x512xf32>
    %267 = vector.broadcast %266 : vector<1x512xf32> to vector<32x512xf32>
    %268 = arith.addf %264, %267 : vector<32x512xf32>
    %cst_94 = arith.constant 0.000000e+00 : f32
    %269 = vector.broadcast %cst_94 : f32 to vector<32x512xf32>
    %270 = arith.maximumf %268, %269 : vector<32x512xf32>
    %271 = arith.truncf %270 : vector<32x512xf32> to vector<32x512xbf16>
    %c0_95 = arith.constant 0 : index
    %c0_96 = arith.constant 0 : index
    %c0_97 = arith.constant 0 : index
    %272 = vector.load %arg12[%c0_95, %c0_96, %c0_97] : memref<1x512x128xbf16, #tpu.memory_space<vmem>>, vector<1x512x128xbf16>
    %273 = vector.shape_cast %272 : vector<1x512x128xbf16> to vector<512x128xbf16>
    %cst_98 = arith.constant dense<0.000000e+00> : vector<32x128xf32>
    %274 = tpu.matmul %271, %273, %cst_98 {dimension_numbers = #tpu.dot_dimension_numbers<[1], [0], [0], [1], [0, 0, 1, 1], [], []>} : vector<32x512xbf16>, vector<512x128xbf16>, vector<32x128xf32> -> vector<32x128xf32>
    %c0_99 = arith.constant 0 : index
    %c0_100 = arith.constant 0 : index
    %c0_101 = arith.constant 0 : index
    %275 = vector.load %arg13[%c0_99, %c0_100, %c0_101] : memref<1x1x128xf32, #tpu.memory_space<vmem>>, vector<1x1x128xf32>
    %276 = vector.shape_cast %275 : vector<1x1x128xf32> to vector<1x128xf32>
    %277 = vector.broadcast %276 : vector<1x128xf32> to vector<32x128xf32>
    %278 = arith.addf %274, %277 : vector<32x128xf32>
    %279 = arith.addf %234, %278 : vector<32x128xf32>
    %c1_i32 = arith.constant 1 : i32
    %280 = arith.cmpi slt, %arg1, %c1_i32 : i32
    %281 = arith.extui %280 : i1 to i32
    %c0_i32_102 = arith.constant 0 : i32
    %282 = arith.cmpi ne, %281, %c0_i32_102 : i32
    scf.if %282 {
      %c0_105 = arith.constant 0 : index
      %c0_106 = arith.constant 0 : index
      %286 = vector.load %arg17[%c0_105, %c0_106] : memref<32x128xf32, #tpu.memory_space<vmem>>, vector<32x128xf32>
      tpu.vector_store %arg17[%c0_105, %c0_106], %279 {strides = array<i32>} : memref<32x128xf32, #tpu.memory_space<vmem>>, vector<32x128xf32>,
    } else {
    }
    %c1_i32_103 = arith.constant 1 : i32
    %283 = arith.cmpi eq, %arg1, %c1_i32_103 : i32
    %284 = arith.extui %283 : i1 to i32
    %c0_i32_104 = arith.constant 0 : i32
    %285 = arith.cmpi ne, %284, %c0_i32_104 : i32
    scf.if %285 {
      %c0_105 = arith.constant 0 : index
      %c0_106 = arith.constant 0 : index
      %286 = vector.load %arg14[%c0_105, %c0_106] : memref<1x128xf32, #tpu.memory_space<vmem>>, vector<1x128xf32>
      %c0_107 = arith.constant 0 : index
      %c0_108 = arith.constant 0 : index
      %287 = vector.load %arg15[%c0_107, %c0_108] : memref<1x128xf32, #tpu.memory_space<vmem>>, vector<1x128xf32>
      %cst_109 = arith.constant dense<0.000000e+00> : vector<32xf32>
      %288 = vector.multi_reduction <add>, %279, %cst_109 [1] : vector<32x128xf32> to vector<32xf32>
      %289 = vector.shape_cast %288 : vector<32xf32> to vector<32x1xf32>
      %cst_110 = arith.constant 1.280000e+02 : f32
      %290 = vector.broadcast %cst_110 : f32 to vector<32x1xf32>
      %291 = arith.divf %289, %290 : vector<32x1xf32>
      %292 = vector.broadcast %291 : vector<32x1xf32> to vector<32x128xf32>
      %293 = arith.subf %279, %292 : vector<32x128xf32>
      %294 = arith.mulf %293, %293 : vector<32x128xf32>
      %cst_111 = arith.constant dense<0.000000e+00> : vector<32xf32>
      %295 = vector.multi_reduction <add>, %294, %cst_111 [1] : vector<32x128xf32> to vector<32xf32>
      %296 = vector.shape_cast %295 : vector<32xf32> to vector<32x1xf32>
      %cst_112 = arith.constant 1.280000e+02 : f32
      %297 = vector.broadcast %cst_112 : f32 to vector<32x1xf32>
      %298 = arith.divf %296, %297 : vector<32x1xf32>
      %299 = vector.broadcast %291 : vector<32x1xf32> to vector<32x128xf32>
      %300 = arith.subf %279, %299 : vector<32x128xf32>
      %cst_113 = arith.constant 9.99999974E-6 : f32
      %301 = vector.broadcast %cst_113 : f32 to vector<32x1xf32>
      %302 = arith.addf %298, %301 : vector<32x1xf32>
      %303 = math.rsqrt %302 : vector<32x1xf32>
      %304 = vector.broadcast %303 : vector<32x1xf32> to vector<32x128xf32>
      %305 = arith.mulf %300, %304 : vector<32x128xf32>
      %306 = vector.broadcast %286 : vector<1x128xf32> to vector<32x128xf32>
      %307 = arith.mulf %305, %306 : vector<32x128xf32>
      %308 = vector.broadcast %287 : vector<1x128xf32> to vector<32x128xf32>
      %309 = arith.addf %307, %308 : vector<32x128xf32>
      %c0_114 = arith.constant 0 : index
      %c0_115 = arith.constant 0 : index
      %310 = vector.load %arg16[%c0_114, %c0_115] : memref<32x128xf32, #tpu.memory_space<vmem>>, vector<32x128xf32>
      tpu.vector_store %arg16[%c0_114, %c0_115], %309 {strides = array<i32>} : memref<32x128xf32, #tpu.memory_space<vmem>>, vector<32x128xf32>,
    } else {
    }
    return
  }
  func.func @transform_0(%arg0: i32, %arg1: i32) -> (i32, i32) {
    %c0_i32 = arith.constant 0 : i32
    %c0_i32_0 = arith.constant 0 : i32
    return %arg0, %c0_i32 : i32, i32
  }
  func.func @transform_1(%arg0: i32, %arg1: i32) -> (i32, i32, i32) {
    %c0_i32 = arith.constant 0 : i32
    %c0_i32_0 = arith.constant 0 : i32
    %c0_i32_1 = arith.constant 0 : i32
    return %arg1, %c0_i32, %c0_i32_0 : i32, i32, i32
  }
  func.func @transform_2(%arg0: i32, %arg1: i32) -> (i32, i32, i32) {
    %c0_i32 = arith.constant 0 : i32
    %c0_i32_0 = arith.constant 0 : i32
    %c0_i32_1 = arith.constant 0 : i32
    return %arg1, %c0_i32, %c0_i32_0 : i32, i32, i32
  }
  func.func @transform_3(%arg0: i32, %arg1: i32) -> (i32, i32, i32) {
    %c0_i32 = arith.constant 0 : i32
    %c0_i32_0 = arith.constant 0 : i32
    %c0_i32_1 = arith.constant 0 : i32
    return %arg1, %c0_i32, %c0_i32_0 : i32, i32, i32
  }
  func.func @transform_4(%arg0: i32, %arg1: i32) -> (i32, i32, i32) {
    %c0_i32 = arith.constant 0 : i32
    %c0_i32_0 = arith.constant 0 : i32
    %c0_i32_1 = arith.constant 0 : i32
    return %arg1, %c0_i32, %c0_i32_0 : i32, i32, i32
  }
  func.func @transform_5(%arg0: i32, %arg1: i32) -> (i32, i32, i32) {
    %c0_i32 = arith.constant 0 : i32
    %c0_i32_0 = arith.constant 0 : i32
    %c0_i32_1 = arith.constant 0 : i32
    return %arg1, %c0_i32, %c0_i32_0 : i32, i32, i32
  }
  func.func @transform_6(%arg0: i32, %arg1: i32) -> (i32, i32, i32) {
    %c0_i32 = arith.constant 0 : i32
    %c0_i32_0 = arith.constant 0 : i32
    %c0_i32_1 = arith.constant 0 : i32
    return %arg1, %c0_i32, %c0_i32_0 : i32, i32, i32
  }
  func.func @transform_7(%arg0: i32, %arg1: i32) -> (i32, i32, i32) {
    %c0_i32 = arith.constant 0 : i32
    %c0_i32_0 = arith.constant 0 : i32
    %c0_i32_1 = arith.constant 0 : i32
    return %arg1, %c0_i32, %c0_i32_0 : i32, i32, i32
  }
  func.func @transform_8(%arg0: i32, %arg1: i32) -> (i32, i32, i32) {
    %c0_i32 = arith.constant 0 : i32
    %c0_i32_0 = arith.constant 0 : i32
    %c0_i32_1 = arith.constant 0 : i32
    return %arg1, %c0_i32, %c0_i32_0 : i32, i32, i32
  }
  func.func @transform_9(%arg0: i32, %arg1: i32) -> (i32, i32, i32) {
    %c0_i32 = arith.constant 0 : i32
    %c0_i32_0 = arith.constant 0 : i32
    %c0_i32_1 = arith.constant 0 : i32
    return %arg1, %c0_i32, %c0_i32_0 : i32, i32, i32
  }
  func.func @transform_10(%arg0: i32, %arg1: i32) -> (i32, i32, i32) {
    %c0_i32 = arith.constant 0 : i32
    %c0_i32_0 = arith.constant 0 : i32
    %c0_i32_1 = arith.constant 0 : i32
    return %arg1, %c0_i32, %c0_i32_0 : i32, i32, i32
  }
  func.func @transform_11(%arg0: i32, %arg1: i32) -> (i32, i32, i32) {
    %c0_i32 = arith.constant 0 : i32
    %c0_i32_0 = arith.constant 0 : i32
    %c0_i32_1 = arith.constant 0 : i32
    return %arg1, %c0_i32, %c0_i32_0 : i32, i32, i32
  }
  func.func @transform_12(%arg0: i32, %arg1: i32) -> (i32, i32) {
    %c0_i32 = arith.constant 0 : i32
    %c0_i32_0 = arith.constant 0 : i32
    %c0_i32_1 = arith.constant 0 : i32
    return %c0_i32, %c0_i32_0 : i32, i32
  }
  func.func @transform_13(%arg0: i32, %arg1: i32) -> (i32, i32) {
    %c0_i32 = arith.constant 0 : i32
    %c0_i32_0 = arith.constant 0 : i32
    %c0_i32_1 = arith.constant 0 : i32
    return %c0_i32, %c0_i32_0 : i32, i32
  }
  func.func @transform_14(%arg0: i32, %arg1: i32) -> (i32, i32) {
    %c0_i32 = arith.constant 0 : i32
    %c0_i32_0 = arith.constant 0 : i32
    return %arg0, %c0_i32 : i32, i32
  }
}

</mosaic_0001>

<llo_original>
// kernel: tpu_custom_call.1
$region0: #{tpu_custom_call.1}
  #allocation0 [shape = 'u32[]', space=smem, size = 0x4, offset = 0x4, fixed_abs, tag = 'smem constant byte address 0x4 - core index']
  #allocation1 [shape = 'u32[72,128]{1,0:T(1,128)}', space=vmem, size = 0x9000, scoped, tag = 'internal scratch']
  #allocation2 [shape = 'f32[32,128]{1,0:T(8,128)}', space=vmem, size = 0x4000, scoped, tag = 'scratch operand']
  #allocation3 [shape = 'f32[32,128]{1,0:T(8,128)}', space=vmem, size = 0x4000, scoped, tag = 'scratch operand']
  %s0 = inlined_call_operand.hbm [shape: f32[32,128], index: 0, kind: input, shape index: {}]
  %s1 = inlined_call_operand.hbm [shape: f32[2,1,128], index: 1, kind: input, shape index: {}]
  %s2 = inlined_call_operand.hbm [shape: f32[2,1,128], index: 2, kind: input, shape index: {}]
  %s3 = inlined_call_operand.hbm [shape: bf16[2,128,384], index: 3, kind: input, shape index: {}]
  %s4 = inlined_call_operand.hbm [shape: bf16[2,128,128], index: 4, kind: input, shape index: {}]
  %s5 = inlined_call_operand.hbm [shape: f32[2,1,128], index: 5, kind: input, shape index: {}]
  %s6 = inlined_call_operand.hbm [shape: f32[2,1,128], index: 6, kind: input, shape index: {}]
  %s7 = inlined_call_operand.hbm [shape: f32[2,1,128], index: 7, kind: input, shape index: {}]
  %s8 = inlined_call_operand.hbm [shape: bf16[2,128,512], index: 8, kind: input, shape index: {}]
  %s9 = inlined_call_operand.vmem [shape: f32[2,1,512], index: 9, kind: input, shape index: {}]
  %s10 = inlined_call_operand.hbm [shape: bf16[2,512,128], index: 10, kind: input, shape index: {}]
  %s11 = inlined_call_operand.vmem [shape: f32[2,1,128], index: 11, kind: input, shape index: {}]
  %s12 = inlined_call_operand.vmem [shape: f32[1,128], index: 12, kind: input, shape index: {}]
  %s13 = inlined_call_operand.vmem [shape: f32[1,128], index: 13, kind: input, shape index: {}]
  %s14 = inlined_call_operand.hbm [shape: f32[32,128], index: 14, kind: output, shape index: {}]
  %s15 = sld [smem:[#allocation0]]
  $region141: #{tpu_custom_call.1} parent=0
    _
  %s17 = ssub.s32 1, %s15
  %s18 = scalar_select 0, %s17, %s15
  $region1: #{tpu_custom_call.1} parent=0
    #allocation4 [shape = 'u8[16384]{0}', space=vmem, size = 0x4000, scoped, tag = 'input window, operand 0, single buffered']
    #allocation5 [shape = 's32[2]{0}', space=sflag, size = 0x8, scoped, tag = 'scoped memory for tpu_custom_call.1']
    #allocation6 [shape = 's32[2]{0}', space=sflag, size = 0x8, scoped, tag = 'scoped memory for tpu_custom_call.1']
    #allocation7 [shape = 'u8[1024]{0}', space=vmem, size = 0x400, scoped, tag = 'input window, operand 1']
    #allocation8 [shape = 's32[2]{0}', space=sflag, size = 0x8, scoped, tag = 'scoped memory for tpu_custom_call.1']
    #allocation9 [shape = 'u8[1024]{0}', space=vmem, size = 0x400, scoped, tag = 'input window, operand 2']
    #allocation10 [shape = 'u8[196608]{0}', space=vmem, size = 0x30000, scoped, tag = 'input window, operand 3']
    #allocation11 [shape = 's32[2]{0}', space=sflag, size = 0x8, scoped, tag = 'scoped memory for tpu_custom_call.1']
    #allocation12 [shape = 'u8[65536]{0}', space=vmem, size = 0x10000, scoped, tag = 'input window, operand 4']
    #allocation13 [shape = 'u8[1024]{0}', space=vmem, size = 0x400, scoped, tag = 'input window, operand 5']
    #allocation14 [shape = 's32[2]{0}', space=sflag, size = 0x8, scoped, tag = 'scoped memory for tpu_custom_call.1']
    #allocation15 [shape = 'u8[1024]{0}', space=vmem, size = 0x400, scoped, tag = 'input window, operand 6']
    #allocation16 [shape = 'u8[1024]{0}', space=vmem, size = 0x400, scoped, tag = 'input window, operand 7']
    #allocation17 [shape = 's32[2]{0}', space=sflag, size = 0x8, scoped, tag = 'scoped memory for tpu_custom_call.1']
    #allocation18 [shape = 'u8[262144]{0}', space=vmem, size = 0x40000, scoped, tag = 'input window, operand 8']
    #allocation19 [shape = 'u8[262144]{0}', space=vmem, size = 0x40000, scoped, tag = 'input window, operand 10']
    #allocation20 [shape = 's32[2]{0}', space=sflag, size = 0x8, scoped, tag = 'scoped memory for tpu_custom_call.1']
    #allocation21 [shape = 'u8[16384]{0}', space=vmem, size = 0x4000, scoped, tag = 'output window, operand 0, single buffered']
    %19 = vsyncpa [#allocation5], 0
    %20 = vsyncpa [#allocation8], 0
    %s21 = scalar_lea.sflag [#allocation8], 1
    %22 = vsyncpa %s21, 0
    %23 = vsyncpa [#allocation11], 0
    %s24 = scalar_lea.sflag [#allocation11], 1
    %25 = vsyncpa %s24, 0
    %26 = vsyncpa [#allocation14], 0
    %s27 = scalar_lea.sflag [#allocation14], 1
    %28 = vsyncpa %s27, 0
    %29 = vsyncpa [#allocation17], 0
    %s30 = scalar_lea.sflag [#allocation17], 1
    %31 = vsyncpa %s30, 0
    %32 = vsyncpa [#allocation20], 0
    %s33 = scalar_lea.sflag [#allocation20], 1
    %34 = vsyncpa %s33, 0
    %35 = vsyncpa [#allocation6], 0
    loop: start=0, step=1, limit=4
    $region2: #{tpu_custom_call.1} parent=1 // loop_pre_header
      _
    $region3: #{tpu_custom_call.1} parent=1 // loop_header
      %s37 = sphi 0, %s41
      %p38 = scmp.ge.s32.totalorder %s37, 4
      %s44 = sphi 0, %s56
      %s45 = sphi 0, %s52
      %s46 = sphi 0, %s44
      %s47 = sphi 0, %s45
      %s48 = sphi 0, %s46
      %s49 = sphi 0, %s47
      %s59 = sphi 0, %s61
      %s62 = sphi 0, %s59
      %s63 = sphi 0, %s62
      %s79 = sphi 0, %s63
      %s85 = sphi 0, %s87
      %s88 = sphi 0, %s85
      %s89 = sphi 0, %s88
      %s105 = sphi 0, %s89
      %s111 = sphi 0, %s113
      %s114 = sphi 0, %s111
      %s115 = sphi 0, %s114
      %s131 = sphi 0, %s115
      %s137 = sphi 0, %s139
      %s140 = sphi 0, %s137
      %s141 = sphi 0, %s140
      %s157 = sphi 0, %s141
      %s163 = sphi 0, %s165
      %s166 = sphi 0, %s163
      %s167 = sphi 0, %s166
      %s183 = sphi 0, %s167
      %s189 = sphi 0, %s191
      %s192 = sphi 0, %s189
      %s193 = sphi 0, %s192
      %s209 = sphi 0, %s193
      %s215 = sphi 0, %s217
      %s218 = sphi 0, %s215
      %s219 = sphi 0, %s218
      %s235 = sphi 0, %s219
      %s241 = sphi 0, %s243
      %s244 = sphi 0, %s241
      %s245 = sphi 0, %s244
      %s261 = sphi 0, %s245
      %s267 = sphi 0, %s269
      %s270 = sphi 0, %s267
      %s271 = sphi 0, %s270
      %s287 = sphi 0, %s271
      %s293 = sphi 0, %s295
      %s296 = sphi 0, %s293
      %s297 = sphi 0, %s296
      %s313 = sphi 0, %s297
      %s319 = sphi 0, %s321
      %s322 = sphi 0, %s319
      %s323 = sphi 0, %s322
      %s339 = sphi 0, %s323
      %s345 = sphi 0, %s347
      %s348 = sphi 0, %s345
      %s349 = sphi 0, %s348
      %s365 = sphi 0, %s349
      %s369 = sphi 0, %s369
      %s371 = sphi 0, %s369
      %s372 = sphi 0, %s371
      %s386 = sphi 0, %s372
      %s390 = sphi 0, %s390
      %s392 = sphi 0, %s390
      %s393 = sphi 0, %s392
      %s407 = sphi 0, %s393
      %s413 = sphi 0, %s415
      %s416 = sphi 0, %s413
      %s417 = sphi 0, %s416
      %s433 = sphi 0, %s417
    $region4: #{tpu_custom_call.1} parent=1 // loop_header_branch
      %40 = sbr.rel (%p38) target = $region8
    $region5: #{tpu_custom_call.1} parent=1 // loop_body
      %s42 = ssub.s32 %s37, 1
      %s43 = ssub.s32 %s37, 2
      %s50 = sadd.s32 1, %s45
      %p51 = scmp.ge.s32.totalorder %s50, 2
      %s52 = scalar_select %p51, 0, %s50
      %s53 = sadd.s32 1, %s44
      %s54 = scalar_select %p51, %s53, %s44
      %p55 = scmp.ge.s32.totalorder %s54, 1
      %s56 = scalar_select %p55, 0, %s54
      %s57 = ssub.s32 %s44, %s56
      %p58 = scmp.eq.s32.totalorder %s57, 0
      %s60 = sadd.s32 %s59, 1
      %s61 = scalar_select %p58, %s59, %s60
      %p64 = pneg %p58
      %p65 = scmp.eq.s32.totalorder %s37, 1
      %p66 = por %p64, %p65
      %p67 = scmp.ne.s32.totalorder %s59, %s62
      %p68 = scmp.eq.s32.totalorder %s37, 0
      %p69 = por %p67, %p68
      %p70 = scmp.ne.s32.totalorder %s59, %s62
      %p71 = scmp.eq.s32.totalorder %s42, 1
      %p72 = por %p70, %p71
      %p73 = scmp.ne.s32.totalorder %s62, %s63
      %p74 = scmp.eq.s32.totalorder %s42, 0
      %p75 = por %p73, %p74
      %p76 = scmp.ne.s32.totalorder %s62, %s63
      %p77 = scmp.eq.s32.totalorder %s43, 1
      %p78 = por %p76, %p77
      %p80 = scmp.ne.s32.totalorder %s63, %s79
      %p81 = scmp.eq.s32.totalorder %s43, 0
      %p82 = por %p80, %p81
      %s83 = ssub.s32 %s45, %s52
      %p84 = scmp.eq.s32.totalorder %s83, 0
      %s86 = sadd.s32 %s85, 1
      %s87 = scalar_select %p84, %s85, %s86
      %p90 = pneg %p84
      %p91 = scmp.eq.s32.totalorder %s37, 1
      %p92 = por %p90, %p91
      %p93 = scmp.ne.s32.totalorder %s85, %s88
      %p94 = scmp.eq.s32.totalorder %s37, 0
      %p95 = por %p93, %p94
      %p96 = scmp.ne.s32.totalorder %s85, %s88
      %p97 = scmp.eq.s32.totalorder %s42, 1
      %p98 = por %p96, %p97
      %p99 = scmp.ne.s32.totalorder %s88, %s89
      %p100 = scmp.eq.s32.totalorder %s42, 0
      %p101 = por %p99, %p100
      %p102 = scmp.ne.s32.totalorder %s88, %s89
      %p103 = scmp.eq.s32.totalorder %s43, 1
      %p104 = por %p102, %p103
      %p106 = scmp.ne.s32.totalorder %s89, %s105
      %p107 = scmp.eq.s32.totalorder %s43, 0
      %p108 = por %p106, %p107
      %s109 = ssub.s32 %s45, %s52
      %p110 = scmp.eq.s32.totalorder %s109, 0
      %s112 = sadd.s32 %s111, 1
      %s113 = scalar_select %p110, %s111, %s112
      %p116 = pneg %p110
      %p117 = scmp.eq.s32.totalorder %s37, 1
      %p118 = por %p116, %p117
      %p119 = scmp.ne.s32.totalorder %s111, %s114
      %p120 = scmp.eq.s32.totalorder %s37, 0
      %p121 = por %p119, %p120
      %p122 = scmp.ne.s32.totalorder %s111, %s114
      %p123 = scmp.eq.s32.totalorder %s42, 1
      %p124 = por %p122, %p123
      %p125 = scmp.ne.s32.totalorder %s114, %s115
      %p126 = scmp.eq.s32.totalorder %s42, 0
      %p127 = por %p125, %p126
      %p128 = scmp.ne.s32.totalorder %s114, %s115
      %p129 = scmp.eq.s32.totalorder %s43, 1
      %p130 = por %p128, %p129
      %p132 = scmp.ne.s32.totalorder %s115, %s131
      %p133 = scmp.eq.s32.totalorder %s43, 0
      %p134 = por %p132, %p133
      %s135 = ssub.s32 %s45, %s52
      %p136 = scmp.eq.s32.totalorder %s135, 0
      %s138 = sadd.s32 %s137, 1
      %s139 = scalar_select %p136, %s137, %s138
      %p142 = pneg %p136
      %p143 = scmp.eq.s32.totalorder %s37, 1
      %p144 = por %p142, %p143
      %p145 = scmp.ne.s32.totalorder %s137, %s140
      %p146 = scmp.eq.s32.totalorder %s37, 0
      %p147 = por %p145, %p146
      %p148 = scmp.ne.s32.totalorder %s137, %s140
      %p149 = scmp.eq.s32.totalorder %s42, 1
      %p150 = por %p148, %p149
      %p151 = scmp.ne.s32.totalorder %s140, %s141
      %p152 = scmp.eq.s32.totalorder %s42, 0
      %p153 = por %p151, %p152
      %p154 = scmp.ne.s32.totalorder %s140, %s141
      %p155 = scmp.eq.s32.totalorder %s43, 1
      %p156 = por %p154, %p155
      %p158 = scmp.ne.s32.totalorder %s141, %s157
      %p159 = scmp.eq.s32.totalorder %s43, 0
      %p160 = por %p158, %p159
      %s161 = ssub.s32 %s45, %s52
      %p162 = scmp.eq.s32.totalorder %s161, 0
      %s164 = sadd.s32 %s163, 1
      %s165 = scalar_select %p162, %s163, %s164
      %p168 = pneg %p162
      %p169 = scmp.eq.s32.totalorder %s37, 1
      %p170 = por %p168, %p169
      %p171 = scmp.ne.s32.totalorder %s163, %s166
      %p172 = scmp.eq.s32.totalorder %s37, 0
      %p173 = por %p171, %p172
      %p174 = scmp.ne.s32.totalorder %s163, %s166
      %p175 = scmp.eq.s32.totalorder %s42, 1
      %p176 = por %p174, %p175
      %p177 = scmp.ne.s32.totalorder %s166, %s167
      %p178 = scmp.eq.s32.totalorder %s42, 0
      %p179 = por %p177, %p178
      %p180 = scmp.ne.s32.totalorder %s166, %s167
      %p181 = scmp.eq.s32.totalorder %s43, 1
      %p182 = por %p180, %p181
      %p184 = scmp.ne.s32.totalorder %s167, %s183
      %p185 = scmp.eq.s32.totalorder %s43, 0
      %p186 = por %p184, %p185
      %s187 = ssub.s32 %s45, %s52
      %p188 = scmp.eq.s32.totalorder %s187, 0
      %s190 = sadd.s32 %s189, 1
      %s191 = scalar_select %p188, %s189, %s190
      %p194 = pneg %p188
      %p195 = scmp.eq.s32.totalorder %s37, 1
      %p196 = por %p194, %p195
      %p197 = scmp.ne.s32.totalorder %s189, %s192
      %p198 = scmp.eq.s32.totalorder %s37, 0
      %p199 = por %p197, %p198
      %p200 = scmp.ne.s32.totalorder %s189, %s192
      %p201 = scmp.eq.s32.totalorder %s42, 1
      %p202 = por %p200, %p201
      %p203 = scmp.ne.s32.totalorder %s192, %s193
      %p204 = scmp.eq.s32.totalorder %s42, 0
      %p205 = por %p203, %p204
      %p206 = scmp.ne.s32.totalorder %s192, %s193
      %p207 = scmp.eq.s32.totalorder %s43, 1
      %p208 = por %p206, %p207
      %p210 = scmp.ne.s32.totalorder %s193, %s209
      %p211 = scmp.eq.s32.totalorder %s43, 0
      %p212 = por %p210, %p211
      %s213 = ssub.s32 %s45, %s52
      %p214 = scmp.eq.s32.totalorder %s213, 0
      %s216 = sadd.s32 %s215, 1
      %s217 = scalar_select %p214, %s215, %s216
      %p220 = pneg %p214
      %p221 = scmp.eq.s32.totalorder %s37, 1
      %p222 = por %p220, %p221
      %p223 = scmp.ne.s32.totalorder %s215, %s218
      %p224 = scmp.eq.s32.totalorder %s37, 0
      %p225 = por %p223, %p224
      %p226 = scmp.ne.s32.totalorder %s215, %s218
      %p227 = scmp.eq.s32.totalorder %s42, 1
      %p228 = por %p226, %p227
      %p229 = scmp.ne.s32.totalorder %s218, %s219
      %p230 = scmp.eq.s32.totalorder %s42, 0
      %p231 = por %p229, %p230
      %p232 = scmp.ne.s32.totalorder %s218, %s219
      %p233 = scmp.eq.s32.totalorder %s43, 1
      %p234 = por %p232, %p233
      %p236 = scmp.ne.s32.totalorder %s219, %s235
      %p237 = scmp.eq.s32.totalorder %s43, 0
      %p238 = por %p236, %p237
      %s239 = ssub.s32 %s45, %s52
      %p240 = scmp.eq.s32.totalorder %s239, 0
      %s242 = sadd.s32 %s241, 1
      %s243 = scalar_select %p240, %s241, %s242
      %p246 = pneg %p240
      %p247 = scmp.eq.s32.totalorder %s37, 1
      %p248 = por %p246, %p247
      %p249 = scmp.ne.s32.totalorder %s241, %s244
      %p250 = scmp.eq.s32.totalorder %s37, 0
      %p251 = por %p249, %p250
      %p252 = scmp.ne.s32.totalorder %s241, %s244
      %p253 = scmp.eq.s32.totalorder %s42, 1
      %p254 = por %p252, %p253
      %p255 = scmp.ne.s32.totalorder %s244, %s245
      %p256 = scmp.eq.s32.totalorder %s42, 0
      %p257 = por %p255, %p256
      %p258 = scmp.ne.s32.totalorder %s244, %s245
      %p259 = scmp.eq.s32.totalorder %s43, 1
      %p260 = por %p258, %p259
      %p262 = scmp.ne.s32.totalorder %s245, %s261
      %p263 = scmp.eq.s32.totalorder %s43, 0
      %p264 = por %p262, %p263
      %s265 = ssub.s32 %s45, %s52
      %p266 = scmp.eq.s32.totalorder %s265, 0
      %s268 = sadd.s32 %s267, 1
      %s269 = scalar_select %p266, %s267, %s268
      %p272 = pneg %p266
      %p273 = scmp.eq.s32.totalorder %s37, 1
      %p274 = por %p272, %p273
      %p275 = scmp.ne.s32.totalorder %s267, %s270
      %p276 = scmp.eq.s32.totalorder %s37, 0
      %p277 = por %p275, %p276
      %p278 = scmp.ne.s32.totalorder %s267, %s270
      %p279 = scmp.eq.s32.totalorder %s42, 1
      %p280 = por %p278, %p279
      %p281 = scmp.ne.s32.totalorder %s270, %s271
      %p282 = scmp.eq.s32.totalorder %s42, 0
      %p283 = por %p281, %p282
      %p284 = scmp.ne.s32.totalorder %s270, %s271
      %p285 = scmp.eq.s32.totalorder %s43, 1
      %p286 = por %p284, %p285
      %p288 = scmp.ne.s32.totalorder %s271, %s287
      %p289 = scmp.eq.s32.totalorder %s43, 0
      %p290 = por %p288, %p289
      %s291 = ssub.s32 %s45, %s52
      %p292 = scmp.eq.s32.totalorder %s291, 0
      %s294 = sadd.s32 %s293, 1
      %s295 = scalar_select %p292, %s293, %s294
      %p298 = pneg %p292
      %p299 = scmp.eq.s32.totalorder %s37, 1
      %p300 = por %p298, %p299
      %p301 = scmp.ne.s32.totalorder %s293, %s296
      %p302 = scmp.eq.s32.totalorder %s37, 0
      %p303 = por %p301, %p302
      %p304 = scmp.ne.s32.totalorder %s293, %s296
      %p305 = scmp.eq.s32.totalorder %s42, 1
      %p306 = por %p304, %p305
      %p307 = scmp.ne.s32.totalorder %s296, %s297
      %p308 = scmp.eq.s32.totalorder %s42, 0
      %p309 = por %p307, %p308
      %p310 = scmp.ne.s32.totalorder %s296, %s297
      %p311 = scmp.eq.s32.totalorder %s43, 1
      %p312 = por %p310, %p311
      %p314 = scmp.ne.s32.totalorder %s297, %s313
      %p315 = scmp.eq.s32.totalorder %s43, 0
      %p316 = por %p314, %p315
      %s317 = ssub.s32 %s45, %s52
      %p318 = scmp.eq.s32.totalorder %s317, 0
      %s320 = sadd.s32 %s319, 1
      %s321 = scalar_select %p318, %s319, %s320
      %p324 = pneg %p318
      %p325 = scmp.eq.s32.totalorder %s37, 1
      %p326 = por %p324, %p325
      %p327 = scmp.ne.s32.totalorder %s319, %s322
      %p328 = scmp.eq.s32.totalorder %s37, 0
      %p329 = por %p327, %p328
      %p330 = scmp.ne.s32.totalorder %s319, %s322
      %p331 = scmp.eq.s32.totalorder %s42, 1
      %p332 = por %p330, %p331
      %p333 = scmp.ne.s32.totalorder %s322, %s323
      %p334 = scmp.eq.s32.totalorder %s42, 0
      %p335 = por %p333, %p334
      %p336 = scmp.ne.s32.totalorder %s322, %s323
      %p337 = scmp.eq.s32.totalorder %s43, 1
      %p338 = por %p336, %p337
      %p340 = scmp.ne.s32.totalorder %s323, %s339
      %p341 = scmp.eq.s32.totalorder %s43, 0
      %p342 = por %p340, %p341
      %s343 = ssub.s32 %s45, %s52
      %p344 = scmp.eq.s32.totalorder %s343, 0
      %s346 = sadd.s32 %s345, 1
      %s347 = scalar_select %p344, %s345, %s346
      %p350 = pneg %p344
      %p351 = scmp.eq.s32.totalorder %s37, 1
      %p352 = por %p350, %p351
      %p353 = scmp.ne.s32.totalorder %s345, %s348
      %p354 = scmp.eq.s32.totalorder %s37, 0
      %p355 = por %p353, %p354
      %p356 = scmp.ne.s32.totalorder %s345, %s348
      %p357 = scmp.eq.s32.totalorder %s42, 1
      %p358 = por %p356, %p357
      %p359 = scmp.ne.s32.totalorder %s348, %s349
      %p360 = scmp.eq.s32.totalorder %s42, 0
      %p361 = por %p359, %p360
      %p362 = scmp.ne.s32.totalorder %s348, %s349
      %p363 = scmp.eq.s32.totalorder %s43, 1
      %p364 = por %p362, %p363
      %p366 = scmp.ne.s32.totalorder %s349, %s365
      %p367 = scmp.eq.s32.totalorder %s43, 0
      %p368 = por %p366, %p367
      %s370 = sadd.s32 %s369, 1
      %p373 = scmp.eq.s32.totalorder %s37, 1
      %p374 = scmp.ne.s32.totalorder %s369, %s371
      %p375 = scmp.eq.s32.totalorder %s37, 0
      %p376 = por %p374, %p375
      %p377 = scmp.ne.s32.totalorder %s369, %s371
      %p378 = scmp.eq.s32.totalorder %s42, 1
      %p379 = por %p377, %p378
      %p380 = scmp.ne.s32.totalorder %s371, %s372
      %p381 = scmp.eq.s32.totalorder %s42, 0
      %p382 = por %p380, %p381
      %p383 = scmp.ne.s32.totalorder %s371, %s372
      %p384 = scmp.eq.s32.totalorder %s43, 1
      %p385 = por %p383, %p384
      %p387 = scmp.ne.s32.totalorder %s372, %s386
      %p388 = scmp.eq.s32.totalorder %s43, 0
      %p389 = por %p387, %p388
      %s391 = sadd.s32 %s390, 1
      %p394 = scmp.eq.s32.totalorder %s37, 1
      %p395 = scmp.ne.s32.totalorder %s390, %s392
      %p396 = scmp.eq.s32.totalorder %s37, 0
      %p397 = por %p395, %p396
      %p398 = scmp.ne.s32.totalorder %s390, %s392
      %p399 = scmp.eq.s32.totalorder %s42, 1
      %p400 = por %p398, %p399
      %p401 = scmp.ne.s32.totalorder %s392, %s393
      %p402 = scmp.eq.s32.totalorder %s42, 0
      %p403 = por %p401, %p402
      %p404 = scmp.ne.s32.totalorder %s392, %s393
      %p405 = scmp.eq.s32.totalorder %s43, 1
      %p406 = por %p404, %p405
      %p408 = scmp.ne.s32.totalorder %s393, %s407
      %p409 = scmp.eq.s32.totalorder %s43, 0
      %p410 = por %p408, %p409
      %s411 = ssub.s32 %s44, %s56
      %p412 = scmp.eq.s32.totalorder %s411, 0
      %s414 = sadd.s32 %s413, 1
      %s415 = scalar_select %p412, %s413, %s414
      %p418 = pneg %p412
      %p419 = scmp.eq.s32.totalorder %s37, 1
      %p420 = por %p418, %p419
      %p421 = scmp.ne.s32.totalorder %s413, %s416
      %p422 = scmp.eq.s32.totalorder %s37, 0
      %p423 = por %p421, %p422
      %p424 = scmp.ne.s32.totalorder %s413, %s416
      %p425 = scmp.eq.s32.totalorder %s42, 1
      %p426 = por %p424, %p425
      %p427 = scmp.ne.s32.totalorder %s416, %s417
      %p428 = scmp.eq.s32.totalorder %s42, 0
      %p429 = por %p427, %p428
      %p430 = scmp.ne.s32.totalorder %s416, %s417
      %p431 = scmp.eq.s32.totalorder %s43, 1
      %p432 = por %p430, %p431
      %p434 = scmp.ne.s32.totalorder %s417, %s433
      %p435 = scmp.eq.s32.totalorder %s43, 0
      %p436 = por %p434, %p435
      %p437 = scmp.le.s32.totalorder 1, %s37
      %p438 = scmp.lt.s32.totalorder %s37, 3
      %p439 = pnand %p437, %p438
      %p440 = pneg %p439
      // Predicated region
      $region9: #{tpu_custom_call.1} parent=5 // pred_check
        _
      $region10: #{tpu_custom_call.1} parent=5 // pred_check_branch
        %442 = sbr.rel (%p439) target = $region12
      $region11: #{tpu_custom_call.1} parent=5 // pred_region
        %s443 = ssub.s32 %s37, 1
        // Predicated region
        $region13: #{tpu_custom_call.1} parent=11 // pred_check
          %p444 = pneg %p75
        $region14: #{tpu_custom_call.1} parent=11 // pred_check_branch
          %446 = sbr.rel (%p444) target = $region16
        $region15: #{tpu_custom_call.1} parent=11 // pred_region
          %s447 = smul.u32 4, %s46
          %449 = vsyncadd [#allocation5], 0
          %s450 = smul.addr %s447, 8
          %s451 = scalar_lea.hbm %s0, %s450
          %s452 = sshll.u32 %s451, 4
          %s453 = int_to_ptr.hbm [resolvable:$true] %s452
          %s454 = sshll.u32 [#allocation4], 4
          %s455 = int_to_ptr.vmem [resolvable:$true] %s454
          %460 = dma.hbm_to_vmem [thread:$0]  %s453, 512, %s455, [#allocation5], 128, 128, 8
        $region16: #{tpu_custom_call.1} parent=11 // pred_fallthru
          _
        // Predicated region
        $region17: #{tpu_custom_call.1} parent=11 // pred_check
          %p461 = pneg %p382
        $region18: #{tpu_custom_call.1} parent=11 // pred_check_branch
          %463 = sbr.rel (%p461) target = $region20
        $region19: #{tpu_custom_call.1} parent=11 // pred_region
          _
        $region20: #{tpu_custom_call.1} parent=11 // pred_fallthru
          _
        // Predicated region
        $region21: #{tpu_custom_call.1} parent=11 // pred_check
          %p464 = pneg %p403
        $region22: #{tpu_custom_call.1} parent=11 // pred_check_branch
          %466 = sbr.rel (%p464) target = $region24
        $region23: #{tpu_custom_call.1} parent=11 // pred_region
          _
        $region24: #{tpu_custom_call.1} parent=11 // pred_fallthru
          _
      $region12: #{tpu_custom_call.1} parent=5 // pred_fallthru
        _
      %p467 = scmp.lt.s32.totalorder %s37, 2
      // Predicated region
      $region25: #{tpu_custom_call.1} parent=5 // pred_check
        %p468 = pneg %p467
      $region26: #{tpu_custom_call.1} parent=5 // pred_check_branch
        %470 = sbr.rel (%p468) target = $region28
      $region27: #{tpu_custom_call.1} parent=5 // pred_region
        // Predicated region
        $region29: #{tpu_custom_call.1} parent=27 // pred_check
          %p471 = pneg %p95
        $region30: #{tpu_custom_call.1} parent=27 // pred_check_branch
          %473 = sbr.rel (%p471) target = $region32
        $region31: #{tpu_custom_call.1} parent=27 // pred_region
          %s474 = sand.u32 %s37, 1
          %s475 = scalar_lea.sflag [#allocation8], %s474
          %s476 = sand.u32 %s85, 1
          %s477 = scalar_lea.vmem [#allocation7], %s476
          %479 = vsyncadd %s475, 0
          %s480 = scalar_lea.hbm %s1, %s45
          %s482 = sshll.u32 %s480, 4
          %s483 = int_to_ptr.hbm [resolvable:$true] %s482
          %s484 = sshll.u32 %s477, 4
          %s485 = int_to_ptr.vmem [resolvable:$true] %s484
          %487 = dma.hbm_to_vmem [thread:$0]  %s483, 16, %s485, %s475
        $region32: #{tpu_custom_call.1} parent=27 // pred_fallthru
          _
        // Predicated region
        $region33: #{tpu_custom_call.1} parent=27 // pred_check
          %p488 = pneg %p121
        $region34: #{tpu_custom_call.1} parent=27 // pred_check_branch
          %490 = sbr.rel (%p488) target = $region36
        $region35: #{tpu_custom_call.1} parent=27 // pred_region
          %s491 = sand.u32 %s37, 1
          %s492 = scalar_lea.sflag [#allocation8], %s491
          %s493 = sand.u32 %s111, 1
          %s494 = scalar_lea.vmem [#allocation9], %s493
          %496 = vsyncadd %s492, 0
          %s497 = scalar_lea.hbm %s2, %s45
          %s499 = sshll.u32 %s497, 4
          %s500 = int_to_ptr.hbm [resolvable:$true] %s499
          %s501 = sshll.u32 %s494, 4
          %s502 = int_to_ptr.vmem [resolvable:$true] %s501
          %504 = dma.hbm_to_vmem [thread:$0]  %s500, 16, %s502, %s492
        $region36: #{tpu_custom_call.1} parent=27 // pred_fallthru
          _
        // Predicated region
        $region37: #{tpu_custom_call.1} parent=27 // pred_check
          %p505 = pneg %p147
        $region38: #{tpu_custom_call.1} parent=27 // pred_check_branch
          %507 = sbr.rel (%p505) target = $region40
        $region39: #{tpu_custom_call.1} parent=27 // pred_region
          %s508 = sand.u32 %s37, 1
          %s509 = scalar_lea.sflag [#allocation11], %s508
          %s510 = sand.u32 %s137, 1
          %s511 = smul.addr %s510, 192
          %s512 = scalar_lea.vmem [#allocation10], %s511
          %514 = vsyncadd %s509, 0
          %s515 = smul.addr %s45, 48
          %s516 = smul.addr %s515, 4
          %s517 = scalar_lea.hbm %s3, %s516
          %s518 = sshll.u32 %s517, 4
          %s519 = int_to_ptr.hbm [resolvable:$true] %s518
          %s520 = sshll.u32 %s512, 4
          %s521 = int_to_ptr.vmem [resolvable:$true] %s520
          %526 = dma.hbm_to_vmem [thread:$0]  %s519, 3072, %s521, %s509, 192, 192, 12
        $region40: #{tpu_custom_call.1} parent=27 // pred_fallthru
          _
        // Predicated region
        $region41: #{tpu_custom_call.1} parent=27 // pred_check
          %p527 = pneg %p173
        $region42: #{tpu_custom_call.1} parent=27 // pred_check_branch
          %529 = sbr.rel (%p527) target = $region44
        $region43: #{tpu_custom_call.1} parent=27 // pred_region
          %s530 = sand.u32 %s37, 1
          %s531 = scalar_lea.sflag [#allocation11], %s530
          %s532 = sand.u32 %s163, 1
          %s533 = smul.addr %s532, 64
          %s534 = scalar_lea.vmem [#allocation12], %s533
          %536 = vsyncadd %s531, 0
          %s537 = smul.addr %s45, 16
          %s538 = smul.addr %s537, 4
          %s539 = scalar_lea.hbm %s4, %s538
          %s540 = sshll.u32 %s539, 4
          %s541 = int_to_ptr.hbm [resolvable:$true] %s540
          %s542 = sshll.u32 %s534, 4
          %s543 = int_to_ptr.vmem [resolvable:$true] %s542
          %548 = dma.hbm_to_vmem [thread:$0]  %s541, 1024, %s543, %s531, 64, 64, 4
        $region44: #{tpu_custom_call.1} parent=27 // pred_fallthru
          _
        // Predicated region
        $region45: #{tpu_custom_call.1} parent=27 // pred_check
          %p549 = pneg %p199
        $region46: #{tpu_custom_call.1} parent=27 // pred_check_branch
          %551 = sbr.rel (%p549) target = $region48
        $region47: #{tpu_custom_call.1} parent=27 // pred_region
          %s552 = sand.u32 %s37, 1
          %s553 = scalar_lea.sflag [#allocation14], %s552
          %s554 = sand.u32 %s189, 1
          %s555 = scalar_lea.vmem [#allocation13], %s554
          %557 = vsyncadd %s553, 0
          %s558 = scalar_lea.hbm %s5, %s45
          %s560 = sshll.u32 %s558, 4
          %s561 = int_to_ptr.hbm [resolvable:$true] %s560
          %s562 = sshll.u32 %s555, 4
          %s563 = int_to_ptr.vmem [resolvable:$true] %s562
          %565 = dma.hbm_to_vmem [thread:$0]  %s561, 16, %s563, %s553
        $region48: #{tpu_custom_call.1} parent=27 // pred_fallthru
          _
        // Predicated region
        $region49: #{tpu_custom_call.1} parent=27 // pred_check
          %p566 = pneg %p225
        $region50: #{tpu_custom_call.1} parent=27 // pred_check_branch
          %568 = sbr.rel (%p566) target = $region52
        $region51: #{tpu_custom_call.1} parent=27 // pred_region
          %s569 = sand.u32 %s37, 1
          %s570 = scalar_lea.sflag [#allocation14], %s569
          %s571 = sand.u32 %s215, 1
          %s572 = scalar_lea.vmem [#allocation15], %s571
          %574 = vsyncadd %s570, 0
          %s575 = scalar_lea.hbm %s6, %s45
          %s577 = sshll.u32 %s575, 4
          %s578 = int_to_ptr.hbm [resolvable:$true] %s577
          %s579 = sshll.u32 %s572, 4
          %s580 = int_to_ptr.vmem [resolvable:$true] %s579
          %582 = dma.hbm_to_vmem [thread:$0]  %s578, 16, %s580, %s570
        $region52: #{tpu_custom_call.1} parent=27 // pred_fallthru
          _
        // Predicated region
        $region53: #{tpu_custom_call.1} parent=27 // pred_check
          %p583 = pneg %p251
        $region54: #{tpu_custom_call.1} parent=27 // pred_check_branch
          %585 = sbr.rel (%p583) target = $region56
        $region55: #{tpu_custom_call.1} parent=27 // pred_region
          %s586 = sand.u32 %s37, 1
          %s587 = scalar_lea.sflag [#allocation17], %s586
          %s588 = sand.u32 %s241, 1
          %s589 = scalar_lea.vmem [#allocation16], %s588
          %591 = vsyncadd %s587, 0
          %s592 = scalar_lea.hbm %s7, %s45
          %s594 = sshll.u32 %s592, 4
          %s595 = int_to_ptr.hbm [resolvable:$true] %s594
          %s596 = sshll.u32 %s589, 4
          %s597 = int_to_ptr.vmem [resolvable:$true] %s596
          %599 = dma.hbm_to_vmem [thread:$0]  %s595, 16, %s597, %s587
        $region56: #{tpu_custom_call.1} parent=27 // pred_fallthru
          _
        // Predicated region
        $region57: #{tpu_custom_call.1} parent=27 // pred_check
          %p600 = pneg %p277
        $region58: #{tpu_custom_call.1} parent=27 // pred_check_branch
          %602 = sbr.rel (%p600) target = $region60
        $region59: #{tpu_custom_call.1} parent=27 // pred_region
          %s603 = sand.u32 %s37, 1
          %s604 = scalar_lea.sflag [#allocation17], %s603
          %s605 = sand.u32 %s267, 1
          %s606 = smul.addr %s605, 256
          %s607 = scalar_lea.vmem [#allocation18], %s606
          %609 = vsyncadd %s604, 0
          %s610 = smul.addr %s45, 64
          %s611 = smul.addr %s610, 4
          %s612 = scalar_lea.hbm %s8, %s611
          %s613 = sshll.u32 %s612, 4
          %s614 = int_to_ptr.hbm [resolvable:$true] %s613
          %s615 = sshll.u32 %s607, 4
          %s616 = int_to_ptr.vmem [resolvable:$true] %s615
          %621 = dma.hbm_to_vmem [thread:$0]  %s614, 4096, %s616, %s604, 256, 256, 16
        $region60: #{tpu_custom_call.1} parent=27 // pred_fallthru
          _
        // Predicated region
        $region61: #{tpu_custom_call.1} parent=27 // pred_check
          %p622 = pneg %p303
        $region62: #{tpu_custom_call.1} parent=27 // pred_check_branch
          %624 = sbr.rel (%p622) target = $region64
        $region63: #{tpu_custom_call.1} parent=27 // pred_region
          %p625 = scmp.lt.s32.totalorder %s45, 1
          %s626 = scalar_select %p625, %s45, 1
          %s627 = smul.addr %s626, 4
          %s628 = scalar_lea.vmem %s9, %s627
        $region64: #{tpu_custom_call.1} parent=27 // pred_fallthru
          _
        // Predicated region
        $region65: #{tpu_custom_call.1} parent=27 // pred_check
          %p629 = pneg %p329
        $region66: #{tpu_custom_call.1} parent=27 // pred_check_branch
          %631 = sbr.rel (%p629) target = $region68
        $region67: #{tpu_custom_call.1} parent=27 // pred_region
          %s632 = sand.u32 %s319, 1
          %s633 = scalar_lea.sflag [#allocation20], %s632
          %s634 = sand.u32 %s319, 1
          %s635 = smul.addr %s634, 256
          %s636 = scalar_lea.vmem [#allocation19], %s635
          %638 = vsyncadd %s633, 0
          %s639 = smul.addr %s45, 64
          %s640 = smul.addr %s639, 4
          %s641 = scalar_lea.hbm %s10, %s640
          %s642 = sshll.u32 %s641, 4
          %s643 = int_to_ptr.hbm [resolvable:$true] %s642
          %s644 = sshll.u32 %s636, 4
          %s645 = int_to_ptr.vmem [resolvable:$true] %s644
          %650 = dma.hbm_to_vmem [thread:$0]  %s643, 4096, %s645, %s633, 64, 64, 4
        $region68: #{tpu_custom_call.1} parent=27 // pred_fallthru
          _
        // Predicated region
        $region69: #{tpu_custom_call.1} parent=27 // pred_check
          %p651 = pneg %p355
        $region70: #{tpu_custom_call.1} parent=27 // pred_check_branch
          %653 = sbr.rel (%p651) target = $region72
        $region71: #{tpu_custom_call.1} parent=27 // pred_region
          %p654 = scmp.lt.s32.totalorder %s45, 1
          %s655 = scalar_select %p654, %s45, 1
          %s656 = scalar_lea.vmem %s11, %s655
        $region72: #{tpu_custom_call.1} parent=27 // pred_fallthru
          _
      $region28: #{tpu_custom_call.1} parent=5 // pred_fallthru
        _
      %p657 = scmp.le.s32.totalorder 1, %s37
      %p658 = scmp.lt.s32.totalorder %s37, 3
      %p659 = pnand %p657, %p658
      %p660 = pneg %p659
      // Predicated region
      $region73: #{tpu_custom_call.1} parent=5 // pred_check
        _
      $region74: #{tpu_custom_call.1} parent=5 // pred_check_branch
        %662 = sbr.rel (%p659) target = $region76
      $region75: #{tpu_custom_call.1} parent=5 // pred_region
        %s663 = ssub.s32 %s37, 1
        // Predicated region
        $region77: #{tpu_custom_call.1} parent=75 // pred_check
          %p664 = pneg %p75
        $region78: #{tpu_custom_call.1} parent=75 // pred_check_branch
          %666 = sbr.rel (%p664) target = $region80
        $region79: #{tpu_custom_call.1} parent=75 // pred_region
          %668 = dma.done [#allocation5], 512
        $region80: #{tpu_custom_call.1} parent=75 // pred_fallthru
          _
        %s669 = sand.u32 %s42, 1
        %s670 = scalar_lea.sflag [#allocation8], %s669
        %s671 = sand.u32 %s88, 1
        %s672 = scalar_lea.vmem [#allocation7], %s671
        // Predicated region
        $region81: #{tpu_custom_call.1} parent=75 // pred_check
          %p673 = pneg %p101
        $region82: #{tpu_custom_call.1} parent=75 // pred_check_branch
          %675 = sbr.rel (%p673) target = $region84
        $region83: #{tpu_custom_call.1} parent=75 // pred_region
          %677 = dma.done %s670, 16
        $region84: #{tpu_custom_call.1} parent=75 // pred_fallthru
          _
        %s678 = sand.u32 %s42, 1
        %s679 = scalar_lea.sflag [#allocation8], %s678
        %s680 = sand.u32 %s114, 1
        %s681 = scalar_lea.vmem [#allocation9], %s680
        // Predicated region
        $region85: #{tpu_custom_call.1} parent=75 // pred_check
          %p682 = pneg %p127
        $region86: #{tpu_custom_call.1} parent=75 // pred_check_branch
          %684 = sbr.rel (%p682) target = $region88
        $region87: #{tpu_custom_call.1} parent=75 // pred_region
          %686 = dma.done %s679, 16
        $region88: #{tpu_custom_call.1} parent=75 // pred_fallthru
          _
        %s687 = sand.u32 %s42, 1
        %s688 = scalar_lea.sflag [#allocation11], %s687
        %s689 = sand.u32 %s140, 1
        %s690 = smul.addr %s689, 192
        %s691 = scalar_lea.vmem [#allocation10], %s690
        // Predicated region
        $region89: #{tpu_custom_call.1} parent=75 // pred_check
          %p692 = pneg %p153
        $region90: #{tpu_custom_call.1} parent=75 // pred_check_branch
          %694 = sbr.rel (%p692) target = $region92
        $region91: #{tpu_custom_call.1} parent=75 // pred_region
          %696 = dma.done %s688, 3072
        $region92: #{tpu_custom_call.1} parent=75 // pred_fallthru
          _
        %s697 = sand.u32 %s42, 1
        %s698 = scalar_lea.sflag [#allocation11], %s697
        %s699 = sand.u32 %s166, 1
        %s700 = smul.addr %s699, 64
        %s701 = scalar_lea.vmem [#allocation12], %s700
        // Predicated region
        $region93: #{tpu_custom_call.1} parent=75 // pred_check
          %p702 = pneg %p179
        $region94: #{tpu_custom_call.1} parent=75 // pred_check_branch
          %704 = sbr.rel (%p702) target = $region96
        $region95: #{tpu_custom_call.1} parent=75 // pred_region
          %706 = dma.done %s698, 1024
        $region96: #{tpu_custom_call.1} parent=75 // pred_fallthru
          _
        %s707 = sand.u32 %s42, 1
        %s708 = scalar_lea.sflag [#allocation14], %s707
        %s709 = sand.u32 %s192, 1
        %s710 = scalar_lea.vmem [#allocation13], %s709
        // Predicated region
        $region97: #{tpu_custom_call.1} parent=75 // pred_check
          %p711 = pneg %p205
        $region98: #{tpu_custom_call.1} parent=75 // pred_check_branch
          %713 = sbr.rel (%p711) target = $region100
        $region99: #{tpu_custom_call.1} parent=75 // pred_region
          %715 = dma.done %s708, 16
        $region100: #{tpu_custom_call.1} parent=75 // pred_fallthru
          _
        %s716 = sand.u32 %s42, 1
        %s717 = scalar_lea.sflag [#allocation14], %s716
        %s718 = sand.u32 %s218, 1
        %s719 = scalar_lea.vmem [#allocation15], %s718
        // Predicated region
        $region101: #{tpu_custom_call.1} parent=75 // pred_check
          %p720 = pneg %p231
        $region102: #{tpu_custom_call.1} parent=75 // pred_check_branch
          %722 = sbr.rel (%p720) target = $region104
        $region103: #{tpu_custom_call.1} parent=75 // pred_region
          %724 = dma.done %s717, 16
        $region104: #{tpu_custom_call.1} parent=75 // pred_fallthru
          _
        %s725 = sand.u32 %s42, 1
        %s726 = scalar_lea.sflag [#allocation17], %s725
        %s727 = sand.u32 %s244, 1
        %s728 = scalar_lea.vmem [#allocation16], %s727
        // Predicated region
        $region105: #{tpu_custom_call.1} parent=75 // pred_check
          %p729 = pneg %p257
        $region106: #{tpu_custom_call.1} parent=75 // pred_check_branch
          %731 = sbr.rel (%p729) target = $region108
        $region107: #{tpu_custom_call.1} parent=75 // pred_region
          %733 = dma.done %s726, 16
        $region108: #{tpu_custom_call.1} parent=75 // pred_fallthru
          _
        %s734 = sand.u32 %s42, 1
        %s735 = scalar_lea.sflag [#allocation17], %s734
        %s736 = sand.u32 %s270, 1
        %s737 = smul.addr %s736, 256
        %s738 = scalar_lea.vmem [#allocation18], %s737
        // Predicated region
        $region109: #{tpu_custom_call.1} parent=75 // pred_check
          %p739 = pneg %p283
        $region110: #{tpu_custom_call.1} parent=75 // pred_check_branch
          %741 = sbr.rel (%p739) target = $region112
        $region111: #{tpu_custom_call.1} parent=75 // pred_region
          %743 = dma.done %s735, 4096
        $region112: #{tpu_custom_call.1} parent=75 // pred_fallthru
          _
        %s744 = sand.u32 %s322, 1
        %s745 = scalar_lea.sflag [#allocation20], %s744
        %s746 = sand.u32 %s322, 1
        %s747 = smul.addr %s746, 256
        %s748 = scalar_lea.vmem [#allocation19], %s747
        // Predicated region
        $region113: #{tpu_custom_call.1} parent=75 // pred_check
          %p749 = pneg %p335
        $region114: #{tpu_custom_call.1} parent=75 // pred_check_branch
          %751 = sbr.rel (%p749) target = $region116
        $region115: #{tpu_custom_call.1} parent=75 // pred_region
          %753 = dma.done %s745, 4096
        $region116: #{tpu_custom_call.1} parent=75 // pred_fallthru
          _
        %p754 = pneg %p75
        %p755 = pneg %p72
        %s756 = sand.u32 %s42, 1
        %s757 = scalar_lea.sflag [#allocation8], %s756
        %s758 = sand.u32 %s88, 1
        %s759 = scalar_lea.vmem [#allocation7], %s758
        %p760 = pneg %p101
        %p761 = pneg %p98
        %s762 = sand.u32 %s42, 1
        %s763 = scalar_lea.sflag [#allocation8], %s762
        %s764 = sand.u32 %s114, 1
        %s765 = scalar_lea.vmem [#allocation9], %s764
        %p766 = pneg %p127
        %p767 = pneg %p124
        %s768 = sand.u32 %s42, 1
        %s769 = scalar_lea.sflag [#allocation11], %s768
        %s770 = sand.u32 %s140, 1
        %s771 = smul.addr %s770, 192
        %s772 = scalar_lea.vmem [#allocation10], %s771
        %p773 = pneg %p153
        %p774 = pneg %p150
        %s775 = sand.u32 %s42, 1
        %s776 = scalar_lea.sflag [#allocation11], %s775
        %s777 = sand.u32 %s166, 1
        %s778 = smul.addr %s777, 64
        %s779 = scalar_lea.vmem [#allocation12], %s778
        %p780 = pneg %p179
        %p781 = pneg %p176
        %s782 = sand.u32 %s42, 1
        %s783 = scalar_lea.sflag [#allocation14], %s782
        %s784 = sand.u32 %s192, 1
        %s785 = scalar_lea.vmem [#allocation13], %s784
        %p786 = pneg %p205
        %p787 = pneg %p202
        %s788 = sand.u32 %s42, 1
        %s789 = scalar_lea.sflag [#allocation14], %s788
        %s790 = sand.u32 %s218, 1
        %s791 = scalar_lea.vmem [#allocation15], %s790
        %p792 = pneg %p231
        %p793 = pneg %p228
        %s794 = sand.u32 %s42, 1
        %s795 = scalar_lea.sflag [#allocation17], %s794
        %s796 = sand.u32 %s244, 1
        %s797 = scalar_lea.vmem [#allocation16], %s796
        %p798 = pneg %p257
        %p799 = pneg %p254
        %s800 = sand.u32 %s42, 1
        %s801 = scalar_lea.sflag [#allocation17], %s800
        %s802 = sand.u32 %s270, 1
        %s803 = smul.addr %s802, 256
        %s804 = scalar_lea.vmem [#allocation18], %s803
        %p805 = pneg %p283
        %p806 = pneg %p280
        %p807 = scmp.lt.s32.totalorder %s47, 1
        %s808 = scalar_select %p807, %s47, 1
        %s809 = smul.addr %s808, 4
        %s810 = scalar_lea.vmem %s9, %s809
        %p811 = pneg %p309
        %p812 = pneg %p306
        %s813 = sand.u32 %s322, 1
        %s814 = scalar_lea.sflag [#allocation20], %s813
        %s815 = sand.u32 %s322, 1
        %s816 = smul.addr %s815, 256
        %s817 = scalar_lea.vmem [#allocation19], %s816
        %p818 = pneg %p335
        %p819 = pneg %p332
        %p820 = scmp.lt.s32.totalorder %s47, 1
        %s821 = scalar_select %p820, %s47, 1
        %s822 = scalar_lea.vmem %s11, %s821
        %p823 = pneg %p361
        %p824 = pneg %p358
        %p825 = pneg %p382
        %p826 = pneg %p379
        %p827 = pneg %p403
        %p828 = pneg %p400
        %p829 = pneg %p429
        %p830 = pneg %p426
        %s831 = smul.u32 4, %s46
        %p832 = scmp.lt.s32.totalorder %s47, 1
        %s833 = scalar_select %p832, %s47, 1
        %s834 = smul.addr %s833, 4
        %s835 = scalar_lea.vmem %s9, %s834
        %p836 = scmp.lt.s32.totalorder %s47, 1
        %s837 = scalar_select %p836, %s47, 1
        %s838 = scalar_lea.vmem %s11, %s837
        %s839 = smul.u32 4, %s46
        %p841 = scmp.eq.s32.totalorder %s47, 0
        // Predicated region
        $region117: #{tpu_custom_call.1} parent=75 // pred_check
          %p842 = pneg %p841
        $region118: #{tpu_custom_call.1} parent=75 // pred_check_branch
          %844 = sbr.rel (%p842) target = $region120
        $region119: #{tpu_custom_call.1} parent=75 // pred_region
          %v845 = vld [vmem:[#allocation4] sm:$0xff]
          %v846 = vld [vmem:[#allocation4 + $0x8] sm:$0xff]
          %v847 = vld [vmem:[#allocation4 + $0x10] sm:$0xff]
          %v848 = vld [vmem:[#allocation4 + $0x18] sm:$0xff]
          %849 = vst [vmem:[#allocation2] sm:$0xff] %v845
          %850 = vst [vmem:[#allocation2 + $0x8] sm:$0xff] %v846
          %851 = vst [vmem:[#allocation2 + $0x10] sm:$0xff] %v847
          %852 = vst [vmem:[#allocation2 + $0x18] sm:$0xff] %v848
        $region120: #{tpu_custom_call.1} parent=75 // pred_fallthru
          _
        %v853 = vld [vmem:[#allocation2] sm:$0xff]
        %v854 = vld [vmem:[#allocation2 + $0x8] sm:$0xff]
        %v855 = vld [vmem:[#allocation2 + $0x10] sm:$0xff]
        %v856 = vld [vmem:[#allocation2 + $0x18] sm:$0xff]
        %v857 = vld [vmem:[%s672] sm:$0x1]
        %v858 = vld [vmem:[%s681] sm:$0x1]
        %859 = vadd.xlane.f32.xlu0 %v853
        %v860 = vpop.xlane.xlu0 %859
        %861 = vadd.xlane.f32.xlu0 %v854
        %v862 = vpop.xlane.xlu0 %861
        %863 = vadd.xlane.f32.xlu0 %v855
        %v864 = vpop.xlane.xlu0 %863
        %865 = vadd.xlane.f32.xlu0 %v856
        %v866 = vpop.xlane.xlu0 %865
        %v867 = vrcp.pop 128.0
        %v868 = vmul.f32 128.0, %v867
        %v869 = vsub.f32 1.0, %v868
        %v870 = vmul.f32 %v867, %v869
        %v871 = vadd.f32 %v867, %v870
        %vm872 = vweird.f32 %v867
        %v873 = vsel %vm872, %v867, %v871
        %v874 = vmul.f32 %v860, %v873
        %v875 = vmul.f32 %v862, %v873
        %v876 = vmul.f32 %v864, %v873
        %v877 = vmul.f32 %v866, %v873
        %v878 = vsub.f32 %v853, %v874
        %v879 = vsub.f32 %v854, %v875
        %v880 = vsub.f32 %v855, %v876
        %v881 = vsub.f32 %v856, %v877
        %v882 = vmul.f32 %v878, %v878
        %v883 = vmul.f32 %v879, %v879
        %v884 = vmul.f32 %v880, %v880
        %v885 = vmul.f32 %v881, %v881
        %886 = vadd.xlane.f32.xlu0 %v882
        %v887 = vpop.xlane.xlu0 %886
        %888 = vadd.xlane.f32.xlu0 %v883
        %v889 = vpop.xlane.xlu0 %888
        %890 = vadd.xlane.f32.xlu0 %v884
        %v891 = vpop.xlane.xlu0 %890
        %892 = vadd.xlane.f32.xlu0 %v885
        %v893 = vpop.xlane.xlu0 %892
        %v894 = vmul.f32 %v887, %v873
        %v895 = vmul.f32 %v889, %v873
        %v896 = vmul.f32 %v891, %v873
        %v897 = vmul.f32 %v893, %v873
        %v898 = vadd.f32 %v894, 1e-05
        %v899 = vadd.f32 %v895, 1e-05
        %v900 = vadd.f32 %v896, 1e-05
        %v901 = vadd.f32 %v897, 1e-05
        %v902 = vrsqrt.pop %v898
        %v903 = vmul.f32 %v902, %v898
        %v904 = vmul.f32 %v903, %v902
        %v905 = vmul.f32 0.5, %v904
        %v906 = vsub.f32 1.5, %v905
        %v907 = vmul.f32 %v902, %v906
        %vm908 = vweird.f32 %v898
        %vm909 = vweird.f32 %v902
        %vm910 = vmor %vm908, %vm909
        %v911 = vsel %vm910, %v902, %v907
        %v912 = vrsqrt.pop %v899
        %v913 = vmul.f32 %v912, %v899
        %v914 = vmul.f32 %v913, %v912
        %v915 = vmul.f32 0.5, %v914
        %v916 = vsub.f32 1.5, %v915
        %v917 = vmul.f32 %v912, %v916
        %vm918 = vweird.f32 %v899
        %vm919 = vweird.f32 %v912
        %vm920 = vmor %vm918, %vm919
        %v921 = vsel %vm920, %v912, %v917
        %v922 = vrsqrt.pop %v900
        %v923 = vmul.f32 %v922, %v900
        %v924 = vmul.f32 %v923, %v922
        %v925 = vmul.f32 0.5, %v924
        %v926 = vsub.f32 1.5, %v925
        %v927 = vmul.f32 %v922, %v926
        %vm928 = vweird.f32 %v900
        %vm929 = vweird.f32 %v922
        %vm930 = vmor %vm928, %vm929
        %v931 = vsel %vm930, %v922, %v927
        %v932 = vrsqrt.pop %v901
        %v933 = vmul.f32 %v932, %v901
        %v934 = vmul.f32 %v933, %v932
        %v935 = vmul.f32 0.5, %v934
        %v936 = vsub.f32 1.5, %v935
        %v937 = vmul.f32 %v932, %v936
        %vm938 = vweird.f32 %v901
        %vm939 = vweird.f32 %v932
        %vm940 = vmor %vm938, %vm939
        %v941 = vsel %vm940, %v932, %v937
        %v942 = vmul.f32 %v878, %v911
        %v943 = vmul.f32 %v879, %v921
        %v944 = vmul.f32 %v880, %v931
        %v945 = vmul.f32 %v881, %v941
        %v947 = vperm.slane %v857, 0
        %v949 = vmul.f32 %v942, %v947
        %v950 = vmul.f32 %v943, %v947
        %v951 = vmul.f32 %v944, %v947
        %v952 = vmul.f32 %v945, %v947
        %v954 = vperm.slane %v858, 0
        %v956 = vadd.f32 %v949, %v954
        %v957 = vadd.f32 %v950, %v954
        %v958 = vadd.f32 %v951, %v954
        %v959 = vadd.f32 %v952, %v954
        %v960 = vpack.c.bf16 %v957, %v956
        %v961 = vpack.c.bf16 %v959, %v958
        %v962 = vld [vmem:[%s691] sm:$0xff]
        %v963 = vld [vmem:[%s691 + $0x8] sm:$0xf]
        %v964 = vld [vmem:[%s691 + $0xc] sm:$0xff]
        %v965 = vld [vmem:[%s691 + $0x14] sm:$0xf]
        %v966 = vld [vmem:[%s691 + $0x18] sm:$0xff]
        %v967 = vld [vmem:[%s691 + $0x20] sm:$0xf]
        %v968 = vld [vmem:[%s691 + $0x24] sm:$0xff]
        %v969 = vld [vmem:[%s691 + $0x2c] sm:$0xf]
        %v970 = vld [vmem:[%s691 + $0x30] sm:$0xff]
        %v971 = vld [vmem:[%s691 + $0x38] sm:$0xf]
        %v972 = vld [vmem:[%s691 + $0x3c] sm:$0xff]
        %v973 = vld [vmem:[%s691 + $0x44] sm:$0xf]
        %v974 = vld [vmem:[%s691 + $0x48] sm:$0xff]
        %v975 = vld [vmem:[%s691 + $0x50] sm:$0xf]
        %v976 = vld [vmem:[%s691 + $0x54] sm:$0xff]
        %v977 = vld [vmem:[%s691 + $0x5c] sm:$0xf]
        %v978 = vld [vmem:[%s691 + $0x60] sm:$0xff]
        %v979 = vld [vmem:[%s691 + $0x68] sm:$0xf]
        %v980 = vld [vmem:[%s691 + $0x6c] sm:$0xff]
        %v981 = vld [vmem:[%s691 + $0x74] sm:$0xf]
        %v982 = vld [vmem:[%s691 + $0x78] sm:$0xff]
        %v983 = vld [vmem:[%s691 + $0x80] sm:$0xf]
        %v984 = vld [vmem:[%s691 + $0x84] sm:$0xff]
        %v985 = vld [vmem:[%s691 + $0x8c] sm:$0xf]
        %v986 = vld [vmem:[%s691 + $0x90] sm:$0xff]
        %v987 = vld [vmem:[%s691 + $0x98] sm:$0xf]
        %v988 = vld [vmem:[%s691 + $0x9c] sm:$0xff]
        %v989 = vld [vmem:[%s691 + $0xa4] sm:$0xf]
        %v990 = vld [vmem:[%s691 + $0xa8] sm:$0xff]
        %v991 = vld [vmem:[%s691 + $0xb0] sm:$0xf]
        %v992 = vld [vmem:[%s691 + $0xb4] sm:$0xff]
        %v993 = vld [vmem:[%s691 + $0xbc] sm:$0xf]
        %v1026 = vunpack.c.l.b16 %v962
        %v1027 = vunpack.c.h.b16 %v962
        %v1028 = vunpack.c.l.b16 %v963
        %v1029 = vunpack.c.l.b16 %v964
        %v1030 = vunpack.c.h.b16 %v964
        %v1031 = vunpack.c.l.b16 %v965
        %v1032 = vunpack.c.l.b16 %v966
        %v1033 = vunpack.c.h.b16 %v966
        %v1034 = vunpack.c.l.b16 %v967
        %v1035 = vunpack.c.l.b16 %v968
        %v1036 = vunpack.c.h.b16 %v968
        %v1037 = vunpack.c.l.b16 %v969
        %v1038 = vunpack.c.l.b16 %v970
        %v1039 = vunpack.c.h.b16 %v970
        %v1040 = vunpack.c.l.b16 %v971
        %v1041 = vunpack.c.l.b16 %v972
        %v1042 = vunpack.c.h.b16 %v972
        %v1043 = vunpack.c.l.b16 %v973
        %v1044 = vunpack.c.l.b16 %v974
        %v1045 = vunpack.c.h.b16 %v974
        %v1046 = vunpack.c.l.b16 %v975
        %v1047 = vunpack.c.l.b16 %v976
        %v1048 = vunpack.c.h.b16 %v976
        %v1049 = vunpack.c.l.b16 %v977
        %v1050 = vunpack.c.l.b16 %v978
        %v1051 = vunpack.c.h.b16 %v978
        %v1052 = vunpack.c.l.b16 %v979
        %v1053 = vunpack.c.l.b16 %v980
        %v1054 = vunpack.c.h.b16 %v980
        %v1055 = vunpack.c.l.b16 %v981
        %v1056 = vunpack.c.l.b16 %v982
        %v1057 = vunpack.c.h.b16 %v982
        %v1058 = vunpack.c.l.b16 %v983
        %v1059 = vunpack.c.l.b16 %v984
        %v1060 = vunpack.c.h.b16 %v984
        %v1061 = vunpack.c.l.b16 %v985
        %v1062 = vunpack.c.l.b16 %v986
        %v1063 = vunpack.c.h.b16 %v986
        %v1064 = vunpack.c.l.b16 %v987
        %v1065 = vunpack.c.l.b16 %v988
        %v1066 = vunpack.c.h.b16 %v988
        %v1067 = vunpack.c.l.b16 %v989
        %v1068 = vunpack.c.l.b16 %v990
        %v1069 = vunpack.c.h.b16 %v990
        %v1070 = vunpack.c.l.b16 %v991
        %v1071 = vunpack.c.l.b16 %v992
        %v1072 = vunpack.c.h.b16 %v992
        %v1073 = vunpack.c.l.b16 %v993
        %v1074 = vpack.c.b16 %v1029, %v1026
        %v1075 = vpack.c.b16 %v1030, %v1027
        %v1076 = vpack.c.b16 %v1031, %v1028
        %v1077 = vpack.c.b16 %v1035, %v1032
        %v1078 = vpack.c.b16 %v1036, %v1033
        %v1079 = vpack.c.b16 %v1037, %v1034
        %v1080 = vpack.c.b16 %v1041, %v1038
        %v1081 = vpack.c.b16 %v1042, %v1039
        %v1082 = vpack.c.b16 %v1043, %v1040
        %v1083 = vpack.c.b16 %v1047, %v1044
        %v1084 = vpack.c.b16 %v1048, %v1045
        %v1085 = vpack.c.b16 %v1049, %v1046
        %v1086 = vpack.c.b16 %v1053, %v1050
        %v1087 = vpack.c.b16 %v1054, %v1051
        %v1088 = vpack.c.b16 %v1055, %v1052
        %v1089 = vpack.c.b16 %v1059, %v1056
        %v1090 = vpack.c.b16 %v1060, %v1057
        %v1091 = vpack.c.b16 %v1061, %v1058
        %v1092 = vpack.c.b16 %v1065, %v1062
        %v1093 = vpack.c.b16 %v1066, %v1063
        %v1094 = vpack.c.b16 %v1067, %v1064
        %v1095 = vpack.c.b16 %v1071, %v1068
        %v1096 = vpack.c.b16 %v1072, %v1069
        %v1097 = vpack.c.b16 %v1073, %v1070
        %1122 = vmatpush.bf16.msra.mxu0 %v1095
        %1123 = vmatpush.bf16.msra.mxu0 %v1092
        %1124 = vmatpush.bf16.msra.mxu0 %v1089
        %1125 = vmatpush.bf16.msra.mxu0 %v1086
        %1126 = vmatpush.bf16.msra.mxu0 %v1083
        %1127 = vmatpush.bf16.msra.mxu0 %v1080
        %1128 = vmatpush.bf16.msra.mxu0 %v1077
        %1129 = vmatpush.bf16.msra.mxu0 %v1074
        %1130 = vmatmul.bf16.gmra.mxu0 %v960
        %v1131 = vpop.f32.mrf.mxu0
        %v1132 = vadd.f32 0.0, %v1131
        %v1133 = vpop.f32.mrf.mxu0
        %v1134 = vadd.f32 0.0, %v1133
        %1135 = vmatmul.bf16.gmra.mxu0 %v961
        %v1136 = vpop.f32.mrf.mxu0
        %v1137 = vadd.f32 0.0, %v1136
        %v1138 = vpop.f32.mrf.mxu0
        %v1139 = vadd.f32 0.0, %v1138
        %1140 = vdwg.mxu0
        %1141 = vmatpush.bf16.msra.mxu0 %v1096
        %1142 = vmatpush.bf16.msra.mxu0 %v1093
        %1143 = vmatpush.bf16.msra.mxu0 %v1090
        %1144 = vmatpush.bf16.msra.mxu0 %v1087
        %1145 = vmatpush.bf16.msra.mxu0 %v1084
        %1146 = vmatpush.bf16.msra.mxu0 %v1081
        %1147 = vmatpush.bf16.msra.mxu0 %v1078
        %1148 = vmatpush.bf16.msra.mxu0 %v1075
        %1149 = vmatmul.bf16.gmra.mxu0 %v960
        %v1150 = vpop.f32.mrf.mxu0
        %v1151 = vadd.f32 0.0, %v1150
        %v1152 = vpop.f32.mrf.mxu0
        %v1153 = vadd.f32 0.0, %v1152
        %1154 = vmatmul.bf16.gmra.mxu0 %v961
        %v1155 = vpop.f32.mrf.mxu0
        %v1156 = vadd.f32 0.0, %v1155
        %v1157 = vpop.f32.mrf.mxu0
        %v1158 = vadd.f32 0.0, %v1157
        %1159 = vdwg.mxu0
        %1160 = vmatpush.bf16.msra.mxu0 %v1097
        %1161 = vmatpush.bf16.msra.mxu0 %v1094
        %1162 = vmatpush.bf16.msra.mxu0 %v1091
        %1163 = vmatpush.bf16.msra.mxu0 %v1088
        %1164 = vmatpush.bf16.msra.mxu0 %v1085
        %1165 = vmatpush.bf16.msra.mxu0 %v1082
        %1166 = vmatpush.bf16.msra.mxu0 %v1079
        %1167 = vmatpush.bf16.msra.mxu0 %v1076
        %1168 = vmatmul.bf16.gmra.mxu0 %v960
        %v1169 = vpop.f32.mrf.mxu0
        %v1170 = vadd.f32 0.0, %v1169
        %v1171 = vpop.f32.mrf.mxu0
        %v1172 = vadd.f32 0.0, %v1171
        %1173 = vmatmul.bf16.gmra.mxu0 %v961
        %v1174 = vpop.f32.mrf.mxu0
        %v1175 = vadd.f32 0.0, %v1174
        %v1176 = vpop.f32.mrf.mxu0
        %v1177 = vadd.f32 0.0, %v1176
        %1178 = vdwg.mxu0
        %v1179 = vlaneseq
        %v1180 = vshrl.u32 %v1179, 7
        %v1181 = vadd.s32 %v1180, 8
        %v1182 = vlaneseq
        %v1183 = vand.u32 %v1182, 127
        %vm1184 = vcmp.ge.s32.totalorder %v1180, %v1183
        %vm1185 = vcmp.ge.s32.totalorder %v1181, %v1183
        %v1186 = vpack.c.bf16 %v1134, %v1132
        %v1187 = vpack.c.bf16 %v1153, %v1151
        %v1188 = vpack.c.bf16 %v1172, %v1170
        %vm1189 = vcmask 261120
        %v1191 = vsel %vm1189, %v1186, 0
        %v1194 = vsel %vm1189, %v1187, 0
        %1196 = vmatpush.bf16.xpose.msra.mxu0 0
        %1197 = vmatpush.bf16.xpose.msra.mxu0 0
        %1198 = vmatpush.bf16.xpose.msra.mxu0 0
        %1199 = vmatpush.bf16.xpose.msra.mxu0 0
        %1200 = vmatpush.bf16.xpose.msra.mxu0 0
        %1201 = vmatpush.bf16.xpose.msra.mxu0 0
        %1202 = vmatpush.bf16.xpose.msra.mxu0 0
        %1203 = vmatpush.bf16.xpose.msra.mxu0 %v1194
        %1204 = vmatmul.bf16.gmra.mxu0 %v1191
        %v1205 = vpop.f32.mrf.mxu0
        %v1206 = vadd.f32 0.0, %v1205
        %v1207 = vpop.f32.mrf.mxu0
        %v1208 = vadd.f32 0.0, %v1207
        %1209 = vdwg.mxu0
        %v1210 = vmul.f32 %v1206, 0.17677669
        %v1211 = vmul.f32 %v1208, 0.17677669
        %v1212 = vsel %vm1184, %v1210, -1e+30
        %v1213 = vsel %vm1185, %v1211, -1e+30
        %vm1214 = vcmask 130048
        %v1215 = vsel %vm1214, %v1212, -inf
        %1216 = vmax.xlane.f32.xlu0 %v1215
        %v1217 = vpop.xlane.xlu0 %1216
        %v1218 = vsel %vm1214, %v1213, -inf
        %1219 = vmax.xlane.f32.xlu0 %v1218
        %v1220 = vpop.xlane.xlu0 %1219
        %v1221 = vsub.f32 %v1212, %v1217
        %v1222 = vsub.f32 %v1213, %v1220
        %v1223 = vmul.f32 %v1221, 1.442695
        %v1224 = vpow.pop %v1223
        %v1225 = vmul.f32 %v1222, 1.442695
        %v1226 = vpow.pop %v1225
        %v1227 = vsel %vm1214, %v1224, 0.0
        %1228 = vadd.xlane.f32.xlu0 %v1227
        %v1229 = vpop.xlane.xlu0 %1228
        %v1230 = vsel %vm1214, %v1226, 0.0
        %1231 = vadd.xlane.f32.xlu0 %v1230
        %v1232 = vpop.xlane.xlu0 %1231
        %v1233 = vrcp.pop %v1229
        %v1234 = vrcp.pop %v1232
        %v1235 = vmul.f32 %v1224, %v1233
        %v1236 = vmul.f32 %v1226, %v1234
        %v1237 = vpack.c.bf16 %v1236, %v1235
        %v1239 = vsel %vm1214, %v1237, 0
        %1241 = vmatpush.bf16.msra.mxu0 0
        %1242 = vmatpush.bf16.msra.mxu0 0
        %1243 = vmatpush.bf16.msra.mxu0 0
        %1244 = vmatpush.bf16.msra.mxu0 0
        %1245 = vmatpush.bf16.msra.mxu0 0
        %1246 = vmatpush.bf16.msra.mxu0 0
        %1247 = vmatpush.bf16.msra.mxu0 0
        %1248 = vmatpush.bf16.msra.mxu0 %v1188
        %1249 = vmatmul.bf16.gmra.mxu0 %v1239
        %v1250 = vpop.f32.mrf.mxu0
        %v1251 = vadd.f32 0.0, %v1250
        %v1252 = vpop.f32.mrf.mxu0
        %v1253 = vadd.f32 0.0, %v1252
        %1254 = vdwg.mxu0
        %1256 = vrot.lane.b32.xlu0 %v1186, 96
        %v1257 = vpop.permute.xlu0 %1256
        %1259 = vrot.lane.b32.xlu0 %v1187, 96
        %v1260 = vpop.permute.xlu0 %1259
        %v1262 = vsel %vm1189, %v1257, 0
        %v1265 = vsel %vm1189, %v1260, 0
        %1267 = vmatpush.bf16.xpose.msra.mxu0 0
        %1268 = vmatpush.bf16.xpose.msra.mxu0 0
        %1269 = vmatpush.bf16.xpose.msra.mxu0 0
        %1270 = vmatpush.bf16.xpose.msra.mxu0 0
        %1271 = vmatpush.bf16.xpose.msra.mxu0 0
        %1272 = vmatpush.bf16.xpose.msra.mxu0 0
        %1273 = vmatpush.bf16.xpose.msra.mxu0 0
        %1274 = vmatpush.bf16.xpose.msra.mxu0 %v1265
        %1275 = vmatmul.bf16.gmra.mxu0 %v1262
        %v1276 = vpop.f32.mrf.mxu0
        %v1277 = vadd.f32 0.0, %v1276
        %v1278 = vpop.f32.mrf.mxu0
        %v1279 = vadd.f32 0.0, %v1278
        %1280 = vdwg.mxu0
        %v1281 = vmul.f32 %v1277, 0.17677669
        %v1282 = vmul.f32 %v1279, 0.17677669
        %v1283 = vsel %vm1184, %v1281, -1e+30
        %v1284 = vsel %vm1185, %v1282, -1e+30
        %v1285 = vsel %vm1214, %v1283, -inf
        %1286 = vmax.xlane.f32.xlu0 %v1285
        %v1287 = vpop.xlane.xlu0 %1286
        %v1288 = vsel %vm1214, %v1284, -inf
        %1289 = vmax.xlane.f32.xlu0 %v1288
        %v1290 = vpop.xlane.xlu0 %1289
        %v1291 = vsub.f32 %v1283, %v1287
        %v1292 = vsub.f32 %v1284, %v1290
        %v1293 = vmul.f32 %v1291, 1.442695
        %v1294 = vpow.pop %v1293
        %v1295 = vmul.f32 %v1292, 1.442695
        %v1296 = vpow.pop %v1295
        %v1297 = vsel %vm1214, %v1294, 0.0
        %1298 = vadd.xlane.f32.xlu0 %v1297
        %v1299 = vpop.xlane.xlu0 %1298
        %v1300 = vsel %vm1214, %v1296, 0.0
        %1301 = vadd.xlane.f32.xlu0 %v1300
        %v1302 = vpop.xlane.xlu0 %1301
        %v1303 = vrcp.pop %v1299
        %v1304 = vrcp.pop %v1302
        %v1305 = vmul.f32 %v1294, %v1303
        %v1306 = vmul.f32 %v1296, %v1304
        %v1307 = vpack.c.bf16 %v1306, %v1305
        %1309 = vrot.lane.b32.xlu0 %v1188, 96
        %v1310 = vpop.permute.xlu0 %1309
        %v1313 = vsel %vm1214, %v1307, 0
        %1315 = vmatpush.bf16.msra.mxu0 0
        %1316 = vmatpush.bf16.msra.mxu0 0
        %1317 = vmatpush.bf16.msra.mxu0 0
        %1318 = vmatpush.bf16.msra.mxu0 0
        %1319 = vmatpush.bf16.msra.mxu0 0
        %1320 = vmatpush.bf16.msra.mxu0 0
        %1321 = vmatpush.bf16.msra.mxu0 0
        %1322 = vmatpush.bf16.msra.mxu0 %v1310
        %1323 = vmatmul.bf16.gmra.mxu0 %v1313
        %v1324 = vpop.f32.mrf.mxu0
        %v1325 = vadd.f32 0.0, %v1324
        %v1326 = vpop.f32.mrf.mxu0
        %v1327 = vadd.f32 0.0, %v1326
        %1328 = vdwg.mxu0
        %1329 = vrot.lane.b32.xlu0 %v1186, 64
        %v1330 = vpop.permute.xlu0 %1329
        %1331 = vrot.lane.b32.xlu0 %v1187, 64
        %v1332 = vpop.permute.xlu0 %1331
        %v1334 = vsel %vm1189, %v1330, 0
        %v1337 = vsel %vm1189, %v1332, 0
        %1339 = vmatpush.bf16.xpose.msra.mxu0 0
        %1340 = vmatpush.bf16.xpose.msra.mxu0 0
        %1341 = vmatpush.bf16.xpose.msra.mxu0 0
        %1342 = vmatpush.bf16.xpose.msra.mxu0 0
        %1343 = vmatpush.bf16.xpose.msra.mxu0 0
        %1344 = vmatpush.bf16.xpose.msra.mxu0 0
        %1345 = vmatpush.bf16.xpose.msra.mxu0 0
        %1346 = vmatpush.bf16.xpose.msra.mxu0 %v1337
        %1347 = vmatmul.bf16.gmra.mxu0 %v1334
        %v1348 = vpop.f32.mrf.mxu0
        %v1349 = vadd.f32 0.0, %v1348
        %v1350 = vpop.f32.mrf.mxu0
        %v1351 = vadd.f32 0.0, %v1350
        %1352 = vdwg.mxu0
        %v1353 = vmul.f32 %v1349, 0.17677669
        %v1354 = vmul.f32 %v1351, 0.17677669
        %v1355 = vsel %vm1184, %v1353, -1e+30
        %v1356 = vsel %vm1185, %v1354, -1e+30
        %v1357 = vsel %vm1214, %v1355, -inf
        %1358 = vmax.xlane.f32.xlu0 %v1357
        %v1359 = vpop.xlane.xlu0 %1358
        %v1360 = vsel %vm1214, %v1356, -inf
        %1361 = vmax.xlane.f32.xlu0 %v1360
        %v1362 = vpop.xlane.xlu0 %1361
        %v1363 = vsub.f32 %v1355, %v1359
        %v1364 = vsub.f32 %v1356, %v1362
        %v1365 = vmul.f32 %v1363, 1.442695
        %v1366 = vpow.pop %v1365
        %v1367 = vmul.f32 %v1364, 1.442695
        %v1368 = vpow.pop %v1367
        %v1369 = vsel %vm1214, %v1366, 0.0
        %1370 = vadd.xlane.f32.xlu0 %v1369
        %v1371 = vpop.xlane.xlu0 %1370
        %v1372 = vsel %vm1214, %v1368, 0.0
        %1373 = vadd.xlane.f32.xlu0 %v1372
        %v1374 = vpop.xlane.xlu0 %1373
        %v1375 = vrcp.pop %v1371
        %v1376 = vrcp.pop %v1374
        %v1377 = vmul.f32 %v1366, %v1375
        %v1378 = vmul.f32 %v1368, %v1376
        %v1379 = vpack.c.bf16 %v1378, %v1377
        %1380 = vrot.lane.b32.xlu0 %v1188, 64
        %v1381 = vpop.permute.xlu0 %1380
        %v1384 = vsel %vm1214, %v1379, 0
        %1386 = vmatpush.bf16.msra.mxu0 0
        %1387 = vmatpush.bf16.msra.mxu0 0
        %1388 = vmatpush.bf16.msra.mxu0 0
        %1389 = vmatpush.bf16.msra.mxu0 0
        %1390 = vmatpush.bf16.msra.mxu0 0
        %1391 = vmatpush.bf16.msra.mxu0 0
        %1392 = vmatpush.bf16.msra.mxu0 0
        %1393 = vmatpush.bf16.msra.mxu0 %v1381
        %1394 = vmatmul.bf16.gmra.mxu0 %v1384
        %v1395 = vpop.f32.mrf.mxu0
        %v1396 = vadd.f32 0.0, %v1395
        %v1397 = vpop.f32.mrf.mxu0
        %v1398 = vadd.f32 0.0, %v1397
        %1399 = vdwg.mxu0
        %1400 = vrot.lane.b32.xlu0 %v1186, 32
        %v1401 = vpop.permute.xlu0 %1400
        %1402 = vrot.lane.b32.xlu0 %v1187, 32
        %v1403 = vpop.permute.xlu0 %1402
        %v1405 = vsel %vm1189, %v1401, 0
        %v1408 = vsel %vm1189, %v1403, 0
        %1410 = vmatpush.bf16.xpose.msra.mxu0 0
        %1411 = vmatpush.bf16.xpose.msra.mxu0 0
        %1412 = vmatpush.bf16.xpose.msra.mxu0 0
        %1413 = vmatpush.bf16.xpose.msra.mxu0 0
        %1414 = vmatpush.bf16.xpose.msra.mxu0 0
        %1415 = vmatpush.bf16.xpose.msra.mxu0 0
        %1416 = vmatpush.bf16.xpose.msra.mxu0 0
        %1417 = vmatpush.bf16.xpose.msra.mxu0 %v1408
        %1418 = vmatmul.bf16.gmra.mxu0 %v1405
        %v1419 = vpop.f32.mrf.mxu0
        %v1420 = vadd.f32 0.0, %v1419
        %v1421 = vpop.f32.mrf.mxu0
        %v1422 = vadd.f32 0.0, %v1421
        %1423 = vdwg.mxu0
        %v1424 = vmul.f32 %v1420, 0.17677669
        %v1425 = vmul.f32 %v1422, 0.17677669
        %v1426 = vsel %vm1184, %v1424, -1e+30
        %v1427 = vsel %vm1185, %v1425, -1e+30
        %v1428 = vsel %vm1214, %v1426, -inf
        %1429 = vmax.xlane.f32.xlu0 %v1428
        %v1430 = vpop.xlane.xlu0 %1429
        %v1431 = vsel %vm1214, %v1427, -inf
        %1432 = vmax.xlane.f32.xlu0 %v1431
        %v1433 = vpop.xlane.xlu0 %1432
        %v1434 = vsub.f32 %v1426, %v1430
        %v1435 = vsub.f32 %v1427, %v1433
        %v1436 = vmul.f32 %v1434, 1.442695
        %v1437 = vpow.pop %v1436
        %v1438 = vmul.f32 %v1435, 1.442695
        %v1439 = vpow.pop %v1438
        %v1440 = vsel %vm1214, %v1437, 0.0
        %1441 = vadd.xlane.f32.xlu0 %v1440
        %v1442 = vpop.xlane.xlu0 %1441
        %v1443 = vsel %vm1214, %v1439, 0.0
        %1444 = vadd.xlane.f32.xlu0 %v1443
        %v1445 = vpop.xlane.xlu0 %1444
        %v1446 = vrcp.pop %v1442
        %v1447 = vrcp.pop %v1445
        %v1448 = vmul.f32 %v1437, %v1446
        %v1449 = vmul.f32 %v1439, %v1447
        %v1450 = vpack.c.bf16 %v1449, %v1448
        %1451 = vrot.lane.b32.xlu0 %v1188, 32
        %v1452 = vpop.permute.xlu0 %1451
        %v1455 = vsel %vm1214, %v1450, 0
        %1457 = vmatpush.bf16.msra.mxu0 0
        %1458 = vmatpush.bf16.msra.mxu0 0
        %1459 = vmatpush.bf16.msra.mxu0 0
        %1460 = vmatpush.bf16.msra.mxu0 0
        %1461 = vmatpush.bf16.msra.mxu0 0
        %1462 = vmatpush.bf16.msra.mxu0 0
        %1463 = vmatpush.bf16.msra.mxu0 0
        %1464 = vmatpush.bf16.msra.mxu0 %v1452
        %1465 = vmatmul.bf16.gmra.mxu0 %v1455
        %v1466 = vpop.f32.mrf.mxu0
        %v1467 = vadd.f32 0.0, %v1466
        %v1468 = vpop.f32.mrf.mxu0
        %v1469 = vadd.f32 0.0, %v1468
        %1470 = vdwg.mxu0
        %1473 = vrot.lane.b32.xlu0 %v1325, 32
        %v1474 = vpop.permute.xlu0 %1473
        %1475 = vrot.lane.b32.xlu0 %v1327, 32
        %v1476 = vpop.permute.xlu0 %1475
        %1481 = vrot.lane.b32.xlu0 %v1396, 64
        %v1482 = vpop.permute.xlu0 %1481
        %1483 = vrot.lane.b32.xlu0 %v1398, 64
        %v1484 = vpop.permute.xlu0 %1483
        %1489 = vrot.lane.b32.xlu0 %v1467, 96
        %v1490 = vpop.permute.xlu0 %1489
        %1491 = vrot.lane.b32.xlu0 %v1469, 96
        %v1492 = vpop.permute.xlu0 %1491
        %v1495 = vsel %vm1189, %v1251, %v1474
        %v1496 = vsel %vm1189, %v1253, %v1476
        %vm1497 = vcmask 523264
        %v1498 = vsel %vm1497, %v1495, %v1482
        %v1499 = vsel %vm1497, %v1496, %v1484
        %vm1500 = vcmask 785408
        %v1501 = vsel %vm1500, %v1498, %v1490
        %v1502 = vsel %vm1500, %v1499, %v1492
        %1503 = vst [vmem:[#allocation3] sm:$0xff] %v1501
        %1504 = vst [vmem:[#allocation3 + $0x8] sm:$0xff] %v1502
        %v1505 = vpack.c.bf16 %v1139, %v1137
        %v1506 = vpack.c.bf16 %v1158, %v1156
        %v1507 = vpack.c.bf16 %v1177, %v1175
        %v1509 = vsel %vm1189, %v1505, 0
        %v1512 = vsel %vm1189, %v1506, 0
        %1514 = vmatpush.bf16.xpose.msra.mxu0 0
        %1515 = vmatpush.bf16.xpose.msra.mxu0 0
        %1516 = vmatpush.bf16.xpose.msra.mxu0 0
        %1517 = vmatpush.bf16.xpose.msra.mxu0 0
        %1518 = vmatpush.bf16.xpose.msra.mxu0 0
        %1519 = vmatpush.bf16.xpose.msra.mxu0 0
        %1520 = vmatpush.bf16.xpose.msra.mxu0 0
        %1521 = vmatpush.bf16.xpose.msra.mxu0 %v1512
        %1522 = vmatmul.bf16.gmra.mxu0 %v1509
        %v1523 = vpop.f32.mrf.mxu0
        %v1524 = vadd.f32 0.0, %v1523
        %v1525 = vpop.f32.mrf.mxu0
        %v1526 = vadd.f32 0.0, %v1525
        %1527 = vdwg.mxu0
        %v1528 = vmul.f32 %v1524, 0.17677669
        %v1529 = vmul.f32 %v1526, 0.17677669
        %v1530 = vsel %vm1184, %v1528, -1e+30
        %v1531 = vsel %vm1185, %v1529, -1e+30
        %v1532 = vsel %vm1214, %v1530, -inf
        %1533 = vmax.xlane.f32.xlu0 %v1532
        %v1534 = vpop.xlane.xlu0 %1533
        %v1535 = vsel %vm1214, %v1531, -inf
        %1536 = vmax.xlane.f32.xlu0 %v1535
        %v1537 = vpop.xlane.xlu0 %1536
        %v1538 = vsub.f32 %v1530, %v1534
        %v1539 = vsub.f32 %v1531, %v1537
        %v1540 = vmul.f32 %v1538, 1.442695
        %v1541 = vpow.pop %v1540
        %v1542 = vmul.f32 %v1539, 1.442695
        %v1543 = vpow.pop %v1542
        %v1544 = vsel %vm1214, %v1541, 0.0
        %1545 = vadd.xlane.f32.xlu0 %v1544
        %v1546 = vpop.xlane.xlu0 %1545
        %v1547 = vsel %vm1214, %v1543, 0.0
        %1548 = vadd.xlane.f32.xlu0 %v1547
        %v1549 = vpop.xlane.xlu0 %1548
        %v1550 = vrcp.pop %v1546
        %v1551 = vrcp.pop %v1549
        %v1552 = vmul.f32 %v1541, %v1550
        %v1553 = vmul.f32 %v1543, %v1551
        %v1554 = vpack.c.bf16 %v1553, %v1552
        %v1556 = vsel %vm1214, %v1554, 0
        %1558 = vmatpush.bf16.msra.mxu0 0
        %1559 = vmatpush.bf16.msra.mxu0 0
        %1560 = vmatpush.bf16.msra.mxu0 0
        %1561 = vmatpush.bf16.msra.mxu0 0
        %1562 = vmatpush.bf16.msra.mxu0 0
        %1563 = vmatpush.bf16.msra.mxu0 0
        %1564 = vmatpush.bf16.msra.mxu0 0
        %1565 = vmatpush.bf16.msra.mxu0 %v1507
        %1566 = vmatmul.bf16.gmra.mxu0 %v1556
        %v1567 = vpop.f32.mrf.mxu0
        %v1568 = vadd.f32 0.0, %v1567
        %v1569 = vpop.f32.mrf.mxu0
        %v1570 = vadd.f32 0.0, %v1569
        %1571 = vdwg.mxu0
        %1573 = vrot.lane.b32.xlu0 %v1505, 96
        %v1574 = vpop.permute.xlu0 %1573
        %1576 = vrot.lane.b32.xlu0 %v1506, 96
        %v1577 = vpop.permute.xlu0 %1576
        %v1579 = vsel %vm1189, %v1574, 0
        %v1582 = vsel %vm1189, %v1577, 0
        %1584 = vmatpush.bf16.xpose.msra.mxu0 0
        %1585 = vmatpush.bf16.xpose.msra.mxu0 0
        %1586 = vmatpush.bf16.xpose.msra.mxu0 0
        %1587 = vmatpush.bf16.xpose.msra.mxu0 0
        %1588 = vmatpush.bf16.xpose.msra.mxu0 0
        %1589 = vmatpush.bf16.xpose.msra.mxu0 0
        %1590 = vmatpush.bf16.xpose.msra.mxu0 0
        %1591 = vmatpush.bf16.xpose.msra.mxu0 %v1582
        %1592 = vmatmul.bf16.gmra.mxu0 %v1579
        %v1593 = vpop.f32.mrf.mxu0
        %v1594 = vadd.f32 0.0, %v1593
        %v1595 = vpop.f32.mrf.mxu0
        %v1596 = vadd.f32 0.0, %v1595
        %1597 = vdwg.mxu0
        %v1598 = vmul.f32 %v1594, 0.17677669
        %v1599 = vmul.f32 %v1596, 0.17677669
        %v1600 = vsel %vm1184, %v1598, -1e+30
        %v1601 = vsel %vm1185, %v1599, -1e+30
        %v1602 = vsel %vm1214, %v1600, -inf
        %1603 = vmax.xlane.f32.xlu0 %v1602
        %v1604 = vpop.xlane.xlu0 %1603
        %v1605 = vsel %vm1214, %v1601, -inf
        %1606 = vmax.xlane.f32.xlu0 %v1605
        %v1607 = vpop.xlane.xlu0 %1606
        %v1608 = vsub.f32 %v1600, %v1604
        %v1609 = vsub.f32 %v1601, %v1607
        %v1610 = vmul.f32 %v1608, 1.442695
        %v1611 = vpow.pop %v1610
        %v1612 = vmul.f32 %v1609, 1.442695
        %v1613 = vpow.pop %v1612
        %v1614 = vsel %vm1214, %v1611, 0.0
        %1615 = vadd.xlane.f32.xlu0 %v1614
        %v1616 = vpop.xlane.xlu0 %1615
        %v1617 = vsel %vm1214, %v1613, 0.0
        %1618 = vadd.xlane.f32.xlu0 %v1617
        %v1619 = vpop.xlane.xlu0 %1618
        %v1620 = vrcp.pop %v1616
        %v1621 = vrcp.pop %v1619
        %v1622 = vmul.f32 %v1611, %v1620
        %v1623 = vmul.f32 %v1613, %v1621
        %v1624 = vpack.c.bf16 %v1623, %v1622
        %1626 = vrot.lane.b32.xlu0 %v1507, 96
        %v1627 = vpop.permute.xlu0 %1626
        %v1630 = vsel %vm1214, %v1624, 0
        %1632 = vmatpush.bf16.msra.mxu0 0
        %1633 = vmatpush.bf16.msra.mxu0 0
        %1634 = vmatpush.bf16.msra.mxu0 0
        %1635 = vmatpush.bf16.msra.mxu0 0
        %1636 = vmatpush.bf16.msra.mxu0 0
        %1637 = vmatpush.bf16.msra.mxu0 0
        %1638 = vmatpush.bf16.msra.mxu0 0
        %1639 = vmatpush.bf16.msra.mxu0 %v1627
        %1640 = vmatmul.bf16.gmra.mxu0 %v1630
        %v1641 = vpop.f32.mrf.mxu0
        %v1642 = vadd.f32 0.0, %v1641
        %v1643 = vpop.f32.mrf.mxu0
        %v1644 = vadd.f32 0.0, %v1643
        %1645 = vdwg.mxu0
        %1646 = vrot.lane.b32.xlu0 %v1505, 64
        %v1647 = vpop.permute.xlu0 %1646
        %1648 = vrot.lane.b32.xlu0 %v1506, 64
        %v1649 = vpop.permute.xlu0 %1648
        %v1651 = vsel %vm1189, %v1647, 0
        %v1654 = vsel %vm1189, %v1649, 0
        %1656 = vmatpush.bf16.xpose.msra.mxu0 0
        %1657 = vmatpush.bf16.xpose.msra.mxu0 0
        %1658 = vmatpush.bf16.xpose.msra.mxu0 0
        %1659 = vmatpush.bf16.xpose.msra.mxu0 0
        %1660 = vmatpush.bf16.xpose.msra.mxu0 0
        %1661 = vmatpush.bf16.xpose.msra.mxu0 0
        %1662 = vmatpush.bf16.xpose.msra.mxu0 0
        %1663 = vmatpush.bf16.xpose.msra.mxu0 %v1654
        %1664 = vmatmul.bf16.gmra.mxu0 %v1651
        %v1665 = vpop.f32.mrf.mxu0
        %v1666 = vadd.f32 0.0, %v1665
        %v1667 = vpop.f32.mrf.mxu0
        %v1668 = vadd.f32 0.0, %v1667
        %1669 = vdwg.mxu0
        %v1670 = vmul.f32 %v1666, 0.17677669
        %v1671 = vmul.f32 %v1668, 0.17677669
        %v1672 = vsel %vm1184, %v1670, -1e+30
        %v1673 = vsel %vm1185, %v1671, -1e+30
        %v1674 = vsel %vm1214, %v1672, -inf
        %1675 = vmax.xlane.f32.xlu0 %v1674
        %v1676 = vpop.xlane.xlu0 %1675
        %v1677 = vsel %vm1214, %v1673, -inf
        %1678 = vmax.xlane.f32.xlu0 %v1677
        %v1679 = vpop.xlane.xlu0 %1678
        %v1680 = vsub.f32 %v1672, %v1676
        %v1681 = vsub.f32 %v1673, %v1679
        %v1682 = vmul.f32 %v1680, 1.442695
        %v1683 = vpow.pop %v1682
        %v1684 = vmul.f32 %v1681, 1.442695
        %v1685 = vpow.pop %v1684
        %v1686 = vsel %vm1214, %v1683, 0.0
        %1687 = vadd.xlane.f32.xlu0 %v1686
        %v1688 = vpop.xlane.xlu0 %1687
        %v1689 = vsel %vm1214, %v1685, 0.0
        %1690 = vadd.xlane.f32.xlu0 %v1689
        %v1691 = vpop.xlane.xlu0 %1690
        %v1692 = vrcp.pop %v1688
        %v1693 = vrcp.pop %v1691
        %v1694 = vmul.f32 %v1683, %v1692
        %v1695 = vmul.f32 %v1685, %v1693
        %v1696 = vpack.c.bf16 %v1695, %v1694
        %1697 = vrot.lane.b32.xlu0 %v1507, 64
        %v1698 = vpop.permute.xlu0 %1697
        %v1701 = vsel %vm1214, %v1696, 0
        %1703 = vmatpush.bf16.msra.mxu0 0
        %1704 = vmatpush.bf16.msra.mxu0 0
        %1705 = vmatpush.bf16.msra.mxu0 0
        %1706 = vmatpush.bf16.msra.mxu0 0
        %1707 = vmatpush.bf16.msra.mxu0 0
        %1708 = vmatpush.bf16.msra.mxu0 0
        %1709 = vmatpush.bf16.msra.mxu0 0
        %1710 = vmatpush.bf16.msra.mxu0 %v1698
        %1711 = vmatmul.bf16.gmra.mxu0 %v1701
        %v1712 = vpop.f32.mrf.mxu0
        %v1713 = vadd.f32 0.0, %v1712
        %v1714 = vpop.f32.mrf.mxu0
        %v1715 = vadd.f32 0.0, %v1714
        %1716 = vdwg.mxu0
        %1717 = vrot.lane.b32.xlu0 %v1505, 32
        %v1718 = vpop.permute.xlu0 %1717
        %1719 = vrot.lane.b32.xlu0 %v1506, 32
        %v1720 = vpop.permute.xlu0 %1719
        %v1722 = vsel %vm1189, %v1718, 0
        %v1725 = vsel %vm1189, %v1720, 0
        %1727 = vmatpush.bf16.xpose.msra.mxu0 0
        %1728 = vmatpush.bf16.xpose.msra.mxu0 0
        %1729 = vmatpush.bf16.xpose.msra.mxu0 0
        %1730 = vmatpush.bf16.xpose.msra.mxu0 0
        %1731 = vmatpush.bf16.xpose.msra.mxu0 0
        %1732 = vmatpush.bf16.xpose.msra.mxu0 0
        %1733 = vmatpush.bf16.xpose.msra.mxu0 0
        %1734 = vmatpush.bf16.xpose.msra.mxu0 %v1725
        %1735 = vmatmul.bf16.gmra.mxu0 %v1722
        %v1736 = vpop.f32.mrf.mxu0
        %v1737 = vadd.f32 0.0, %v1736
        %v1738 = vpop.f32.mrf.mxu0
        %v1739 = vadd.f32 0.0, %v1738
        %1740 = vdwg.mxu0
        %v1741 = vmul.f32 %v1737, 0.17677669
        %v1742 = vmul.f32 %v1739, 0.17677669
        %v1743 = vsel %vm1184, %v1741, -1e+30
        %v1744 = vsel %vm1185, %v1742, -1e+30
        %v1745 = vsel %vm1214, %v1743, -inf
        %1746 = vmax.xlane.f32.xlu0 %v1745
        %v1747 = vpop.xlane.xlu0 %1746
        %v1748 = vsel %vm1214, %v1744, -inf
        %1749 = vmax.xlane.f32.xlu0 %v1748
        %v1750 = vpop.xlane.xlu0 %1749
        %v1751 = vsub.f32 %v1743, %v1747
        %v1752 = vsub.f32 %v1744, %v1750
        %v1753 = vmul.f32 %v1751, 1.442695
        %v1754 = vpow.pop %v1753
        %v1755 = vmul.f32 %v1752, 1.442695
        %v1756 = vpow.pop %v1755
        %v1757 = vsel %vm1214, %v1754, 0.0
        %1758 = vadd.xlane.f32.xlu0 %v1757
        %v1759 = vpop.xlane.xlu0 %1758
        %v1760 = vsel %vm1214, %v1756, 0.0
        %1761 = vadd.xlane.f32.xlu0 %v1760
        %v1762 = vpop.xlane.xlu0 %1761
        %v1763 = vrcp.pop %v1759
        %v1764 = vrcp.pop %v1762
        %v1765 = vmul.f32 %v1754, %v1763
        %v1766 = vmul.f32 %v1756, %v1764
        %v1767 = vpack.c.bf16 %v1766, %v1765
        %1768 = vrot.lane.b32.xlu0 %v1507, 32
        %v1769 = vpop.permute.xlu0 %1768
        %v1772 = vsel %vm1214, %v1767, 0
        %1774 = vmatpush.bf16.msra.mxu0 0
        %1775 = vmatpush.bf16.msra.mxu0 0
        %1776 = vmatpush.bf16.msra.mxu0 0
        %1777 = vmatpush.bf16.msra.mxu0 0
        %1778 = vmatpush.bf16.msra.mxu0 0
        %1779 = vmatpush.bf16.msra.mxu0 0
        %1780 = vmatpush.bf16.msra.mxu0 0
        %1781 = vmatpush.bf16.msra.mxu0 %v1769
        %1782 = vmatmul.bf16.gmra.mxu0 %v1772
        %v1783 = vpop.f32.mrf.mxu0
        %v1784 = vadd.f32 0.0, %v1783
        %v1785 = vpop.f32.mrf.mxu0
        %v1786 = vadd.f32 0.0, %v1785
        %1787 = vdwg.mxu0
        %1790 = vrot.lane.b32.xlu0 %v1642, 32
        %v1791 = vpop.permute.xlu0 %1790
        %1792 = vrot.lane.b32.xlu0 %v1644, 32
        %v1793 = vpop.permute.xlu0 %1792
        %1798 = vrot.lane.b32.xlu0 %v1713, 64
        %v1799 = vpop.permute.xlu0 %1798
        %1800 = vrot.lane.b32.xlu0 %v1715, 64
        %v1801 = vpop.permute.xlu0 %1800
        %1806 = vrot.lane.b32.xlu0 %v1784, 96
        %v1807 = vpop.permute.xlu0 %1806
        %1808 = vrot.lane.b32.xlu0 %v1786, 96
        %v1809 = vpop.permute.xlu0 %1808
        %v1812 = vsel %vm1189, %v1568, %v1791
        %v1813 = vsel %vm1189, %v1570, %v1793
        %v1814 = vsel %vm1497, %v1812, %v1799
        %v1815 = vsel %vm1497, %v1813, %v1801
        %v1816 = vsel %vm1500, %v1814, %v1807
        %v1817 = vsel %vm1500, %v1815, %v1809
        %1818 = vst [vmem:[#allocation3 + $0x10] sm:$0xff] %v1816
        %1819 = vst [vmem:[#allocation3 + $0x18] sm:$0xff] %v1817
        %v1820 = vld [vmem:[#allocation3] sm:$0xff]
        %v1821 = vld [vmem:[#allocation3 + $0x8] sm:$0xff]
        %v1822 = vld [vmem:[#allocation3 + $0x10] sm:$0xff]
        %v1823 = vld [vmem:[#allocation3 + $0x18] sm:$0xff]
        %v1824 = vpack.c.bf16 %v1821, %v1820
        %v1825 = vpack.c.bf16 %v1823, %v1822
        %v1826 = vld [vmem:[%s701] sm:$0xf]
        %v1827 = vld [vmem:[%s701 + $0x4] sm:$0xf]
        %v1828 = vld [vmem:[%s701 + $0x8] sm:$0xf]
        %v1829 = vld [vmem:[%s701 + $0xc] sm:$0xf]
        %v1830 = vld [vmem:[%s701 + $0x10] sm:$0xf]
        %v1831 = vld [vmem:[%s701 + $0x14] sm:$0xf]
        %v1832 = vld [vmem:[%s701 + $0x18] sm:$0xf]
        %v1833 = vld [vmem:[%s701 + $0x1c] sm:$0xf]
        %v1834 = vld [vmem:[%s701 + $0x20] sm:$0xf]
        %v1835 = vld [vmem:[%s701 + $0x24] sm:$0xf]
        %v1836 = vld [vmem:[%s701 + $0x28] sm:$0xf]
        %v1837 = vld [vmem:[%s701 + $0x2c] sm:$0xf]
        %v1838 = vld [vmem:[%s701 + $0x30] sm:$0xf]
        %v1839 = vld [vmem:[%s701 + $0x34] sm:$0xf]
        %v1840 = vld [vmem:[%s701 + $0x38] sm:$0xf]
        %v1841 = vld [vmem:[%s701 + $0x3c] sm:$0xf]
        %v1842 = vld [vmem:[%s710] sm:$0x1]
        %v1844 = vperm.slane %v1842, 0
        %v1862 = vunpack.c.l.b16 %v1826
        %v1863 = vunpack.c.l.b16 %v1827
        %v1864 = vunpack.c.l.b16 %v1828
        %v1865 = vunpack.c.l.b16 %v1829
        %v1866 = vunpack.c.l.b16 %v1830
        %v1867 = vunpack.c.l.b16 %v1831
        %v1868 = vunpack.c.l.b16 %v1832
        %v1869 = vunpack.c.l.b16 %v1833
        %v1870 = vunpack.c.l.b16 %v1834
        %v1871 = vunpack.c.l.b16 %v1835
        %v1872 = vunpack.c.l.b16 %v1836
        %v1873 = vunpack.c.l.b16 %v1837
        %v1874 = vunpack.c.l.b16 %v1838
        %v1875 = vunpack.c.l.b16 %v1839
        %v1876 = vunpack.c.l.b16 %v1840
        %v1877 = vunpack.c.l.b16 %v1841
        %v1878 = vpack.c.b16 %v1863, %v1862
        %v1879 = vpack.c.b16 %v1865, %v1864
        %v1880 = vpack.c.b16 %v1867, %v1866
        %v1881 = vpack.c.b16 %v1869, %v1868
        %v1882 = vpack.c.b16 %v1871, %v1870
        %v1883 = vpack.c.b16 %v1873, %v1872
        %v1884 = vpack.c.b16 %v1875, %v1874
        %v1885 = vpack.c.b16 %v1877, %v1876
        %1894 = vmatpush.bf16.msra.mxu0 %v1885
        %1895 = vmatpush.bf16.msra.mxu0 %v1884
        %1896 = vmatpush.bf16.msra.mxu0 %v1883
        %1897 = vmatpush.bf16.msra.mxu0 %v1882
        %1898 = vmatpush.bf16.msra.mxu0 %v1881
        %1899 = vmatpush.bf16.msra.mxu0 %v1880
        %1900 = vmatpush.bf16.msra.mxu0 %v1879
        %1901 = vmatpush.bf16.msra.mxu0 %v1878
        %1902 = vmatmul.bf16.gmra.mxu0 %v1824
        %v1903 = vpop.f32.mrf.mxu0
        %v1904 = vadd.f32 %v1844, %v1903
        %v1905 = vpop.f32.mrf.mxu0
        %v1906 = vadd.f32 %v1844, %v1905
        %1907 = vmatmul.bf16.gmra.mxu0 %v1825
        %v1908 = vpop.f32.mrf.mxu0
        %v1909 = vadd.f32 %v1844, %v1908
        %v1910 = vpop.f32.mrf.mxu0
        %v1911 = vadd.f32 %v1844, %v1910
        %1912 = vdwg.mxu0
        %v1913 = vadd.f32 %v853, %v1904
        %v1914 = vadd.f32 %v854, %v1906
        %v1915 = vadd.f32 %v855, %v1909
        %v1916 = vadd.f32 %v856, %v1911
        %v1917 = vld [vmem:[%s719] sm:$0x1]
        %v1918 = vld [vmem:[%s728] sm:$0x1]
        %1919 = vadd.xlane.f32.xlu0 %v1913
        %v1920 = vpop.xlane.xlu0 %1919
        %1921 = vadd.xlane.f32.xlu0 %v1914
        %v1922 = vpop.xlane.xlu0 %1921
        %1923 = vadd.xlane.f32.xlu0 %v1915
        %v1924 = vpop.xlane.xlu0 %1923
        %1925 = vadd.xlane.f32.xlu0 %v1916
        %v1926 = vpop.xlane.xlu0 %1925
        %v1927 = vmul.f32 %v1920, %v873
        %v1928 = vmul.f32 %v1922, %v873
        %v1929 = vmul.f32 %v1924, %v873
        %v1930 = vmul.f32 %v1926, %v873
        %v1931 = vsub.f32 %v1913, %v1927
        %v1932 = vsub.f32 %v1914, %v1928
        %v1933 = vsub.f32 %v1915, %v1929
        %v1934 = vsub.f32 %v1916, %v1930
        %v1935 = vmul.f32 %v1931, %v1931
        %v1936 = vmul.f32 %v1932, %v1932
        %v1937 = vmul.f32 %v1933, %v1933
        %v1938 = vmul.f32 %v1934, %v1934
        %1939 = vadd.xlane.f32.xlu0 %v1935
        %v1940 = vpop.xlane.xlu0 %1939
        %1941 = vadd.xlane.f32.xlu0 %v1936
        %v1942 = vpop.xlane.xlu0 %1941
        %1943 = vadd.xlane.f32.xlu0 %v1937
        %v1944 = vpop.xlane.xlu0 %1943
        %1945 = vadd.xlane.f32.xlu0 %v1938
        %v1946 = vpop.xlane.xlu0 %1945
        %v1947 = vmul.f32 %v1940, %v873
        %v1948 = vmul.f32 %v1942, %v873
        %v1949 = vmul.f32 %v1944, %v873
        %v1950 = vmul.f32 %v1946, %v873
        %v1951 = vadd.f32 %v1947, 1e-05
        %v1952 = vadd.f32 %v1948, 1e-05
        %v1953 = vadd.f32 %v1949, 1e-05
        %v1954 = vadd.f32 %v1950, 1e-05
        %v1955 = vrsqrt.pop %v1951
        %v1956 = vmul.f32 %v1955, %v1951
        %v1957 = vmul.f32 %v1956, %v1955
        %v1958 = vmul.f32 0.5, %v1957
        %v1959 = vsub.f32 1.5, %v1958
        %v1960 = vmul.f32 %v1955, %v1959
        %vm1961 = vweird.f32 %v1951
        %vm1962 = vweird.f32 %v1955
        %vm1963 = vmor %vm1961, %vm1962
        %v1964 = vsel %vm1963, %v1955, %v1960
        %v1965 = vrsqrt.pop %v1952
        %v1966 = vmul.f32 %v1965, %v1952
        %v1967 = vmul.f32 %v1966, %v1965
        %v1968 = vmul.f32 0.5, %v1967
        %v1969 = vsub.f32 1.5, %v1968
        %v1970 = vmul.f32 %v1965, %v1969
        %vm1971 = vweird.f32 %v1952
        %vm1972 = vweird.f32 %v1965
        %vm1973 = vmor %vm1971, %vm1972
        %v1974 = vsel %vm1973, %v1965, %v1970
        %v1975 = vrsqrt.pop %v1953
        %v1976 = vmul.f32 %v1975, %v1953
        %v1977 = vmul.f32 %v1976, %v1975
        %v1978 = vmul.f32 0.5, %v1977
        %v1979 = vsub.f32 1.5, %v1978
        %v1980 = vmul.f32 %v1975, %v1979
        %vm1981 = vweird.f32 %v1953
        %vm1982 = vweird.f32 %v1975
        %vm1983 = vmor %vm1981, %vm1982
        %v1984 = vsel %vm1983, %v1975, %v1980
        %v1985 = vrsqrt.pop %v1954
        %v1986 = vmul.f32 %v1985, %v1954
        %v1987 = vmul.f32 %v1986, %v1985
        %v1988 = vmul.f32 0.5, %v1987
        %v1989 = vsub.f32 1.5, %v1988
        %v1990 = vmul.f32 %v1985, %v1989
        %vm1991 = vweird.f32 %v1954
        %vm1992 = vweird.f32 %v1985
        %vm1993 = vmor %vm1991, %vm1992
        %v1994 = vsel %vm1993, %v1985, %v1990
        %v1995 = vmul.f32 %v1931, %v1964
        %v1996 = vmul.f32 %v1932, %v1974
        %v1997 = vmul.f32 %v1933, %v1984
        %v1998 = vmul.f32 %v1934, %v1994
        %v2000 = vperm.slane %v1917, 0
        %v2002 = vmul.f32 %v1995, %v2000
        %v2003 = vmul.f32 %v1996, %v2000
        %v2004 = vmul.f32 %v1997, %v2000
        %v2005 = vmul.f32 %v1998, %v2000
        %v2007 = vperm.slane %v1918, 0
        %v2009 = vadd.f32 %v2002, %v2007
        %v2010 = vadd.f32 %v2003, %v2007
        %v2011 = vadd.f32 %v2004, %v2007
        %v2012 = vadd.f32 %v2005, %v2007
        %v2013 = vpack.c.bf16 %v2010, %v2009
        %v2014 = vpack.c.bf16 %v2012, %v2011
        %v2015 = vld [vmem:[%s738] sm:$0xff]
        %v2016 = vld [vmem:[%s738 + $0x8] sm:$0xff]
        %v2017 = vld [vmem:[%s738 + $0x10] sm:$0xff]
        %v2018 = vld [vmem:[%s738 + $0x18] sm:$0xff]
        %v2019 = vld [vmem:[%s738 + $0x20] sm:$0xff]
        %v2020 = vld [vmem:[%s738 + $0x28] sm:$0xff]
        %v2021 = vld [vmem:[%s738 + $0x30] sm:$0xff]
        %v2022 = vld [vmem:[%s738 + $0x38] sm:$0xff]
        %v2023 = vld [vmem:[%s738 + $0x40] sm:$0xff]
        %v2024 = vld [vmem:[%s738 + $0x48] sm:$0xff]
        %v2025 = vld [vmem:[%s738 + $0x50] sm:$0xff]
        %v2026 = vld [vmem:[%s738 + $0x58] sm:$0xff]
        %v2027 = vld [vmem:[%s738 + $0x60] sm:$0xff]
        %v2028 = vld [vmem:[%s738 + $0x68] sm:$0xff]
        %v2029 = vld [vmem:[%s738 + $0x70] sm:$0xff]
        %v2030 = vld [vmem:[%s738 + $0x78] sm:$0xff]
        %v2031 = vld [vmem:[%s738 + $0x80] sm:$0xff]
        %v2032 = vld [vmem:[%s738 + $0x88] sm:$0xff]
        %v2033 = vld [vmem:[%s738 + $0x90] sm:$0xff]
        %v2034 = vld [vmem:[%s738 + $0x98] sm:$0xff]
        %v2035 = vld [vmem:[%s738 + $0xa0] sm:$0xff]
        %v2036 = vld [vmem:[%s738 + $0xa8] sm:$0xff]
        %v2037 = vld [vmem:[%s738 + $0xb0] sm:$0xff]
        %v2038 = vld [vmem:[%s738 + $0xb8] sm:$0xff]
        %v2039 = vld [vmem:[%s738 + $0xc0] sm:$0xff]
        %v2040 = vld [vmem:[%s738 + $0xc8] sm:$0xff]
        %v2041 = vld [vmem:[%s738 + $0xd0] sm:$0xff]
        %v2042 = vld [vmem:[%s738 + $0xd8] sm:$0xff]
        %v2043 = vld [vmem:[%s738 + $0xe0] sm:$0xff]
        %v2044 = vld [vmem:[%s738 + $0xe8] sm:$0xff]
        %v2045 = vld [vmem:[%s738 + $0xf0] sm:$0xff]
        %v2046 = vld [vmem:[%s738 + $0xf8] sm:$0xff]
        %v2047 = vld [vmem:[%s835] sm:$0xf]
        %v2049 = vperm.slane %v2047, 0
        %v2050 = vperm.slane %v2047, 1
        %v2051 = vperm.slane %v2047, 2
        %v2052 = vperm.slane %v2047, 3
        %v2089 = vunpack.c.l.b16 %v2015
        %v2090 = vunpack.c.h.b16 %v2015
        %v2091 = vunpack.c.l.b16 %v2016
        %v2092 = vunpack.c.h.b16 %v2016
        %v2093 = vunpack.c.l.b16 %v2017
        %v2094 = vunpack.c.h.b16 %v2017
        %v2095 = vunpack.c.l.b16 %v2018
        %v2096 = vunpack.c.h.b16 %v2018
        %v2097 = vunpack.c.l.b16 %v2019
        %v2098 = vunpack.c.h.b16 %v2019
        %v2099 = vunpack.c.l.b16 %v2020
        %v2100 = vunpack.c.h.b16 %v2020
        %v2101 = vunpack.c.l.b16 %v2021
        %v2102 = vunpack.c.h.b16 %v2021
        %v2103 = vunpack.c.l.b16 %v2022
        %v2104 = vunpack.c.h.b16 %v2022
        %v2105 = vunpack.c.l.b16 %v2023
        %v2106 = vunpack.c.h.b16 %v2023
        %v2107 = vunpack.c.l.b16 %v2024
        %v2108 = vunpack.c.h.b16 %v2024
        %v2109 = vunpack.c.l.b16 %v2025
        %v2110 = vunpack.c.h.b16 %v2025
        %v2111 = vunpack.c.l.b16 %v2026
        %v2112 = vunpack.c.h.b16 %v2026
        %v2113 = vunpack.c.l.b16 %v2027
        %v2114 = vunpack.c.h.b16 %v2027
        %v2115 = vunpack.c.l.b16 %v2028
        %v2116 = vunpack.c.h.b16 %v2028
        %v2117 = vunpack.c.l.b16 %v2029
        %v2118 = vunpack.c.h.b16 %v2029
        %v2119 = vunpack.c.l.b16 %v2030
        %v2120 = vunpack.c.h.b16 %v2030
        %v2121 = vunpack.c.l.b16 %v2031
        %v2122 = vunpack.c.h.b16 %v2031
        %v2123 = vunpack.c.l.b16 %v2032
        %v2124 = vunpack.c.h.b16 %v2032
        %v2125 = vunpack.c.l.b16 %v2033
        %v2126 = vunpack.c.h.b16 %v2033
        %v2127 = vunpack.c.l.b16 %v2034
        %v2128 = vunpack.c.h.b16 %v2034
        %v2129 = vunpack.c.l.b16 %v2035
        %v2130 = vunpack.c.h.b16 %v2035
        %v2131 = vunpack.c.l.b16 %v2036
        %v2132 = vunpack.c.h.b16 %v2036
        %v2133 = vunpack.c.l.b16 %v2037
        %v2134 = vunpack.c.h.b16 %v2037
        %v2135 = vunpack.c.l.b16 %v2038
        %v2136 = vunpack.c.h.b16 %v2038
        %v2137 = vunpack.c.l.b16 %v2039
        %v2138 = vunpack.c.h.b16 %v2039
        %v2139 = vunpack.c.l.b16 %v2040
        %v2140 = vunpack.c.h.b16 %v2040
        %v2141 = vunpack.c.l.b16 %v2041
        %v2142 = vunpack.c.h.b16 %v2041
        %v2143 = vunpack.c.l.b16 %v2042
        %v2144 = vunpack.c.h.b16 %v2042
        %v2145 = vunpack.c.l.b16 %v2043
        %v2146 = vunpack.c.h.b16 %v2043
        %v2147 = vunpack.c.l.b16 %v2044
        %v2148 = vunpack.c.h.b16 %v2044
        %v2149 = vunpack.c.l.b16 %v2045
        %v2150 = vunpack.c.h.b16 %v2045
        %v2151 = vunpack.c.l.b16 %v2046
        %v2152 = vunpack.c.h.b16 %v2046
        %v2153 = vpack.c.b16 %v2093, %v2089
        %v2154 = vpack.c.b16 %v2094, %v2090
        %v2155 = vpack.c.b16 %v2095, %v2091
        %v2156 = vpack.c.b16 %v2096, %v2092
        %v2157 = vpack.c.b16 %v2101, %v2097
        %v2158 = vpack.c.b16 %v2102, %v2098
        %v2159 = vpack.c.b16 %v2103, %v2099
        %v2160 = vpack.c.b16 %v2104, %v2100
        %v2161 = vpack.c.b16 %v2109, %v2105
        %v2162 = vpack.c.b16 %v2110, %v2106
        %v2163 = vpack.c.b16 %v2111, %v2107
        %v2164 = vpack.c.b16 %v2112, %v2108
        %v2165 = vpack.c.b16 %v2117, %v2113
        %v2166 = vpack.c.b16 %v2118, %v2114
        %v2167 = vpack.c.b16 %v2119, %v2115
        %v2168 = vpack.c.b16 %v2120, %v2116
        %v2169 = vpack.c.b16 %v2125, %v2121
        %v2170 = vpack.c.b16 %v2126, %v2122
        %v2171 = vpack.c.b16 %v2127, %v2123
        %v2172 = vpack.c.b16 %v2128, %v2124
        %v2173 = vpack.c.b16 %v2133, %v2129
        %v2174 = vpack.c.b16 %v2134, %v2130
        %v2175 = vpack.c.b16 %v2135, %v2131
        %v2176 = vpack.c.b16 %v2136, %v2132
        %v2177 = vpack.c.b16 %v2141, %v2137
        %v2178 = vpack.c.b16 %v2142, %v2138
        %v2179 = vpack.c.b16 %v2143, %v2139
        %v2180 = vpack.c.b16 %v2144, %v2140
        %v2181 = vpack.c.b16 %v2149, %v2145
        %v2182 = vpack.c.b16 %v2150, %v2146
        %v2183 = vpack.c.b16 %v2151, %v2147
        %v2184 = vpack.c.b16 %v2152, %v2148
        %2217 = vmatpush.bf16.msra.mxu0 %v2181
        %2218 = vmatpush.bf16.msra.mxu0 %v2177
        %2219 = vmatpush.bf16.msra.mxu0 %v2173
        %2220 = vmatpush.bf16.msra.mxu0 %v2169
        %2221 = vmatpush.bf16.msra.mxu0 %v2165
        %2222 = vmatpush.bf16.msra.mxu0 %v2161
        %2223 = vmatpush.bf16.msra.mxu0 %v2157
        %2224 = vmatpush.bf16.msra.mxu0 %v2153
        %2225 = vmatmul.bf16.gmra.mxu0 %v2013
        %v2226 = vpop.f32.mrf.mxu0
        %v2227 = vadd.f32 %v2049, %v2226
        %v2228 = vpop.f32.mrf.mxu0
        %v2229 = vadd.f32 %v2049, %v2228
        %2230 = vmatmul.bf16.gmra.mxu0 %v2014
        %v2231 = vpop.f32.mrf.mxu0
        %v2232 = vadd.f32 %v2049, %v2231
        %v2233 = vpop.f32.mrf.mxu0
        %v2234 = vadd.f32 %v2049, %v2233
        %2235 = vdwg.mxu0
        %2236 = vmatpush.bf16.msra.mxu0 %v2182
        %2237 = vmatpush.bf16.msra.mxu0 %v2178
        %2238 = vmatpush.bf16.msra.mxu0 %v2174
        %2239 = vmatpush.bf16.msra.mxu0 %v2170
        %2240 = vmatpush.bf16.msra.mxu0 %v2166
        %2241 = vmatpush.bf16.msra.mxu0 %v2162
        %2242 = vmatpush.bf16.msra.mxu0 %v2158
        %2243 = vmatpush.bf16.msra.mxu0 %v2154
        %2244 = vmatmul.bf16.gmra.mxu0 %v2013
        %v2245 = vpop.f32.mrf.mxu0
        %v2246 = vadd.f32 %v2050, %v2245
        %v2247 = vpop.f32.mrf.mxu0
        %v2248 = vadd.f32 %v2050, %v2247
        %2249 = vmatmul.bf16.gmra.mxu0 %v2014
        %v2250 = vpop.f32.mrf.mxu0
        %v2251 = vadd.f32 %v2050, %v2250
        %v2252 = vpop.f32.mrf.mxu0
        %v2253 = vadd.f32 %v2050, %v2252
        %2254 = vdwg.mxu0
        %2255 = vmatpush.bf16.msra.mxu0 %v2183
        %2256 = vmatpush.bf16.msra.mxu0 %v2179
        %2257 = vmatpush.bf16.msra.mxu0 %v2175
        %2258 = vmatpush.bf16.msra.mxu0 %v2171
        %2259 = vmatpush.bf16.msra.mxu0 %v2167
        %2260 = vmatpush.bf16.msra.mxu0 %v2163
        %2261 = vmatpush.bf16.msra.mxu0 %v2159
        %2262 = vmatpush.bf16.msra.mxu0 %v2155
        %2263 = vmatmul.bf16.gmra.mxu0 %v2013
        %v2264 = vpop.f32.mrf.mxu0
        %v2265 = vadd.f32 %v2051, %v2264
        %v2266 = vpop.f32.mrf.mxu0
        %v2267 = vadd.f32 %v2051, %v2266
        %2268 = vmatmul.bf16.gmra.mxu0 %v2014
        %v2269 = vpop.f32.mrf.mxu0
        %v2270 = vadd.f32 %v2051, %v2269
        %v2271 = vpop.f32.mrf.mxu0
        %v2272 = vadd.f32 %v2051, %v2271
        %2273 = vdwg.mxu0
        %2274 = vmatpush.bf16.msra.mxu0 %v2184
        %2275 = vmatpush.bf16.msra.mxu0 %v2180
        %2276 = vmatpush.bf16.msra.mxu0 %v2176
        %2277 = vmatpush.bf16.msra.mxu0 %v2172
        %2278 = vmatpush.bf16.msra.mxu0 %v2168
        %2279 = vmatpush.bf16.msra.mxu0 %v2164
        %2280 = vmatpush.bf16.msra.mxu0 %v2160
        %2281 = vmatpush.bf16.msra.mxu0 %v2156
        %2282 = vmatmul.bf16.gmra.mxu0 %v2013
        %v2283 = vpop.f32.mrf.mxu0
        %v2284 = vadd.f32 %v2052, %v2283
        %v2285 = vpop.f32.mrf.mxu0
        %v2286 = vadd.f32 %v2052, %v2285
        %2287 = vmatmul.bf16.gmra.mxu0 %v2014
        %v2288 = vpop.f32.mrf.mxu0
        %v2289 = vadd.f32 %v2052, %v2288
        %v2290 = vpop.f32.mrf.mxu0
        %v2291 = vadd.f32 %v2052, %v2290
        %2292 = vdwg.mxu0
        %v2293 = vmax.f32 %v2227, 0.0
        %v2294 = vmax.f32 %v2246, 0.0
        %v2295 = vmax.f32 %v2265, 0.0
        %v2296 = vmax.f32 %v2284, 0.0
        %v2297 = vmax.f32 %v2229, 0.0
        %v2298 = vmax.f32 %v2248, 0.0
        %v2299 = vmax.f32 %v2267, 0.0
        %v2300 = vmax.f32 %v2286, 0.0
        %v2301 = vmax.f32 %v2232, 0.0
        %v2302 = vmax.f32 %v2251, 0.0
        %v2303 = vmax.f32 %v2270, 0.0
        %v2304 = vmax.f32 %v2289, 0.0
        %v2305 = vmax.f32 %v2234, 0.0
        %v2306 = vmax.f32 %v2253, 0.0
        %v2307 = vmax.f32 %v2272, 0.0
        %v2308 = vmax.f32 %v2291, 0.0
        %v2309 = vpack.c.bf16 %v2297, %v2293
        %v2310 = vpack.c.bf16 %v2298, %v2294
        %v2311 = vpack.c.bf16 %v2299, %v2295
        %v2312 = vpack.c.bf16 %v2300, %v2296
        %v2313 = vpack.c.bf16 %v2305, %v2301
        %v2314 = vpack.c.bf16 %v2306, %v2302
        %v2315 = vpack.c.bf16 %v2307, %v2303
        %v2316 = vpack.c.bf16 %v2308, %v2304
        %v2317 = vld [vmem:[%s748] sm:$0xf]
        %v2318 = vld [vmem:[%s748 + $0x4] sm:$0xf]
        %v2319 = vld [vmem:[%s748 + $0x8] sm:$0xf]
        %v2320 = vld [vmem:[%s748 + $0xc] sm:$0xf]
        %v2321 = vld [vmem:[%s748 + $0x10] sm:$0xf]
        %v2322 = vld [vmem:[%s748 + $0x14] sm:$0xf]
        %v2323 = vld [vmem:[%s748 + $0x18] sm:$0xf]
        %v2324 = vld [vmem:[%s748 + $0x1c] sm:$0xf]
        %v2325 = vld [vmem:[%s748 + $0x20] sm:$0xf]
        %v2326 = vld [vmem:[%s748 + $0x24] sm:$0xf]
        %v2327 = vld [vmem:[%s748 + $0x28] sm:$0xf]
        %v2328 = vld [vmem:[%s748 + $0x2c] sm:$0xf]
        %v2329 = vld [vmem:[%s748 + $0x30] sm:$0xf]
        %v2330 = vld [vmem:[%s748 + $0x34] sm:$0xf]
        %v2331 = vld [vmem:[%s748 + $0x38] sm:$0xf]
        %v2332 = vld [vmem:[%s748 + $0x3c] sm:$0xf]
        %v2333 = vld [vmem:[%s748 + $0x40] sm:$0xf]
        %v2334 = vld [vmem:[%s748 + $0x44] sm:$0xf]
        %v2335 = vld [vmem:[%s748 + $0x48] sm:$0xf]
        %v2336 = vld [vmem:[%s748 + $0x4c] sm:$0xf]
        %v2337 = vld [vmem:[%s748 + $0x50] sm:$0xf]
        %v2338 = vld [vmem:[%s748 + $0x54] sm:$0xf]
        %v2339 = vld [vmem:[%s748 + $0x58] sm:$0xf]
        %v2340 = vld [vmem:[%s748 + $0x5c] sm:$0xf]
        %v2341 = vld [vmem:[%s748 + $0x60] sm:$0xf]
        %v2342 = vld [vmem:[%s748 + $0x64] sm:$0xf]
        %v2343 = vld [vmem:[%s748 + $0x68] sm:$0xf]
        %v2344 = vld [vmem:[%s748 + $0x6c] sm:$0xf]
        %v2345 = vld [vmem:[%s748 + $0x70] sm:$0xf]
        %v2346 = vld [vmem:[%s748 + $0x74] sm:$0xf]
        %v2347 = vld [vmem:[%s748 + $0x78] sm:$0xf]
        %v2348 = vld [vmem:[%s748 + $0x7c] sm:$0xf]
        %v2349 = vld [vmem:[%s748 + $0x80] sm:$0xf]
        %v2350 = vld [vmem:[%s748 + $0x84] sm:$0xf]
        %v2351 = vld [vmem:[%s748 + $0x88] sm:$0xf]
        %v2352 = vld [vmem:[%s748 + $0x8c] sm:$0xf]
        %v2353 = vld [vmem:[%s748 + $0x90] sm:$0xf]
        %v2354 = vld [vmem:[%s748 + $0x94] sm:$0xf]
        %v2355 = vld [vmem:[%s748 + $0x98] sm:$0xf]
        %v2356 = vld [vmem:[%s748 + $0x9c] sm:$0xf]
        %v2357 = vld [vmem:[%s748 + $0xa0] sm:$0xf]
        %v2358 = vld [vmem:[%s748 + $0xa4] sm:$0xf]
        %v2359 = vld [vmem:[%s748 + $0xa8] sm:$0xf]
        %v2360 = vld [vmem:[%s748 + $0xac] sm:$0xf]
        %v2361 = vld [vmem:[%s748 + $0xb0] sm:$0xf]
        %v2362 = vld [vmem:[%s748 + $0xb4] sm:$0xf]
        %v2363 = vld [vmem:[%s748 + $0xb8] sm:$0xf]
        %v2364 = vld [vmem:[%s748 + $0xbc] sm:$0xf]
        %v2365 = vld [vmem:[%s748 + $0xc0] sm:$0xf]
        %v2366 = vld [vmem:[%s748 + $0xc4] sm:$0xf]
        %v2367 = vld [vmem:[%s748 + $0xc8] sm:$0xf]
        %v2368 = vld [vmem:[%s748 + $0xcc] sm:$0xf]
        %v2369 = vld [vmem:[%s748 + $0xd0] sm:$0xf]
        %v2370 = vld [vmem:[%s748 + $0xd4] sm:$0xf]
        %v2371 = vld [vmem:[%s748 + $0xd8] sm:$0xf]
        %v2372 = vld [vmem:[%s748 + $0xdc] sm:$0xf]
        %v2373 = vld [vmem:[%s748 + $0xe0] sm:$0xf]
        %v2374 = vld [vmem:[%s748 + $0xe4] sm:$0xf]
        %v2375 = vld [vmem:[%s748 + $0xe8] sm:$0xf]
        %v2376 = vld [vmem:[%s748 + $0xec] sm:$0xf]
        %v2377 = vld [vmem:[%s748 + $0xf0] sm:$0xf]
        %v2378 = vld [vmem:[%s748 + $0xf4] sm:$0xf]
        %v2379 = vld [vmem:[%s748 + $0xf8] sm:$0xf]
        %v2380 = vld [vmem:[%s748 + $0xfc] sm:$0xf]
        %v2381 = vld [vmem:[%s838] sm:$0x1]
        %v2383 = vperm.slane %v2381, 0
        %v2449 = vunpack.c.l.b16 %v2317
        %v2450 = vunpack.c.l.b16 %v2318
        %v2451 = vunpack.c.l.b16 %v2319
        %v2452 = vunpack.c.l.b16 %v2320
        %v2453 = vunpack.c.l.b16 %v2321
        %v2454 = vunpack.c.l.b16 %v2322
        %v2455 = vunpack.c.l.b16 %v2323
        %v2456 = vunpack.c.l.b16 %v2324
        %v2457 = vunpack.c.l.b16 %v2325
        %v2458 = vunpack.c.l.b16 %v2326
        %v2459 = vunpack.c.l.b16 %v2327
        %v2460 = vunpack.c.l.b16 %v2328
        %v2461 = vunpack.c.l.b16 %v2329
        %v2462 = vunpack.c.l.b16 %v2330
        %v2463 = vunpack.c.l.b16 %v2331
        %v2464 = vunpack.c.l.b16 %v2332
        %v2465 = vunpack.c.l.b16 %v2333
        %v2466 = vunpack.c.l.b16 %v2334
        %v2467 = vunpack.c.l.b16 %v2335
        %v2468 = vunpack.c.l.b16 %v2336
        %v2469 = vunpack.c.l.b16 %v2337
        %v2470 = vunpack.c.l.b16 %v2338
        %v2471 = vunpack.c.l.b16 %v2339
        %v2472 = vunpack.c.l.b16 %v2340
        %v2473 = vunpack.c.l.b16 %v2341
        %v2474 = vunpack.c.l.b16 %v2342
        %v2475 = vunpack.c.l.b16 %v2343
        %v2476 = vunpack.c.l.b16 %v2344
        %v2477 = vunpack.c.l.b16 %v2345
        %v2478 = vunpack.c.l.b16 %v2346
        %v2479 = vunpack.c.l.b16 %v2347
        %v2480 = vunpack.c.l.b16 %v2348
        %v2481 = vunpack.c.l.b16 %v2349
        %v2482 = vunpack.c.l.b16 %v2350
        %v2483 = vunpack.c.l.b16 %v2351
        %v2484 = vunpack.c.l.b16 %v2352
        %v2485 = vunpack.c.l.b16 %v2353
        %v2486 = vunpack.c.l.b16 %v2354
        %v2487 = vunpack.c.l.b16 %v2355
        %v2488 = vunpack.c.l.b16 %v2356
        %v2489 = vunpack.c.l.b16 %v2357
        %v2490 = vunpack.c.l.b16 %v2358
        %v2491 = vunpack.c.l.b16 %v2359
        %v2492 = vunpack.c.l.b16 %v2360
        %v2493 = vunpack.c.l.b16 %v2361
        %v2494 = vunpack.c.l.b16 %v2362
        %v2495 = vunpack.c.l.b16 %v2363
        %v2496 = vunpack.c.l.b16 %v2364
        %v2497 = vunpack.c.l.b16 %v2365
        %v2498 = vunpack.c.l.b16 %v2366
        %v2499 = vunpack.c.l.b16 %v2367
        %v2500 = vunpack.c.l.b16 %v2368
        %v2501 = vunpack.c.l.b16 %v2369
        %v2502 = vunpack.c.l.b16 %v2370
        %v2503 = vunpack.c.l.b16 %v2371
        %v2504 = vunpack.c.l.b16 %v2372
        %v2505 = vunpack.c.l.b16 %v2373
        %v2506 = vunpack.c.l.b16 %v2374
        %v2507 = vunpack.c.l.b16 %v2375
        %v2508 = vunpack.c.l.b16 %v2376
        %v2509 = vunpack.c.l.b16 %v2377
        %v2510 = vunpack.c.l.b16 %v2378
        %v2511 = vunpack.c.l.b16 %v2379
        %v2512 = vunpack.c.l.b16 %v2380
        %v2513 = vpack.c.b16 %v2450, %v2449
        %v2514 = vpack.c.b16 %v2452, %v2451
        %v2515 = vpack.c.b16 %v2454, %v2453
        %v2516 = vpack.c.b16 %v2456, %v2455
        %v2517 = vpack.c.b16 %v2458, %v2457
        %v2518 = vpack.c.b16 %v2460, %v2459
        %v2519 = vpack.c.b16 %v2462, %v2461
        %v2520 = vpack.c.b16 %v2464, %v2463
        %v2521 = vpack.c.b16 %v2466, %v2465
        %v2522 = vpack.c.b16 %v2468, %v2467
        %v2523 = vpack.c.b16 %v2470, %v2469
        %v2524 = vpack.c.b16 %v2472, %v2471
        %v2525 = vpack.c.b16 %v2474, %v2473
        %v2526 = vpack.c.b16 %v2476, %v2475
        %v2527 = vpack.c.b16 %v2478, %v2477
        %v2528 = vpack.c.b16 %v2480, %v2479
        %v2529 = vpack.c.b16 %v2482, %v2481
        %v2530 = vpack.c.b16 %v2484, %v2483
        %v2531 = vpack.c.b16 %v2486, %v2485
        %v2532 = vpack.c.b16 %v2488, %v2487
        %v2533 = vpack.c.b16 %v2490, %v2489
        %v2534 = vpack.c.b16 %v2492, %v2491
        %v2535 = vpack.c.b16 %v2494, %v2493
        %v2536 = vpack.c.b16 %v2496, %v2495
        %v2537 = vpack.c.b16 %v2498, %v2497
        %v2538 = vpack.c.b16 %v2500, %v2499
        %v2539 = vpack.c.b16 %v2502, %v2501
        %v2540 = vpack.c.b16 %v2504, %v2503
        %v2541 = vpack.c.b16 %v2506, %v2505
        %v2542 = vpack.c.b16 %v2508, %v2507
        %v2543 = vpack.c.b16 %v2510, %v2509
        %v2544 = vpack.c.b16 %v2512, %v2511
        %2577 = vmatpush.bf16.msra.mxu0 %v2520
        %2578 = vmatpush.bf16.msra.mxu0 %v2519
        %2579 = vmatpush.bf16.msra.mxu0 %v2518
        %2580 = vmatpush.bf16.msra.mxu0 %v2517
        %2581 = vmatpush.bf16.msra.mxu0 %v2516
        %2582 = vmatpush.bf16.msra.mxu0 %v2515
        %2583 = vmatpush.bf16.msra.mxu0 %v2514
        %2584 = vmatpush.bf16.msra.mxu0 %v2513
        %2585 = vmatmul.bf16.gmra.mxu0 %v2309
        %v2586 = vpop.f32.mrf.mxu0
        %v2587 = vadd.f32 %v2383, %v2586
        %v2588 = vpop.f32.mrf.mxu0
        %v2589 = vadd.f32 %v2383, %v2588
        %2590 = vmatmul.bf16.gmra.mxu0 %v2313
        %v2591 = vpop.f32.mrf.mxu0
        %v2592 = vadd.f32 %v2383, %v2591
        %v2593 = vpop.f32.mrf.mxu0
        %v2594 = vadd.f32 %v2383, %v2593
        %2595 = vdwg.mxu0
        %2596 = vmatpush.bf16.msra.mxu0 %v2528
        %2597 = vmatpush.bf16.msra.mxu0 %v2527
        %2598 = vmatpush.bf16.msra.mxu0 %v2526
        %2599 = vmatpush.bf16.msra.mxu0 %v2525
        %2600 = vmatpush.bf16.msra.mxu0 %v2524
        %2601 = vmatpush.bf16.msra.mxu0 %v2523
        %2602 = vmatpush.bf16.msra.mxu0 %v2522
        %2603 = vmatpush.bf16.msra.mxu0 %v2521
        %2604 = vmatmul.bf16.gmra.mxu0 %v2310
        %v2605 = vpop.f32.mrf.mxu0
        %v2606 = vadd.f32 %v2587, %v2605
        %v2607 = vpop.f32.mrf.mxu0
        %v2608 = vadd.f32 %v2589, %v2607
        %2609 = vmatmul.bf16.gmra.mxu0 %v2314
        %v2610 = vpop.f32.mrf.mxu0
        %v2611 = vadd.f32 %v2592, %v2610
        %v2612 = vpop.f32.mrf.mxu0
        %v2613 = vadd.f32 %v2594, %v2612
        %2614 = vdwg.mxu0
        %2615 = vmatpush.bf16.msra.mxu0 %v2536
        %2616 = vmatpush.bf16.msra.mxu0 %v2535
        %2617 = vmatpush.bf16.msra.mxu0 %v2534
        %2618 = vmatpush.bf16.msra.mxu0 %v2533
        %2619 = vmatpush.bf16.msra.mxu0 %v2532
        %2620 = vmatpush.bf16.msra.mxu0 %v2531
        %2621 = vmatpush.bf16.msra.mxu0 %v2530
        %2622 = vmatpush.bf16.msra.mxu0 %v2529
        %2623 = vmatmul.bf16.gmra.mxu0 %v2311
        %v2624 = vpop.f32.mrf.mxu0
        %v2625 = vadd.f32 %v2606, %v2624
        %v2626 = vpop.f32.mrf.mxu0
        %v2627 = vadd.f32 %v2608, %v2626
        %2628 = vmatmul.bf16.gmra.mxu0 %v2315
        %v2629 = vpop.f32.mrf.mxu0
        %v2630 = vadd.f32 %v2611, %v2629
        %v2631 = vpop.f32.mrf.mxu0
        %v2632 = vadd.f32 %v2613, %v2631
        %2633 = vdwg.mxu0
        %2634 = vmatpush.bf16.msra.mxu0 %v2544
        %2635 = vmatpush.bf16.msra.mxu0 %v2543
        %2636 = vmatpush.bf16.msra.mxu0 %v2542
        %2637 = vmatpush.bf16.msra.mxu0 %v2541
        %2638 = vmatpush.bf16.msra.mxu0 %v2540
        %2639 = vmatpush.bf16.msra.mxu0 %v2539
        %2640 = vmatpush.bf16.msra.mxu0 %v2538
        %2641 = vmatpush.bf16.msra.mxu0 %v2537
        %2642 = vmatmul.bf16.gmra.mxu0 %v2312
        %v2643 = vpop.f32.mrf.mxu0
        %v2644 = vadd.f32 %v2625, %v2643
        %v2645 = vpop.f32.mrf.mxu0
        %v2646 = vadd.f32 %v2627, %v2645
        %2647 = vmatmul.bf16.gmra.mxu0 %v2316
        %v2648 = vpop.f32.mrf.mxu0
        %v2649 = vadd.f32 %v2630, %v2648
        %v2650 = vpop.f32.mrf.mxu0
        %v2651 = vadd.f32 %v2632, %v2650
        %2652 = vdwg.mxu0
        %v2653 = vadd.f32 %v1913, %v2644
        %v2654 = vadd.f32 %v1914, %v2646
        %v2655 = vadd.f32 %v1915, %v2649
        %v2656 = vadd.f32 %v1916, %v2651
        %p2657 = scmp.lt.s32.totalorder %s47, 1
        // Predicated region
        $region121: #{tpu_custom_call.1} parent=75 // pred_check
          %p2658 = pneg %p2657
        $region122: #{tpu_custom_call.1} parent=75 // pred_check_branch
          %2660 = sbr.rel (%p2658) target = $region124
        $region123: #{tpu_custom_call.1} parent=75 // pred_region
          %2661 = vst [vmem:[#allocation2] sm:$0xff] %v2653
          %2662 = vst [vmem:[#allocation2 + $0x8] sm:$0xff] %v2654
          %2663 = vst [vmem:[#allocation2 + $0x10] sm:$0xff] %v2655
          %2664 = vst [vmem:[#allocation2 + $0x18] sm:$0xff] %v2656
        $region124: #{tpu_custom_call.1} parent=75 // pred_fallthru
          _
        %p2665 = scmp.eq.s32.totalorder %s47, 1
        // Predicated region
        $region125: #{tpu_custom_call.1} parent=75 // pred_check
          %p2666 = pneg %p2665
        $region126: #{tpu_custom_call.1} parent=75 // pred_check_branch
          %2668 = sbr.rel (%p2666) target = $region128
        $region127: #{tpu_custom_call.1} parent=75 // pred_region
          %v2669 = vld [vmem:[%s12] sm:$0x1]
          %v2670 = vld [vmem:[%s13] sm:$0x1]
          %2671 = vadd.xlane.f32.xlu0 %v2653
          %v2672 = vpop.xlane.xlu0 %2671
          %2673 = vadd.xlane.f32.xlu0 %v2654
          %v2674 = vpop.xlane.xlu0 %2673
          %2675 = vadd.xlane.f32.xlu0 %v2655
          %v2676 = vpop.xlane.xlu0 %2675
          %2677 = vadd.xlane.f32.xlu0 %v2656
          %v2678 = vpop.xlane.xlu0 %2677
          %v2679 = vmul.f32 %v2672, %v873
          %v2680 = vmul.f32 %v2674, %v873
          %v2681 = vmul.f32 %v2676, %v873
          %v2682 = vmul.f32 %v2678, %v873
          %v2683 = vsub.f32 %v2653, %v2679
          %v2684 = vsub.f32 %v2654, %v2680
          %v2685 = vsub.f32 %v2655, %v2681
          %v2686 = vsub.f32 %v2656, %v2682
          %v2687 = vmul.f32 %v2683, %v2683
          %v2688 = vmul.f32 %v2684, %v2684
          %v2689 = vmul.f32 %v2685, %v2685
          %v2690 = vmul.f32 %v2686, %v2686
          %2691 = vadd.xlane.f32.xlu0 %v2687
          %v2692 = vpop.xlane.xlu0 %2691
          %2693 = vadd.xlane.f32.xlu0 %v2688
          %v2694 = vpop.xlane.xlu0 %2693
          %2695 = vadd.xlane.f32.xlu0 %v2689
          %v2696 = vpop.xlane.xlu0 %2695
          %2697 = vadd.xlane.f32.xlu0 %v2690
          %v2698 = vpop.xlane.xlu0 %2697
          %v2699 = vmul.f32 %v2692, %v873
          %v2700 = vmul.f32 %v2694, %v873
          %v2701 = vmul.f32 %v2696, %v873
          %v2702 = vmul.f32 %v2698, %v873
          %v2703 = vadd.f32 %v2699, 1e-05
          %v2704 = vadd.f32 %v2700, 1e-05
          %v2705 = vadd.f32 %v2701, 1e-05
          %v2706 = vadd.f32 %v2702, 1e-05
          %v2707 = vrsqrt.pop %v2703
          %v2708 = vmul.f32 %v2707, %v2703
          %v2709 = vmul.f32 %v2708, %v2707
          %v2710 = vmul.f32 0.5, %v2709
          %v2711 = vsub.f32 1.5, %v2710
          %v2712 = vmul.f32 %v2707, %v2711
          %vm2713 = vweird.f32 %v2703
          %vm2714 = vweird.f32 %v2707
          %vm2715 = vmor %vm2713, %vm2714
          %v2716 = vsel %vm2715, %v2707, %v2712
          %v2717 = vrsqrt.pop %v2704
          %v2718 = vmul.f32 %v2717, %v2704
          %v2719 = vmul.f32 %v2718, %v2717
          %v2720 = vmul.f32 0.5, %v2719
          %v2721 = vsub.f32 1.5, %v2720
          %v2722 = vmul.f32 %v2717, %v2721
          %vm2723 = vweird.f32 %v2704
          %vm2724 = vweird.f32 %v2717
          %vm2725 = vmor %vm2723, %vm2724
          %v2726 = vsel %vm2725, %v2717, %v2722
          %v2727 = vrsqrt.pop %v2705
          %v2728 = vmul.f32 %v2727, %v2705
          %v2729 = vmul.f32 %v2728, %v2727
          %v2730 = vmul.f32 0.5, %v2729
          %v2731 = vsub.f32 1.5, %v2730
          %v2732 = vmul.f32 %v2727, %v2731
          %vm2733 = vweird.f32 %v2705
          %vm2734 = vweird.f32 %v2727
          %vm2735 = vmor %vm2733, %vm2734
          %v2736 = vsel %vm2735, %v2727, %v2732
          %v2737 = vrsqrt.pop %v2706
          %v2738 = vmul.f32 %v2737, %v2706
          %v2739 = vmul.f32 %v2738, %v2737
          %v2740 = vmul.f32 0.5, %v2739
          %v2741 = vsub.f32 1.5, %v2740
          %v2742 = vmul.f32 %v2737, %v2741
          %vm2743 = vweird.f32 %v2706
          %vm2744 = vweird.f32 %v2737
          %vm2745 = vmor %vm2743, %vm2744
          %v2746 = vsel %vm2745, %v2737, %v2742
          %v2747 = vmul.f32 %v2683, %v2716
          %v2748 = vmul.f32 %v2684, %v2726
          %v2749 = vmul.f32 %v2685, %v2736
          %v2750 = vmul.f32 %v2686, %v2746
          %v2752 = vperm.slane %v2669, 0
          %v2754 = vmul.f32 %v2747, %v2752
          %v2755 = vmul.f32 %v2748, %v2752
          %v2756 = vmul.f32 %v2749, %v2752
          %v2757 = vmul.f32 %v2750, %v2752
          %v2759 = vperm.slane %v2670, 0
          %v2761 = vadd.f32 %v2754, %v2759
          %v2762 = vadd.f32 %v2755, %v2759
          %v2763 = vadd.f32 %v2756, %v2759
          %v2764 = vadd.f32 %v2757, %v2759
          %2765 = vst [vmem:[#allocation21] sm:$0xff] %v2761
          %2766 = vst [vmem:[#allocation21 + $0x8] sm:$0xff] %v2762
          %2767 = vst [vmem:[#allocation21 + $0x10] sm:$0xff] %v2763
          %2768 = vst [vmem:[#allocation21 + $0x18] sm:$0xff] %v2764
        $region128: #{tpu_custom_call.1} parent=75 // pred_fallthru
          _
        // Predicated region
        $region129: #{tpu_custom_call.1} parent=75 // pred_check
          %p2769 = pneg %p426
        $region130: #{tpu_custom_call.1} parent=75 // pred_check_branch
          %2771 = sbr.rel (%p2769) target = $region132
        $region131: #{tpu_custom_call.1} parent=75 // pred_region
          %s2772 = smul.u32 4, %s46
          %2774 = vsyncadd [#allocation6], 0
          %s2775 = smul.addr %s2772, 8
          %s2776 = scalar_lea.hbm %s14, %s2775
          %s2777 = sshll.u32 [#allocation21], 4
          %s2778 = int_to_ptr.vmem [resolvable:$true] %s2777
          %s2779 = sshll.u32 %s2776, 4
          %s2780 = int_to_ptr.hbm [resolvable:$true] %s2779
          %2785 = dma.vmem_to_hbm [thread:$0]  %s2778, 512, %s2780, [#allocation6], 128, 128, 8
        $region132: #{tpu_custom_call.1} parent=75 // pred_fallthru
          _
        // Predicated region
        $region133: #{tpu_custom_call.1} parent=75 // pred_check
          %p2786 = pneg %p426
        $region134: #{tpu_custom_call.1} parent=75 // pred_check_branch
          %2788 = sbr.rel (%p2786) target = $region136
        $region135: #{tpu_custom_call.1} parent=75 // pred_region
          %2790 = dma.done [#allocation6], 512
        $region136: #{tpu_custom_call.1} parent=75 // pred_fallthru
          _
      $region76: #{tpu_custom_call.1} parent=5 // pred_fallthru
        _
      %p2791 = scmp.le.s32.totalorder 2, %s37
      // Predicated region
      $region137: #{tpu_custom_call.1} parent=5 // pred_check
        %p2792 = pneg %p2791
      $region138: #{tpu_custom_call.1} parent=5 // pred_check_branch
        %2794 = sbr.rel (%p2792) target = $region140
      $region139: #{tpu_custom_call.1} parent=5 // pred_region
        %s2795 = ssub.s32 %s37, 2
      $region140: #{tpu_custom_call.1} parent=5 // pred_fallthru
        _
    $region6: #{tpu_custom_call.1} parent=1 // loop_footer
      %s41 = sadd.s32 1, %s37
    $region7: #{tpu_custom_call.1} parent=1 // loop_footer_branch
      %36 = sbr.rel target = $region3
    $region8: #{tpu_custom_call.1} parent=1 // loop_exit
      _
    %2796 = vsyncpa [#allocation5], 1
    %s2797 = scalar_lea.sflag [#allocation5], 1
    %2798 = vsyncpa %s2797, 1
    %2799 = vsyncpa [#allocation8], 1
    %s2800 = scalar_lea.sflag [#allocation8], 1
    %2801 = vsyncpa %s2800, 1
    %2802 = vsyncpa [#allocation11], 1
    %s2803 = scalar_lea.sflag [#allocation11], 1
    %2804 = vsyncpa %s2803, 1
    %2805 = vsyncpa [#allocation14], 1
    %s2806 = scalar_lea.sflag [#allocation14], 1
    %2807 = vsyncpa %s2806, 1
    %2808 = vsyncpa [#allocation17], 1
    %s2809 = scalar_lea.sflag [#allocation17], 1
    %2810 = vsyncpa %s2809, 1
    %2811 = vsyncpa [#allocation20], 1
    %s2812 = scalar_lea.sflag [#allocation20], 1
    %2813 = vsyncpa %s2812, 1
    %2814 = vsyncpa [#allocation6], 1
    %s2815 = scalar_lea.sflag [#allocation6], 1
    %2816 = vsyncpa %s2815, 1

</llo_original>
